<compile_context>
chip_gen: v5e
topology: v5e:2x2
jax: 0.10.0
libtpu: 0.0.40
codegen_flags: <defaults>
</compile_context>

<pallas_src>
import functools

import jax
import jax.numpy as jnp
from jax.experimental import pallas as pl
from jax.experimental.pallas import tpu as pltpu

EPS = 1e-5
LANE = 128


def _round_up(v, m):
    return (v + m - 1) // m * m


def _pad_hw1(a):
    """Zero-pad H and W by 1 on each side, as a value (bf16, fully in-kernel)."""
    n, h, w, c = a.shape
    zw = jnp.zeros((n, h, 1, c), a.dtype)
    a = jnp.concatenate([zw, a, zw], axis=2)          # (n, h, w+2, c)
    zh = jnp.zeros((n, 1, w + 2, c), a.dtype)
    return jnp.concatenate([zh, a, zh], axis=1)       # (n, h+2, w+2, c)


def _conv3x3(a, w_ref, b_ref):
    """3x3 'same' conv as ONE im2col matmul (bf16 operands, f32 accumulation).

    a:     (N, H, W, Cin) bf16
    w_ref: (Kpad, Cout) bf16 ref — rows ordered (dh, dw, cin), zero-padded to
           a 128-multiple Kpad so the patch reshape below is relayout-free.
    b_ref: (1, Cout) f32 ref
    returns (N*H*W, Cout) f32
    """
    n, h, w, cin = a.shape
    a = a.astype(jnp.bfloat16)                        # no-op if already bf16
    kpad = w_ref.shape[0]
    ap = _pad_hw1(a)                                  # (N, H+2, W+2, Cin) bf16
    taps = [ap[:, dh:dh + h, dw:dw + w, :]
            for dh in range(3) for dw in range(3)]
    extra = kpad - 9 * cin
    if extra:                                         # pad K to the lane tile
        taps.append(jnp.zeros((n, h, w, extra), jnp.bfloat16))
    patch = jnp.concatenate(taps, axis=-1).reshape(n * h * w, kpad)
    y = jnp.dot(patch, w_ref[...], preferred_element_type=jnp.float32)
    return y + b_ref[...]


def _bn_relu(y, g_ref, be_ref):
    """Training-mode BN (batch mean / biased var) + ReLU; f32 math, bf16 out."""
    mean = jnp.mean(y, axis=0, keepdims=True)
    var = jnp.mean(jnp.square(y - mean), axis=0, keepdims=True)   # centered form
    scale = g_ref[...] * jax.lax.rsqrt(var + EPS)
    return jnp.maximum((y - mean) * scale + be_ref[...], 0.0).astype(jnp.bfloat16)


def decoder_kernel(x_ref, w1_ref, b1_ref, g1_ref, be1_ref,
                   w2_ref, b2_ref, g2_ref, be2_ref,
                   wt_ref, bt_ref, o_ref, *, N, H, W):
    cmid = w1_ref.shape[-1]

    x = x_ref[...]                                                # (N,H,W,Cin) bf16

    # stage 1: Conv3x3 -> BN -> ReLU (stats over the whole batch, all in VMEM)
    y1 = _conv3x3(x, w1_ref, b1_ref)                              # (M, Cmid) f32
    a1 = _bn_relu(y1, g1_ref, be1_ref)                            # (M, Cmid) bf16

    # stage 2: Conv3x3 -> BN -> ReLU
    y2 = _conv3x3(a1.reshape(N, H, W, cmid), w2_ref, b2_ref)      # (M, Cmid) f32
    a2 = _bn_relu(y2, g2_ref, be2_ref)                            # (M, Cmid) bf16

    # stage 3: ConvTranspose2d(k=2, s=2) == one matmul with a packed
    # (Cmid, 4*Cout) weight; result columns ordered (dh, dw, cout).
    y3 = jnp.dot(a2, wt_ref[...], preferred_element_type=jnp.float32) + bt_ref[...]

    # packed, lane-dense output block (4*Cout is a 128-multiple here); trivial
    # reshape (minor dim unchanged), unmasked stores.
    o_ref[...] = y3.reshape(o_ref.shape)                          # (N, H*W, 4*Cout)


def _vmem_limit_bytes():
    try:
        cap = pltpu.get_tpu_info().vmem_capacity_bytes
    except Exception:
        cap = 128 * 1024 * 1024
    # ~3/4 of physical: ~96 MiB on v5e/v6e, ~48 MiB on v7x.
    return int(cap * 3 // 4)


def decoder_block(x_nchw, p):
    N, Cin, H, W = x_nchw.shape
    Cmid = p["w1"].shape[-1]
    Cout = p["wt"].shape[-1]

    # Single host-side relayout: NCHW -> NHWC fused with the bf16 down-cast.
    x = jnp.transpose(x_nchw, (0, 2, 3, 1)).astype(jnp.bfloat16)

    # One-time packing of the (tiny) parameters: conv weights -> (Kpad, Cout)
    # im2col matrices (rows = (dh, dw, cin), zero rows pad K to a 128-multiple;
    # prefer 256-multiples on v6e/v7x), ConvT weight -> (Cmid, 4*Cout), all
    # matmul operands pre-cast to bf16.
    def pack_conv_w(w):
        kh, kw, ci, co = w.shape
        k9 = kh * kw * ci
        kpad = _round_up(k9, LANE)
        wm = w.reshape(k9, co).astype(jnp.bfloat16)
        if kpad > k9:
            wm = jnp.concatenate([wm, jnp.zeros((kpad - k9, co), jnp.bfloat16)], 0)
        return wm

    w1 = pack_conv_w(p["w1"])                                     # (256, Cmid)
    w2 = pack_conv_w(p["w2"])                                     # (384, Cmid)
    wt = jnp.transpose(p["wt"], (2, 0, 1, 3)).reshape(Cmid, 4 * Cout).astype(jnp.bfloat16)
    bt = jnp.tile(p["bt"], 4).reshape(1, 4 * Cout)                # (dh, dw, cout) order

    vmem = pl.BlockSpec(memory_space=pltpu.MemorySpace.VMEM)

    o = pl.pallas_call(
        functools.partial(decoder_kernel, N=N, H=H, W=W),
        # grid-less call: every operand resident whole in VMEM, single-buffered
        # (no useless double-buffering of full-array blocks at grid=(1,)).
        in_specs=[vmem] * 11,
        out_specs=vmem,
        out_shape=jax.ShapeDtypeStruct((N, H * W, 4 * Cout), jnp.float32),
        compiler_params=pltpu.CompilerParams(vmem_limit_bytes=_vmem_limit_bytes()),
    )(x, w1, p["b1"].reshape(1, -1), p["g1"].reshape(1, -1), p["be1"].reshape(1, -1),
      w2, p["b2"].reshape(1, -1), p["g2"].reshape(1, -1), p["be2"].reshape(1, -1),
      wt, bt)

    # (dh, dw) sub-pixel unpack + NHWC -> NCHW, fused into ONE transpose pass.
    o = o.reshape(N, H, W, 2, 2, Cout)
    return jnp.transpose(o, (0, 5, 1, 3, 2, 4)).reshape(N, Cout, 2 * H, 2 * W)


# ----------------------------- pure-JAX reference ----------------------------
def ref_forward(x_nchw, p):
    x = jnp.transpose(x_nchw, (0, 2, 3, 1)).astype(jnp.float32)

    def conv3(x, w, b):
        y = jax.lax.conv_general_dilated(
            x, w, window_strides=(1, 1), padding="SAME",
            dimension_numbers=("NHWC", "HWIO", "NHWC"),
            precision=jax.lax.Precision.HIGHEST)
        return y + b

    def bn_relu(y, gamma, beta):
        mean = jnp.mean(y, axis=(0, 1, 2))
        var = jnp.mean(jnp.square(y - mean), axis=(0, 1, 2))
        return jnp.maximum((y - mean) / jnp.sqrt(var + EPS) * gamma + beta, 0.0)

    y = bn_relu(conv3(x, p["w1"], p["b1"]), p["g1"], p["be1"])
    y = bn_relu(conv3(y, p["w2"], p["b2"]), p["g2"], p["be2"])
    N, H, W, _ = y.shape
    Cout = p["wt"].shape[-1]
    # ConvTranspose2d(k=2, s=2): out[2h+dh, 2w+dw] = sum_c y[h,w,c] * wt[dh,dw,c,:]
    yt = jnp.einsum("nhwc,ijcd->nhiwjd", y, p["wt"],
                    precision=jax.lax.Precision.HIGHEST)
    yt = yt.reshape(N, 2 * H, 2 * W, Cout) + p["bt"]
    return jnp.transpose(yt, (0, 3, 1, 2))


if __name__ == "__main__":
    # Small but lane-respecting channel counts: 4*Cout = 128 keeps the packed
    # ConvT output block lane-dense; everything fits comfortably in VMEM so the
    # whole block runs as one fused, single-buffered kernel call.
    N, Cin, Cmid, Cout, H, W = 2, 16, 32, 32, 16, 16
    key = jax.random.PRNGKey(0)
    kx, k1, k2, k3, k4, k5, k6 = jax.random.split(key, 7)

    x = jax.random.normal(kx, (N, Cin, H, W), jnp.float32)
    params = {
        "w1": jax.random.normal(k1, (3, 3, Cin, Cmid), jnp.float32) * 0.1,
        "b1": jax.random.normal(k2, (Cmid,), jnp.float32) * 0.1,
        "g1": jnp.ones((Cmid,), jnp.float32),
        "be1": jnp.zeros((Cmid,), jnp.float32),
        "w2": jax.random.normal(k3, (3, 3, Cmid, Cmid), jnp.float32) * 0.1,
        "b2": jax.random.normal(k4, (Cmid,), jnp.float32) * 0.1,
        "g2": jnp.ones((Cmid,), jnp.float32),
        "be2": jnp.zeros((Cmid,), jnp.float32),
        "wt": jax.random.normal(k5, (2, 2, Cmid, Cout), jnp.float32) * 0.1,
        "bt": jax.random.normal(k6, (Cout,), jnp.float32) * 0.1,
    }

    out = jax.block_until_ready(jax.jit(decoder_block)(x, params))
    ref = jax.block_until_ready(jax.jit(ref_forward)(x, params))

    assert out.shape == (N, Cout, 2 * H, 2 * W), out.shape
    err = float(jnp.max(jnp.abs(out - ref)))
    # bf16 MXU operands / bf16 activations through two chained BN stages vs an
    # f32-HIGHEST reference; a real packing/BN/layout bug would be O(0.3+).
    if err > 1e-1:
        raise AssertionError(f"mismatch vs reference: max abs err {err}")
    print("KERNEL_OK")
</pallas_src>

<mosaic_0001>
module attributes {stable_mosaic.version = 11 : i64} {
  func.func @decoder_kernel(%arg0: memref<2x16x16x16xbf16, #tpu.memory_space<vmem>>, %arg1: memref<256x32xbf16, #tpu.memory_space<vmem>>, %arg2: memref<1x32xf32, #tpu.memory_space<vmem>>, %arg3: memref<1x32xf32, #tpu.memory_space<vmem>>, %arg4: memref<1x32xf32, #tpu.memory_space<vmem>>, %arg5: memref<384x32xbf16, #tpu.memory_space<vmem>>, %arg6: memref<1x32xf32, #tpu.memory_space<vmem>>, %arg7: memref<1x32xf32, #tpu.memory_space<vmem>>, %arg8: memref<1x32xf32, #tpu.memory_space<vmem>>, %arg9: memref<32x128xbf16, #tpu.memory_space<vmem>>, %arg10: memref<1x128xf32, #tpu.memory_space<vmem>>, %arg11: memref<2x256x128xf32, #tpu.memory_space<vmem>>) attributes {dimension_semantics = [], scalar_prefetch = 0 : i64, scratch_operands = 0 : i64, tpu.core_type = #tpu.core_type<tc>} {
    %c0 = arith.constant 0 : index
    %c0_0 = arith.constant 0 : index
    %c0_1 = arith.constant 0 : index
    %c0_2 = arith.constant 0 : index
    %0 = vector.load %arg0[%c0, %c0_0, %c0_1, %c0_2] : memref<2x16x16x16xbf16, #tpu.memory_space<vmem>>, vector<2x16x16x16xbf16>
    %cst = arith.constant 0.000000e+00 : bf16
    %1 = vector.broadcast %cst : bf16 to vector<2x16x1x16xbf16>
    %2 = tpu.concatenate %1, %0, %1 in 2 : vector<2x16x1x16xbf16>, vector<2x16x16x16xbf16>, vector<2x16x1x16xbf16> -> vector<2x16x18x16xbf16>
    %cst_3 = arith.constant 0.000000e+00 : bf16
    %3 = vector.broadcast %cst_3 : bf16 to vector<2x1x18x16xbf16>
    %4 = tpu.concatenate %3, %2, %3 in 1 : vector<2x1x18x16xbf16>, vector<2x16x18x16xbf16>, vector<2x1x18x16xbf16> -> vector<2x18x18x16xbf16>
    %5 = vector.extract_strided_slice %4 {offsets = [0, 0, 0, 0], sizes = [2, 16, 16, 16], strides = [1, 1, 1, 1]} : vector<2x18x18x16xbf16> to vector<2x16x16x16xbf16>
    %6 = vector.extract_strided_slice %4 {offsets = [0, 0, 1, 0], sizes = [2, 16, 16, 16], strides = [1, 1, 1, 1]} : vector<2x18x18x16xbf16> to vector<2x16x16x16xbf16>
    %7 = vector.extract_strided_slice %4 {offsets = [0, 0, 2, 0], sizes = [2, 16, 16, 16], strides = [1, 1, 1, 1]} : vector<2x18x18x16xbf16> to vector<2x16x16x16xbf16>
    %8 = vector.extract_strided_slice %4 {offsets = [0, 1, 0, 0], sizes = [2, 16, 16, 16], strides = [1, 1, 1, 1]} : vector<2x18x18x16xbf16> to vector<2x16x16x16xbf16>
    %9 = vector.extract_strided_slice %4 {offsets = [0, 1, 1, 0], sizes = [2, 16, 16, 16], strides = [1, 1, 1, 1]} : vector<2x18x18x16xbf16> to vector<2x16x16x16xbf16>
    %10 = vector.extract_strided_slice %4 {offsets = [0, 1, 2, 0], sizes = [2, 16, 16, 16], strides = [1, 1, 1, 1]} : vector<2x18x18x16xbf16> to vector<2x16x16x16xbf16>
    %11 = vector.extract_strided_slice %4 {offsets = [0, 2, 0, 0], sizes = [2, 16, 16, 16], strides = [1, 1, 1, 1]} : vector<2x18x18x16xbf16> to vector<2x16x16x16xbf16>
    %12 = vector.extract_strided_slice %4 {offsets = [0, 2, 1, 0], sizes = [2, 16, 16, 16], strides = [1, 1, 1, 1]} : vector<2x18x18x16xbf16> to vector<2x16x16x16xbf16>
    %13 = vector.extract_strided_slice %4 {offsets = [0, 2, 2, 0], sizes = [2, 16, 16, 16], strides = [1, 1, 1, 1]} : vector<2x18x18x16xbf16> to vector<2x16x16x16xbf16>
    %cst_4 = arith.constant 0.000000e+00 : bf16
    %14 = vector.broadcast %cst_4 : bf16 to vector<2x16x16x112xbf16>
    %15 = tpu.concatenate %5, %6, %7, %8, %9, %10, %11, %12, %13, %14 in 3 : vector<2x16x16x16xbf16>, vector<2x16x16x16xbf16>, vector<2x16x16x16xbf16>, vector<2x16x16x16xbf16>, vector<2x16x16x16xbf16>, vector<2x16x16x16xbf16>, vector<2x16x16x16xbf16>, vector<2x16x16x16xbf16>, vector<2x16x16x16xbf16>, vector<2x16x16x112xbf16> -> vector<2x16x16x256xbf16>
    %16 = vector.shape_cast %15 : vector<2x16x16x256xbf16> to vector<512x256xbf16>
    %c0_5 = arith.constant 0 : index
    %c0_6 = arith.constant 0 : index
    %17 = vector.load %arg1[%c0_5, %c0_6] : memref<256x32xbf16, #tpu.memory_space<vmem>>, vector<256x32xbf16>
    %cst_7 = arith.constant dense<0.000000e+00> : vector<512x32xf32>
    %18 = tpu.matmul %16, %17, %cst_7 {dimension_numbers = #tpu.dot_dimension_numbers<[1], [0], [0], [1], [0, 0, 1, 1], [], []>} : vector<512x256xbf16>, vector<256x32xbf16>, vector<512x32xf32> -> vector<512x32xf32>
    %c0_8 = arith.constant 0 : index
    %c0_9 = arith.constant 0 : index
    %19 = vector.load %arg2[%c0_8, %c0_9] : memref<1x32xf32, #tpu.memory_space<vmem>>, vector<1x32xf32>
    %20 = vector.broadcast %19 : vector<1x32xf32> to vector<512x32xf32>
    %21 = arith.addf %18, %20 : vector<512x32xf32>
    %cst_10 = arith.constant dense<0.000000e+00> : vector<32xf32>
    %22 = vector.multi_reduction <add>, %21, %cst_10 [0] : vector<512x32xf32> to vector<32xf32>
    %23 = vector.shape_cast %22 : vector<32xf32> to vector<1x32xf32>
    %cst_11 = arith.constant 5.120000e+02 : f32
    %24 = vector.broadcast %cst_11 : f32 to vector<1x32xf32>
    %25 = arith.divf %23, %24 : vector<1x32xf32>
    %26 = vector.broadcast %25 : vector<1x32xf32> to vector<512x32xf32>
    %27 = arith.subf %21, %26 : vector<512x32xf32>
    %28 = arith.mulf %27, %27 : vector<512x32xf32>
    %cst_12 = arith.constant dense<0.000000e+00> : vector<32xf32>
    %29 = vector.multi_reduction <add>, %28, %cst_12 [0] : vector<512x32xf32> to vector<32xf32>
    %30 = vector.shape_cast %29 : vector<32xf32> to vector<1x32xf32>
    %cst_13 = arith.constant 5.120000e+02 : f32
    %31 = vector.broadcast %cst_13 : f32 to vector<1x32xf32>
    %32 = arith.divf %30, %31 : vector<1x32xf32>
    %c0_14 = arith.constant 0 : index
    %c0_15 = arith.constant 0 : index
    %33 = vector.load %arg3[%c0_14, %c0_15] : memref<1x32xf32, #tpu.memory_space<vmem>>, vector<1x32xf32>
    %cst_16 = arith.constant 9.99999974E-6 : f32
    %34 = vector.broadcast %cst_16 : f32 to vector<1x32xf32>
    %35 = arith.addf %32, %34 : vector<1x32xf32>
    %36 = math.rsqrt %35 : vector<1x32xf32>
    %37 = arith.mulf %33, %36 : vector<1x32xf32>
    %38 = vector.broadcast %25 : vector<1x32xf32> to vector<512x32xf32>
    %39 = arith.subf %21, %38 : vector<512x32xf32>
    %40 = vector.broadcast %37 : vector<1x32xf32> to vector<512x32xf32>
    %41 = arith.mulf %39, %40 : vector<512x32xf32>
    %c0_17 = arith.constant 0 : index
    %c0_18 = arith.constant 0 : index
    %42 = vector.load %arg4[%c0_17, %c0_18] : memref<1x32xf32, #tpu.memory_space<vmem>>, vector<1x32xf32>
    %43 = vector.broadcast %42 : vector<1x32xf32> to vector<512x32xf32>
    %44 = arith.addf %41, %43 : vector<512x32xf32>
    %cst_19 = arith.constant 0.000000e+00 : f32
    %45 = vector.broadcast %cst_19 : f32 to vector<512x32xf32>
    %46 = arith.maximumf %44, %45 : vector<512x32xf32>
    %47 = arith.truncf %46 : vector<512x32xf32> to vector<512x32xbf16>
    %48 = vector.shape_cast %47 : vector<512x32xbf16> to vector<2x16x16x32xbf16>
    %cst_20 = arith.constant 0.000000e+00 : bf16
    %49 = vector.broadcast %cst_20 : bf16 to vector<2x16x1x32xbf16>
    %50 = tpu.concatenate %49, %48, %49 in 2 : vector<2x16x1x32xbf16>, vector<2x16x16x32xbf16>, vector<2x16x1x32xbf16> -> vector<2x16x18x32xbf16>
    %cst_21 = arith.constant 0.000000e+00 : bf16
    %51 = vector.broadcast %cst_21 : bf16 to vector<2x1x18x32xbf16>
    %52 = tpu.concatenate %51, %50, %51 in 1 : vector<2x1x18x32xbf16>, vector<2x16x18x32xbf16>, vector<2x1x18x32xbf16> -> vector<2x18x18x32xbf16>
    %53 = vector.extract_strided_slice %52 {offsets = [0, 0, 0, 0], sizes = [2, 16, 16, 32], strides = [1, 1, 1, 1]} : vector<2x18x18x32xbf16> to vector<2x16x16x32xbf16>
    %54 = vector.extract_strided_slice %52 {offsets = [0, 0, 1, 0], sizes = [2, 16, 16, 32], strides = [1, 1, 1, 1]} : vector<2x18x18x32xbf16> to vector<2x16x16x32xbf16>
    %55 = vector.extract_strided_slice %52 {offsets = [0, 0, 2, 0], sizes = [2, 16, 16, 32], strides = [1, 1, 1, 1]} : vector<2x18x18x32xbf16> to vector<2x16x16x32xbf16>
    %56 = vector.extract_strided_slice %52 {offsets = [0, 1, 0, 0], sizes = [2, 16, 16, 32], strides = [1, 1, 1, 1]} : vector<2x18x18x32xbf16> to vector<2x16x16x32xbf16>
    %57 = vector.extract_strided_slice %52 {offsets = [0, 1, 1, 0], sizes = [2, 16, 16, 32], strides = [1, 1, 1, 1]} : vector<2x18x18x32xbf16> to vector<2x16x16x32xbf16>
    %58 = vector.extract_strided_slice %52 {offsets = [0, 1, 2, 0], sizes = [2, 16, 16, 32], strides = [1, 1, 1, 1]} : vector<2x18x18x32xbf16> to vector<2x16x16x32xbf16>
    %59 = vector.extract_strided_slice %52 {offsets = [0, 2, 0, 0], sizes = [2, 16, 16, 32], strides = [1, 1, 1, 1]} : vector<2x18x18x32xbf16> to vector<2x16x16x32xbf16>
    %60 = vector.extract_strided_slice %52 {offsets = [0, 2, 1, 0], sizes = [2, 16, 16, 32], strides = [1, 1, 1, 1]} : vector<2x18x18x32xbf16> to vector<2x16x16x32xbf16>
    %61 = vector.extract_strided_slice %52 {offsets = [0, 2, 2, 0], sizes = [2, 16, 16, 32], strides = [1, 1, 1, 1]} : vector<2x18x18x32xbf16> to vector<2x16x16x32xbf16>
    %cst_22 = arith.constant 0.000000e+00 : bf16
    %62 = vector.broadcast %cst_22 : bf16 to vector<2x16x16x96xbf16>
    %63 = tpu.concatenate %53, %54, %55, %56, %57, %58, %59, %60, %61, %62 in 3 : vector<2x16x16x32xbf16>, vector<2x16x16x32xbf16>, vector<2x16x16x32xbf16>, vector<2x16x16x32xbf16>, vector<2x16x16x32xbf16>, vector<2x16x16x32xbf16>, vector<2x16x16x32xbf16>, vector<2x16x16x32xbf16>, vector<2x16x16x32xbf16>, vector<2x16x16x96xbf16> -> vector<2x16x16x384xbf16>
    %64 = vector.shape_cast %63 : vector<2x16x16x384xbf16> to vector<512x384xbf16>
    %c0_23 = arith.constant 0 : index
    %c0_24 = arith.constant 0 : index
    %65 = vector.load %arg5[%c0_23, %c0_24] : memref<384x32xbf16, #tpu.memory_space<vmem>>, vector<384x32xbf16>
    %cst_25 = arith.constant dense<0.000000e+00> : vector<512x32xf32>
    %66 = tpu.matmul %64, %65, %cst_25 {dimension_numbers = #tpu.dot_dimension_numbers<[1], [0], [0], [1], [0, 0, 1, 1], [], []>} : vector<512x384xbf16>, vector<384x32xbf16>, vector<512x32xf32> -> vector<512x32xf32>
    %c0_26 = arith.constant 0 : index
    %c0_27 = arith.constant 0 : index
    %67 = vector.load %arg6[%c0_26, %c0_27] : memref<1x32xf32, #tpu.memory_space<vmem>>, vector<1x32xf32>
    %68 = vector.broadcast %67 : vector<1x32xf32> to vector<512x32xf32>
    %69 = arith.addf %66, %68 : vector<512x32xf32>
    %cst_28 = arith.constant dense<0.000000e+00> : vector<32xf32>
    %70 = vector.multi_reduction <add>, %69, %cst_28 [0] : vector<512x32xf32> to vector<32xf32>
    %71 = vector.shape_cast %70 : vector<32xf32> to vector<1x32xf32>
    %cst_29 = arith.constant 5.120000e+02 : f32
    %72 = vector.broadcast %cst_29 : f32 to vector<1x32xf32>
    %73 = arith.divf %71, %72 : vector<1x32xf32>
    %74 = vector.broadcast %73 : vector<1x32xf32> to vector<512x32xf32>
    %75 = arith.subf %69, %74 : vector<512x32xf32>
    %76 = arith.mulf %75, %75 : vector<512x32xf32>
    %cst_30 = arith.constant dense<0.000000e+00> : vector<32xf32>
    %77 = vector.multi_reduction <add>, %76, %cst_30 [0] : vector<512x32xf32> to vector<32xf32>
    %78 = vector.shape_cast %77 : vector<32xf32> to vector<1x32xf32>
    %cst_31 = arith.constant 5.120000e+02 : f32
    %79 = vector.broadcast %cst_31 : f32 to vector<1x32xf32>
    %80 = arith.divf %78, %79 : vector<1x32xf32>
    %c0_32 = arith.constant 0 : index
    %c0_33 = arith.constant 0 : index
    %81 = vector.load %arg7[%c0_32, %c0_33] : memref<1x32xf32, #tpu.memory_space<vmem>>, vector<1x32xf32>
    %cst_34 = arith.constant 9.99999974E-6 : f32
    %82 = vector.broadcast %cst_34 : f32 to vector<1x32xf32>
    %83 = arith.addf %80, %82 : vector<1x32xf32>
    %84 = math.rsqrt %83 : vector<1x32xf32>
    %85 = arith.mulf %81, %84 : vector<1x32xf32>
    %86 = vector.broadcast %73 : vector<1x32xf32> to vector<512x32xf32>
    %87 = arith.subf %69, %86 : vector<512x32xf32>
    %88 = vector.broadcast %85 : vector<1x32xf32> to vector<512x32xf32>
    %89 = arith.mulf %87, %88 : vector<512x32xf32>
    %c0_35 = arith.constant 0 : index
    %c0_36 = arith.constant 0 : index
    %90 = vector.load %arg8[%c0_35, %c0_36] : memref<1x32xf32, #tpu.memory_space<vmem>>, vector<1x32xf32>
    %91 = vector.broadcast %90 : vector<1x32xf32> to vector<512x32xf32>
    %92 = arith.addf %89, %91 : vector<512x32xf32>
    %cst_37 = arith.constant 0.000000e+00 : f32
    %93 = vector.broadcast %cst_37 : f32 to vector<512x32xf32>
    %94 = arith.maximumf %92, %93 : vector<512x32xf32>
    %95 = arith.truncf %94 : vector<512x32xf32> to vector<512x32xbf16>
    %c0_38 = arith.constant 0 : index
    %c0_39 = arith.constant 0 : index
    %96 = vector.load %arg9[%c0_38, %c0_39] : memref<32x128xbf16, #tpu.memory_space<vmem>>, vector<32x128xbf16>
    %cst_40 = arith.constant dense<0.000000e+00> : vector<512x128xf32>
    %97 = tpu.matmul %95, %96, %cst_40 {dimension_numbers = #tpu.dot_dimension_numbers<[1], [0], [0], [1], [0, 0, 1, 1], [], []>} : vector<512x32xbf16>, vector<32x128xbf16>, vector<512x128xf32> -> vector<512x128xf32>
    %c0_41 = arith.constant 0 : index
    %c0_42 = arith.constant 0 : index
    %98 = vector.load %arg10[%c0_41, %c0_42] : memref<1x128xf32, #tpu.memory_space<vmem>>, vector<1x128xf32>
    %99 = vector.broadcast %98 : vector<1x128xf32> to vector<512x128xf32>
    %100 = arith.addf %97, %99 : vector<512x128xf32>
    %101 = vector.shape_cast %100 : vector<512x128xf32> to vector<2x256x128xf32>
    %c0_43 = arith.constant 0 : index
    %c0_44 = arith.constant 0 : index
    %c0_45 = arith.constant 0 : index
    %102 = vector.load %arg11[%c0_43, %c0_44, %c0_45] : memref<2x256x128xf32, #tpu.memory_space<vmem>>, vector<2x256x128xf32>
    tpu.vector_store %arg11[%c0_43, %c0_44, %c0_45], %101 {strides = array<i32>} : memref<2x256x128xf32, #tpu.memory_space<vmem>>, vector<2x256x128xf32>,
    return
  }
}

</mosaic_0001>

<llo_original>
// kernel: tile.8
$region0: #{tile.8}
  #allocation0 [shape = 's32[1]{0}', space=sflag, size = 0x4, scoped, tag = 'scoped memory for tile.8']
  %s0 = inlined_call_operand.vmem [shape: f32[32], index: 0, kind: input, shape index: {}]
  %s1 = inlined_call_operand.vmem [shape: f32[4,32], index: 1, kind: output, shape index: {}]
  // Predicated region
  $region2: #{tile.8} parent=0 // pred_check
    _
  $region3: #{tile.8} parent=0 // pred_check_branch
    %3 = sbr.rel (0) target = $region5
  $region4: #{tile.8} parent=0 // pred_region
    _
  $region5: #{tile.8} parent=0 // pred_fallthru
    _
  %v4 = vld [vmem:[%s0] ss:$0 sm:$0xff]
  %5 = vst [vmem:[%s1] sm:$0xf] %v4

// kernel: tile.9
$region0: #{tile.9}
  %s0 = inlined_call_operand.vmem [shape: f32[4,32], index: 0, kind: input, shape index: {}]
  %s1 = inlined_call_operand.vmem [shape: f32[1,128], index: 1, kind: output, shape index: {}]
  $region1: #{tile.9} parent=0
    #allocation0 [shape = 'u8[4096]{0}', space=vmem, size = 0x1000, scoped, tag = 'scoped mem for output reshape']
    #allocation1 [shape = 'u8[4096]{0}', space=vmem, size = 0x1000, scoped, tag = 'scoped mem for input reshape']
    %s3 = ssub.s32 16, 1
    %v4 = vld [vmem:[%s0] sm:%s3]
    %5 = vst [vmem:[#allocation1] sm:%s3] %v4
    %v6 = vld [vmem:[#allocation1] sm:$0x1]
    %vm7 = vcmask 261120
    %8 = vst.msk [vmem:[#allocation0] sm:$0x1] %vm7, %v6
    %s9 = scalar_lea.vmem [#allocation1], 3
    %v10 = vld [vmem:[%s9] sm:$0x1]
    %11 = vrot.lane.b32.xlu0 %v10, 96
    %v12 = vpop.permute.xlu0 %11
    %vm13 = vcmask 1048320
    %14 = vst.msk [vmem:[#allocation0] sm:$0x1] %vm13, %v12
    %s15 = scalar_lea.vmem [#allocation1], 2
    %v16 = vld [vmem:[%s15] sm:$0x1]
    %17 = vrot.lane.b32.xlu0 %v16, 64
    %v18 = vpop.permute.xlu0 %17
    %vm19 = vcmask 785920
    %20 = vst.msk [vmem:[#allocation0] sm:$0x1] %vm19, %v18
    %s21 = scalar_lea.vmem [#allocation1], 1
    %v22 = vld [vmem:[%s21] sm:$0x1]
    %23 = vrot.lane.b32.xlu0 %v22, 32
    %v24 = vpop.permute.xlu0 %23
    %vm25 = vcmask 523520
    %26 = vst.msk [vmem:[#allocation0] sm:$0x1] %vm25, %v24
    %s28 = ssub.s32 2, 1
    %v29 = vld [vmem:[#allocation0] sm:%s28]
    %s31 = ssub.s32 2, 1
    %32 = vst [vmem:[%s1] sm:%s31] %v29

// kernel: decoder_block.1
$region0: #{decoder_block.1}
  #allocation0 [shape = 'u32[]', space=smem, size = 0x4, offset = 0x4, fixed_abs, tag = 'smem constant byte address 0x4 - core index']
  #allocation1 [shape = 'u32[72,128]{1,0:T(1,128)}', space=vmem, size = 0x9000, scoped, tag = 'internal scratch']
  %s0 = inlined_call_operand.vmem [shape: bf16[2,16,16,16], index: 0, kind: input, shape index: {}]
  %s1 = inlined_call_operand.vmem [shape: bf16[256,32], index: 1, kind: input, shape index: {}]
  %s2 = inlined_call_operand.vmem [shape: f32[1,32], index: 2, kind: input, shape index: {}]
  %s3 = inlined_call_operand.vmem [shape: f32[1,32], index: 3, kind: input, shape index: {}]
  %s4 = inlined_call_operand.vmem [shape: f32[1,32], index: 4, kind: input, shape index: {}]
  %s5 = inlined_call_operand.vmem [shape: bf16[384,32], index: 5, kind: input, shape index: {}]
  %s6 = inlined_call_operand.vmem [shape: f32[1,32], index: 6, kind: input, shape index: {}]
  %s7 = inlined_call_operand.vmem [shape: f32[1,32], index: 7, kind: input, shape index: {}]
  %s8 = inlined_call_operand.vmem [shape: f32[1,32], index: 8, kind: input, shape index: {}]
  %s9 = inlined_call_operand.vmem [shape: bf16[32,128], index: 9, kind: input, shape index: {}]
  %s10 = inlined_call_operand.vmem [shape: f32[1,128], index: 10, kind: input, shape index: {}]
  %s11 = inlined_call_operand.vmem [shape: f32[2,256,128], index: 11, kind: output, shape index: {}]
  %s12 = sld [smem:[#allocation0]]
  $region54: #{decoder_block.1} parent=0
    _
  %s14 = ssub.s32 1, %s12
  %s15 = scalar_select 0, %s14, %s12
  // Predicated region
  $region2: #{decoder_block.1} parent=0 // pred_check
    _
  $region3: #{decoder_block.1} parent=0 // pred_check_branch
    %17 = sbr.rel (0) target = $region5
  $region4: #{decoder_block.1} parent=0 // pred_region
    _
  $region5: #{decoder_block.1} parent=0 // pred_fallthru
    _
  // Predicated region
  $region6: #{decoder_block.1} parent=0 // pred_check
    _
  $region7: #{decoder_block.1} parent=0 // pred_check_branch
    %19 = sbr.rel (0) target = $region9
  $region8: #{decoder_block.1} parent=0 // pred_region
    _
  $region9: #{decoder_block.1} parent=0 // pred_fallthru
    _
  // Predicated region
  $region10: #{decoder_block.1} parent=0 // pred_check
    _
  $region11: #{decoder_block.1} parent=0 // pred_check_branch
    %21 = sbr.rel (0) target = $region13
  $region12: #{decoder_block.1} parent=0 // pred_region
    _
  $region13: #{decoder_block.1} parent=0 // pred_fallthru
    _
  // Predicated region
  $region14: #{decoder_block.1} parent=0 // pred_check
    _
  $region15: #{decoder_block.1} parent=0 // pred_check_branch
    %23 = sbr.rel (0) target = $region17
  $region16: #{decoder_block.1} parent=0 // pred_region
    _
  $region17: #{decoder_block.1} parent=0 // pred_fallthru
    _
  // Predicated region
  $region18: #{decoder_block.1} parent=0 // pred_check
    _
  $region19: #{decoder_block.1} parent=0 // pred_check_branch
    %25 = sbr.rel (0) target = $region21
  $region20: #{decoder_block.1} parent=0 // pred_region
    _
  $region21: #{decoder_block.1} parent=0 // pred_fallthru
    _
  // Predicated region
  $region22: #{decoder_block.1} parent=0 // pred_check
    _
  $region23: #{decoder_block.1} parent=0 // pred_check_branch
    %27 = sbr.rel (0) target = $region25
  $region24: #{decoder_block.1} parent=0 // pred_region
    _
  $region25: #{decoder_block.1} parent=0 // pred_fallthru
    _
  // Predicated region
  $region26: #{decoder_block.1} parent=0 // pred_check
    _
  $region27: #{decoder_block.1} parent=0 // pred_check_branch
    %29 = sbr.rel (0) target = $region29
  $region28: #{decoder_block.1} parent=0 // pred_region
    _
  $region29: #{decoder_block.1} parent=0 // pred_fallthru
    _
  // Predicated region
  $region30: #{decoder_block.1} parent=0 // pred_check
    _
  $region31: #{decoder_block.1} parent=0 // pred_check_branch
    %31 = sbr.rel (0) target = $region33
  $region32: #{decoder_block.1} parent=0 // pred_region
    _
  $region33: #{decoder_block.1} parent=0 // pred_fallthru
    _
  // Predicated region
  $region34: #{decoder_block.1} parent=0 // pred_check
    _
  $region35: #{decoder_block.1} parent=0 // pred_check_branch
    %33 = sbr.rel (0) target = $region37
  $region36: #{decoder_block.1} parent=0 // pred_region
    _
  $region37: #{decoder_block.1} parent=0 // pred_fallthru
    _
  // Predicated region
  $region38: #{decoder_block.1} parent=0 // pred_check
    _
  $region39: #{decoder_block.1} parent=0 // pred_check_branch
    %35 = sbr.rel (0) target = $region41
  $region40: #{decoder_block.1} parent=0 // pred_region
    _
  $region41: #{decoder_block.1} parent=0 // pred_fallthru
    _
  // Predicated region
  $region42: #{decoder_block.1} parent=0 // pred_check
    _
  $region43: #{decoder_block.1} parent=0 // pred_check_branch
    %37 = sbr.rel (0) target = $region45
  $region44: #{decoder_block.1} parent=0 // pred_region
    _
  $region45: #{decoder_block.1} parent=0 // pred_fallthru
    _
  %v39 = vld [vmem:[%s0] sm:$0xf]
  %v40 = vld [vmem:[%s0 + $0x4] sm:$0xf]
  %v41 = vld [vmem:[%s0 + $0x8] sm:$0xf]
  %v42 = vld [vmem:[%s0 + $0xc] sm:$0xf]
  %v43 = vld [vmem:[%s0 + $0x10] sm:$0xf]
  %v44 = vld [vmem:[%s0 + $0x14] sm:$0xf]
  %v45 = vld [vmem:[%s0 + $0x18] sm:$0xf]
  %v46 = vld [vmem:[%s0 + $0x1c] sm:$0xf]
  %v47 = vld [vmem:[%s0 + $0x20] sm:$0xf]
  %v48 = vld [vmem:[%s0 + $0x24] sm:$0xf]
  %v49 = vld [vmem:[%s0 + $0x28] sm:$0xf]
  %v50 = vld [vmem:[%s0 + $0x2c] sm:$0xf]
  %v51 = vld [vmem:[%s0 + $0x30] sm:$0xf]
  %v52 = vld [vmem:[%s0 + $0x34] sm:$0xf]
  %v53 = vld [vmem:[%s0 + $0x38] sm:$0xf]
  %v54 = vld [vmem:[%s0 + $0x3c] sm:$0xf]
  %v55 = vld [vmem:[%s0 + $0x40] sm:$0xf]
  %v56 = vld [vmem:[%s0 + $0x44] sm:$0xf]
  %v57 = vld [vmem:[%s0 + $0x48] sm:$0xf]
  %v58 = vld [vmem:[%s0 + $0x4c] sm:$0xf]
  %v59 = vld [vmem:[%s0 + $0x50] sm:$0xf]
  %v60 = vld [vmem:[%s0 + $0x54] sm:$0xf]
  %v61 = vld [vmem:[%s0 + $0x58] sm:$0xf]
  %v62 = vld [vmem:[%s0 + $0x5c] sm:$0xf]
  %v63 = vld [vmem:[%s0 + $0x60] sm:$0xf]
  %v64 = vld [vmem:[%s0 + $0x64] sm:$0xf]
  %v65 = vld [vmem:[%s0 + $0x68] sm:$0xf]
  %v66 = vld [vmem:[%s0 + $0x6c] sm:$0xf]
  %v67 = vld [vmem:[%s0 + $0x70] sm:$0xf]
  %v68 = vld [vmem:[%s0 + $0x74] sm:$0xf]
  %v69 = vld [vmem:[%s0 + $0x78] sm:$0xf]
  %v70 = vld [vmem:[%s0 + $0x7c] sm:$0xf]
  %v71 = vld [vmem:[%s0 + $0x80] sm:$0xf]
  %v72 = vld [vmem:[%s0 + $0x84] sm:$0xf]
  %v73 = vld [vmem:[%s0 + $0x88] sm:$0xf]
  %v74 = vld [vmem:[%s0 + $0x8c] sm:$0xf]
  %v75 = vld [vmem:[%s0 + $0x90] sm:$0xf]
  %v76 = vld [vmem:[%s0 + $0x94] sm:$0xf]
  %v77 = vld [vmem:[%s0 + $0x98] sm:$0xf]
  %v78 = vld [vmem:[%s0 + $0x9c] sm:$0xf]
  %v79 = vld [vmem:[%s0 + $0xa0] sm:$0xf]
  %v80 = vld [vmem:[%s0 + $0xa4] sm:$0xf]
  %v81 = vld [vmem:[%s0 + $0xa8] sm:$0xf]
  %v82 = vld [vmem:[%s0 + $0xac] sm:$0xf]
  %v83 = vld [vmem:[%s0 + $0xb0] sm:$0xf]
  %v84 = vld [vmem:[%s0 + $0xb4] sm:$0xf]
  %v85 = vld [vmem:[%s0 + $0xb8] sm:$0xf]
  %v86 = vld [vmem:[%s0 + $0xbc] sm:$0xf]
  %v87 = vld [vmem:[%s0 + $0xc0] sm:$0xf]
  %v88 = vld [vmem:[%s0 + $0xc4] sm:$0xf]
  %v89 = vld [vmem:[%s0 + $0xc8] sm:$0xf]
  %v90 = vld [vmem:[%s0 + $0xcc] sm:$0xf]
  %v91 = vld [vmem:[%s0 + $0xd0] sm:$0xf]
  %v92 = vld [vmem:[%s0 + $0xd4] sm:$0xf]
  %v93 = vld [vmem:[%s0 + $0xd8] sm:$0xf]
  %v94 = vld [vmem:[%s0 + $0xdc] sm:$0xf]
  %v95 = vld [vmem:[%s0 + $0xe0] sm:$0xf]
  %v96 = vld [vmem:[%s0 + $0xe4] sm:$0xf]
  %v97 = vld [vmem:[%s0 + $0xe8] sm:$0xf]
  %v98 = vld [vmem:[%s0 + $0xec] sm:$0xf]
  %v99 = vld [vmem:[%s0 + $0xf0] sm:$0xf]
  %v100 = vld [vmem:[%s0 + $0xf4] sm:$0xf]
  %v101 = vld [vmem:[%s0 + $0xf8] sm:$0xf]
  %v102 = vld [vmem:[%s0 + $0xfc] sm:$0xf]
  %v167 = vunpack.c.l.b16 %v39
  %v168 = vunpack.c.l.b16 %v40
  %v169 = vunpack.c.l.b16 %v41
  %v170 = vunpack.c.l.b16 %v42
  %v171 = vunpack.c.l.b16 %v43
  %v172 = vunpack.c.l.b16 %v44
  %v173 = vunpack.c.l.b16 %v45
  %v174 = vunpack.c.l.b16 %v46
  %v175 = vunpack.c.l.b16 %v47
  %v176 = vunpack.c.l.b16 %v48
  %v177 = vunpack.c.l.b16 %v49
  %v178 = vunpack.c.l.b16 %v50
  %v179 = vunpack.c.l.b16 %v51
  %v180 = vunpack.c.l.b16 %v52
  %v181 = vunpack.c.l.b16 %v53
  %v182 = vunpack.c.l.b16 %v54
  %v183 = vunpack.c.l.b16 %v55
  %v184 = vunpack.c.l.b16 %v56
  %v185 = vunpack.c.l.b16 %v57
  %v186 = vunpack.c.l.b16 %v58
  %v187 = vunpack.c.l.b16 %v59
  %v188 = vunpack.c.l.b16 %v60
  %v189 = vunpack.c.l.b16 %v61
  %v190 = vunpack.c.l.b16 %v62
  %v191 = vunpack.c.l.b16 %v63
  %v192 = vunpack.c.l.b16 %v64
  %v193 = vunpack.c.l.b16 %v65
  %v194 = vunpack.c.l.b16 %v66
  %v195 = vunpack.c.l.b16 %v67
  %v196 = vunpack.c.l.b16 %v68
  %v197 = vunpack.c.l.b16 %v69
  %v198 = vunpack.c.l.b16 %v70
  %v199 = vunpack.c.l.b16 %v71
  %v200 = vunpack.c.l.b16 %v72
  %v201 = vunpack.c.l.b16 %v73
  %v202 = vunpack.c.l.b16 %v74
  %v203 = vunpack.c.l.b16 %v75
  %v204 = vunpack.c.l.b16 %v76
  %v205 = vunpack.c.l.b16 %v77
  %v206 = vunpack.c.l.b16 %v78
  %v207 = vunpack.c.l.b16 %v79
  %v208 = vunpack.c.l.b16 %v80
  %v209 = vunpack.c.l.b16 %v81
  %v210 = vunpack.c.l.b16 %v82
  %v211 = vunpack.c.l.b16 %v83
  %v212 = vunpack.c.l.b16 %v84
  %v213 = vunpack.c.l.b16 %v85
  %v214 = vunpack.c.l.b16 %v86
  %v215 = vunpack.c.l.b16 %v87
  %v216 = vunpack.c.l.b16 %v88
  %v217 = vunpack.c.l.b16 %v89
  %v218 = vunpack.c.l.b16 %v90
  %v219 = vunpack.c.l.b16 %v91
  %v220 = vunpack.c.l.b16 %v92
  %v221 = vunpack.c.l.b16 %v93
  %v222 = vunpack.c.l.b16 %v94
  %v223 = vunpack.c.l.b16 %v95
  %v224 = vunpack.c.l.b16 %v96
  %v225 = vunpack.c.l.b16 %v97
  %v226 = vunpack.c.l.b16 %v98
  %v227 = vunpack.c.l.b16 %v99
  %v228 = vunpack.c.l.b16 %v100
  %v229 = vunpack.c.l.b16 %v101
  %v230 = vunpack.c.l.b16 %v102
  %v231 = vpack.c.b16 %v168, %v167
  %v232 = vpack.c.b16 %v170, %v169
  %v233 = vpack.c.b16 %v172, %v171
  %v234 = vpack.c.b16 %v174, %v173
  %v235 = vpack.c.b16 %v176, %v175
  %v236 = vpack.c.b16 %v178, %v177
  %v237 = vpack.c.b16 %v180, %v179
  %v238 = vpack.c.b16 %v182, %v181
  %v239 = vpack.c.b16 %v184, %v183
  %v240 = vpack.c.b16 %v186, %v185
  %v241 = vpack.c.b16 %v188, %v187
  %v242 = vpack.c.b16 %v190, %v189
  %v243 = vpack.c.b16 %v192, %v191
  %v244 = vpack.c.b16 %v194, %v193
  %v245 = vpack.c.b16 %v196, %v195
  %v246 = vpack.c.b16 %v198, %v197
  %v247 = vpack.c.b16 %v200, %v199
  %v248 = vpack.c.b16 %v202, %v201
  %v249 = vpack.c.b16 %v204, %v203
  %v250 = vpack.c.b16 %v206, %v205
  %v251 = vpack.c.b16 %v208, %v207
  %v252 = vpack.c.b16 %v210, %v209
  %v253 = vpack.c.b16 %v212, %v211
  %v254 = vpack.c.b16 %v214, %v213
  %v255 = vpack.c.b16 %v216, %v215
  %v256 = vpack.c.b16 %v218, %v217
  %v257 = vpack.c.b16 %v220, %v219
  %v258 = vpack.c.b16 %v222, %v221
  %v259 = vpack.c.b16 %v224, %v223
  %v260 = vpack.c.b16 %v226, %v225
  %v261 = vpack.c.b16 %v228, %v227
  %v262 = vpack.c.b16 %v230, %v229
  %v264 = vshrl.u32 %v231, 16
  %v266 = vrot.slane %v264, 7
  %v267 = vshll.u32 %v231, 16
  %v269 = vor.u32 %v266, %v267
  %v271 = vshrl.u32 %v232, 16
  %v273 = vrot.slane %v271, 7
  %v274 = vshll.u32 %v232, 16
  %v276 = vor.u32 %v273, %v274
  %v278 = vshrl.u32 %v233, 16
  %v280 = vrot.slane %v278, 7
  %v281 = vshll.u32 %v233, 16
  %v283 = vor.u32 %v280, %v281
  %v285 = vshrl.u32 %v234, 16
  %v287 = vrot.slane %v285, 7
  %v288 = vshll.u32 %v234, 16
  %v290 = vor.u32 %v287, %v288
  %v292 = vshrl.u32 %v235, 16
  %v294 = vrot.slane %v292, 7
  %v295 = vshll.u32 %v235, 16
  %v297 = vor.u32 %v294, %v295
  %v299 = vshrl.u32 %v236, 16
  %v301 = vrot.slane %v299, 7
  %v302 = vshll.u32 %v236, 16
  %v304 = vor.u32 %v301, %v302
  %v306 = vshrl.u32 %v237, 16
  %v308 = vrot.slane %v306, 7
  %v309 = vshll.u32 %v237, 16
  %v311 = vor.u32 %v308, %v309
  %v313 = vshrl.u32 %v238, 16
  %v315 = vrot.slane %v313, 7
  %v316 = vshll.u32 %v238, 16
  %v318 = vor.u32 %v315, %v316
  %v320 = vshrl.u32 %v239, 16
  %v322 = vrot.slane %v320, 7
  %v323 = vshll.u32 %v239, 16
  %v325 = vor.u32 %v322, %v323
  %v327 = vshrl.u32 %v240, 16
  %v329 = vrot.slane %v327, 7
  %v330 = vshll.u32 %v240, 16
  %v332 = vor.u32 %v329, %v330
  %v334 = vshrl.u32 %v241, 16
  %v336 = vrot.slane %v334, 7
  %v337 = vshll.u32 %v241, 16
  %v339 = vor.u32 %v336, %v337
  %v341 = vshrl.u32 %v242, 16
  %v343 = vrot.slane %v341, 7
  %v344 = vshll.u32 %v242, 16
  %v346 = vor.u32 %v343, %v344
  %v348 = vshrl.u32 %v243, 16
  %v350 = vrot.slane %v348, 7
  %v351 = vshll.u32 %v243, 16
  %v353 = vor.u32 %v350, %v351
  %v355 = vshrl.u32 %v244, 16
  %v357 = vrot.slane %v355, 7
  %v358 = vshll.u32 %v244, 16
  %v360 = vor.u32 %v357, %v358
  %v362 = vshrl.u32 %v245, 16
  %v364 = vrot.slane %v362, 7
  %v365 = vshll.u32 %v245, 16
  %v367 = vor.u32 %v364, %v365
  %v369 = vshrl.u32 %v246, 16
  %v371 = vrot.slane %v369, 7
  %v372 = vshll.u32 %v246, 16
  %v374 = vor.u32 %v371, %v372
  %v376 = vshrl.u32 %v247, 16
  %v378 = vrot.slane %v376, 7
  %v379 = vshll.u32 %v247, 16
  %v381 = vor.u32 %v378, %v379
  %v383 = vshrl.u32 %v248, 16
  %v385 = vrot.slane %v383, 7
  %v386 = vshll.u32 %v248, 16
  %v388 = vor.u32 %v385, %v386
  %v390 = vshrl.u32 %v249, 16
  %v392 = vrot.slane %v390, 7
  %v393 = vshll.u32 %v249, 16
  %v395 = vor.u32 %v392, %v393
  %v397 = vshrl.u32 %v250, 16
  %v399 = vrot.slane %v397, 7
  %v400 = vshll.u32 %v250, 16
  %v402 = vor.u32 %v399, %v400
  %v404 = vshrl.u32 %v251, 16
  %v406 = vrot.slane %v404, 7
  %v407 = vshll.u32 %v251, 16
  %v409 = vor.u32 %v406, %v407
  %v411 = vshrl.u32 %v252, 16
  %v413 = vrot.slane %v411, 7
  %v414 = vshll.u32 %v252, 16
  %v416 = vor.u32 %v413, %v414
  %v418 = vshrl.u32 %v253, 16
  %v420 = vrot.slane %v418, 7
  %v421 = vshll.u32 %v253, 16
  %v423 = vor.u32 %v420, %v421
  %v425 = vshrl.u32 %v254, 16
  %v427 = vrot.slane %v425, 7
  %v428 = vshll.u32 %v254, 16
  %v430 = vor.u32 %v427, %v428
  %v432 = vshrl.u32 %v255, 16
  %v434 = vrot.slane %v432, 7
  %v435 = vshll.u32 %v255, 16
  %v437 = vor.u32 %v434, %v435
  %v439 = vshrl.u32 %v256, 16
  %v441 = vrot.slane %v439, 7
  %v442 = vshll.u32 %v256, 16
  %v444 = vor.u32 %v441, %v442
  %v446 = vshrl.u32 %v257, 16
  %v448 = vrot.slane %v446, 7
  %v449 = vshll.u32 %v257, 16
  %v451 = vor.u32 %v448, %v449
  %v453 = vshrl.u32 %v258, 16
  %v455 = vrot.slane %v453, 7
  %v456 = vshll.u32 %v258, 16
  %v458 = vor.u32 %v455, %v456
  %v460 = vshrl.u32 %v259, 16
  %v462 = vrot.slane %v460, 7
  %v463 = vshll.u32 %v259, 16
  %v465 = vor.u32 %v462, %v463
  %v467 = vshrl.u32 %v260, 16
  %v469 = vrot.slane %v467, 7
  %v470 = vshll.u32 %v260, 16
  %v472 = vor.u32 %v469, %v470
  %v474 = vshrl.u32 %v261, 16
  %v476 = vrot.slane %v474, 7
  %v477 = vshll.u32 %v261, 16
  %v479 = vor.u32 %v476, %v477
  %v481 = vshrl.u32 %v262, 16
  %v483 = vrot.slane %v481, 7
  %v484 = vshll.u32 %v262, 16
  %v486 = vor.u32 %v483, %v484
  %vm551 = vcmask 1040384
  %vm552 = vsmask.f32 256
  %vm553 = vmand %vm551, %vm552
  %v554 = vsel %vm553, 0, %v269
  %v555 = vsel %vm553, 0, %v276
  %v556 = vsel %vm553, 0, %v283
  %v557 = vsel %vm553, 0, %v290
  %v558 = vsel %vm553, 0, %v297
  %v559 = vsel %vm553, 0, %v304
  %v560 = vsel %vm553, 0, %v311
  %v561 = vsel %vm553, 0, %v318
  %v562 = vsel %vm553, 0, %v325
  %v563 = vsel %vm553, 0, %v332
  %v564 = vsel %vm553, 0, %v339
  %v565 = vsel %vm553, 0, %v346
  %v566 = vsel %vm553, 0, %v353
  %v567 = vsel %vm553, 0, %v360
  %v568 = vsel %vm553, 0, %v367
  %v569 = vsel %vm553, 0, %v374
  %v570 = vsel %vm553, 0, %v381
  %v571 = vsel %vm553, 0, %v388
  %v572 = vsel %vm553, 0, %v395
  %v573 = vsel %vm553, 0, %v402
  %v574 = vsel %vm553, 0, %v409
  %v575 = vsel %vm553, 0, %v416
  %v576 = vsel %vm553, 0, %v423
  %v577 = vsel %vm553, 0, %v430
  %v578 = vsel %vm553, 0, %v437
  %v579 = vsel %vm553, 0, %v444
  %v580 = vsel %vm553, 0, %v451
  %v581 = vsel %vm553, 0, %v458
  %v582 = vsel %vm553, 0, %v465
  %v583 = vsel %vm553, 0, %v472
  %v584 = vsel %vm553, 0, %v479
  %v585 = vsel %vm553, 0, %v486
  %v586 = vsel %vm553, %v266, 0
  %v587 = vsel %vm553, %v273, 0
  %v588 = vsel %vm553, %v280, 0
  %v589 = vsel %vm553, %v287, 0
  %v590 = vsel %vm553, %v294, 0
  %v591 = vsel %vm553, %v301, 0
  %v592 = vsel %vm553, %v308, 0
  %v593 = vsel %vm553, %v315, 0
  %v594 = vsel %vm553, %v322, 0
  %v595 = vsel %vm553, %v329, 0
  %v596 = vsel %vm553, %v336, 0
  %v597 = vsel %vm553, %v343, 0
  %v598 = vsel %vm553, %v350, 0
  %v599 = vsel %vm553, %v357, 0
  %v600 = vsel %vm553, %v364, 0
  %v601 = vsel %vm553, %v371, 0
  %v602 = vsel %vm553, %v378, 0
  %v603 = vsel %vm553, %v385, 0
  %v604 = vsel %vm553, %v392, 0
  %v605 = vsel %vm553, %v399, 0
  %v606 = vsel %vm553, %v406, 0
  %v607 = vsel %vm553, %v413, 0
  %v608 = vsel %vm553, %v420, 0
  %v609 = vsel %vm553, %v427, 0
  %v610 = vsel %vm553, %v434, 0
  %v611 = vsel %vm553, %v441, 0
  %v612 = vsel %vm553, %v448, 0
  %v613 = vsel %vm553, %v455, 0
  %v614 = vsel %vm553, %v462, 0
  %v615 = vsel %vm553, %v469, 0
  %v616 = vsel %vm553, %v476, 0
  %v617 = vsel %vm553, %v483, 0
  %vm618 = vsmask.f32 7424
  %v620 = vshrl.u32 0, 16
  %v622 = vshll.u32 0, 16
  %v624 = vrot.slane %v622, 1
  %v625 = vor.u32 %v620, %v624
  %v626 = vsel %vm618, %v625, %v624
  %v628 = vshrl.u32 %v554, 16
  %v630 = vshll.u32 %v554, 16
  %v632 = vrot.slane %v630, 1
  %v633 = vor.u32 %v628, %v632
  %v635 = vshll.u32 %v586, 16
  %v637 = vrot.slane %v635, 1
  %v638 = vsel %vm618, %v633, %v637
  %v640 = vshrl.u32 %v555, 16
  %v642 = vshll.u32 %v555, 16
  %v644 = vrot.slane %v642, 1
  %v645 = vor.u32 %v640, %v644
  %v647 = vshll.u32 %v587, 16
  %v649 = vrot.slane %v647, 1
  %v650 = vsel %vm618, %v645, %v649
  %v652 = vshrl.u32 %v556, 16
  %v654 = vshll.u32 %v556, 16
  %v656 = vrot.slane %v654, 1
  %v657 = vor.u32 %v652, %v656
  %v659 = vshll.u32 %v588, 16
  %v661 = vrot.slane %v659, 1
  %v662 = vsel %vm618, %v657, %v661
  %v664 = vshrl.u32 %v557, 16
  %v666 = vshll.u32 %v557, 16
  %v668 = vrot.slane %v666, 1
  %v669 = vor.u32 %v664, %v668
  %v671 = vshll.u32 %v589, 16
  %v673 = vrot.slane %v671, 1
  %v674 = vsel %vm618, %v669, %v673
  %v676 = vshrl.u32 %v558, 16
  %v678 = vshll.u32 %v558, 16
  %v680 = vrot.slane %v678, 1
  %v681 = vor.u32 %v676, %v680
  %v683 = vshll.u32 %v590, 16
  %v685 = vrot.slane %v683, 1
  %v686 = vsel %vm618, %v681, %v685
  %v688 = vshrl.u32 %v559, 16
  %v690 = vshll.u32 %v559, 16
  %v692 = vrot.slane %v690, 1
  %v693 = vor.u32 %v688, %v692
  %v695 = vshll.u32 %v591, 16
  %v697 = vrot.slane %v695, 1
  %v698 = vsel %vm618, %v693, %v697
  %v700 = vshrl.u32 %v560, 16
  %v702 = vshll.u32 %v560, 16
  %v704 = vrot.slane %v702, 1
  %v705 = vor.u32 %v700, %v704
  %v707 = vshll.u32 %v592, 16
  %v709 = vrot.slane %v707, 1
  %v710 = vsel %vm618, %v705, %v709
  %v712 = vshrl.u32 %v561, 16
  %v714 = vshll.u32 %v561, 16
  %v716 = vrot.slane %v714, 1
  %v717 = vor.u32 %v712, %v716
  %v719 = vshll.u32 %v593, 16
  %v721 = vrot.slane %v719, 1
  %v722 = vsel %vm618, %v717, %v721
  %v724 = vshrl.u32 %v562, 16
  %v726 = vshll.u32 %v562, 16
  %v728 = vrot.slane %v726, 1
  %v729 = vor.u32 %v724, %v728
  %v731 = vshll.u32 %v594, 16
  %v733 = vrot.slane %v731, 1
  %v734 = vsel %vm618, %v729, %v733
  %v736 = vshrl.u32 %v563, 16
  %v738 = vshll.u32 %v563, 16
  %v740 = vrot.slane %v738, 1
  %v741 = vor.u32 %v736, %v740
  %v743 = vshll.u32 %v595, 16
  %v745 = vrot.slane %v743, 1
  %v746 = vsel %vm618, %v741, %v745
  %v748 = vshrl.u32 %v564, 16
  %v750 = vshll.u32 %v564, 16
  %v752 = vrot.slane %v750, 1
  %v753 = vor.u32 %v748, %v752
  %v755 = vshll.u32 %v596, 16
  %v757 = vrot.slane %v755, 1
  %v758 = vsel %vm618, %v753, %v757
  %v760 = vshrl.u32 %v565, 16
  %v762 = vshll.u32 %v565, 16
  %v764 = vrot.slane %v762, 1
  %v765 = vor.u32 %v760, %v764
  %v767 = vshll.u32 %v597, 16
  %v769 = vrot.slane %v767, 1
  %v770 = vsel %vm618, %v765, %v769
  %v772 = vshrl.u32 %v566, 16
  %v774 = vshll.u32 %v566, 16
  %v776 = vrot.slane %v774, 1
  %v777 = vor.u32 %v772, %v776
  %v779 = vshll.u32 %v598, 16
  %v781 = vrot.slane %v779, 1
  %v782 = vsel %vm618, %v777, %v781
  %v784 = vshrl.u32 %v567, 16
  %v786 = vshll.u32 %v567, 16
  %v788 = vrot.slane %v786, 1
  %v789 = vor.u32 %v784, %v788
  %v791 = vshll.u32 %v599, 16
  %v793 = vrot.slane %v791, 1
  %v794 = vsel %vm618, %v789, %v793
  %v796 = vshrl.u32 %v568, 16
  %v798 = vshll.u32 %v568, 16
  %v800 = vrot.slane %v798, 1
  %v801 = vor.u32 %v796, %v800
  %v803 = vshll.u32 %v600, 16
  %v805 = vrot.slane %v803, 1
  %v806 = vsel %vm618, %v801, %v805
  %v808 = vshrl.u32 %v570, 16
  %v810 = vshll.u32 %v570, 16
  %v812 = vrot.slane %v810, 1
  %v813 = vor.u32 %v808, %v812
  %v815 = vshll.u32 %v602, 16
  %v817 = vrot.slane %v815, 1
  %v818 = vsel %vm618, %v813, %v817
  %v820 = vshrl.u32 %v571, 16
  %v822 = vshll.u32 %v571, 16
  %v824 = vrot.slane %v822, 1
  %v825 = vor.u32 %v820, %v824
  %v827 = vshll.u32 %v603, 16
  %v829 = vrot.slane %v827, 1
  %v830 = vsel %vm618, %v825, %v829
  %v832 = vshrl.u32 %v572, 16
  %v834 = vshll.u32 %v572, 16
  %v836 = vrot.slane %v834, 1
  %v837 = vor.u32 %v832, %v836
  %v839 = vshll.u32 %v604, 16
  %v841 = vrot.slane %v839, 1
  %v842 = vsel %vm618, %v837, %v841
  %v844 = vshrl.u32 %v573, 16
  %v846 = vshll.u32 %v573, 16
  %v848 = vrot.slane %v846, 1
  %v849 = vor.u32 %v844, %v848
  %v851 = vshll.u32 %v605, 16
  %v853 = vrot.slane %v851, 1
  %v854 = vsel %vm618, %v849, %v853
  %v856 = vshrl.u32 %v574, 16
  %v858 = vshll.u32 %v574, 16
  %v860 = vrot.slane %v858, 1
  %v861 = vor.u32 %v856, %v860
  %v863 = vshll.u32 %v606, 16
  %v865 = vrot.slane %v863, 1
  %v866 = vsel %vm618, %v861, %v865
  %v868 = vshrl.u32 %v575, 16
  %v870 = vshll.u32 %v575, 16
  %v872 = vrot.slane %v870, 1
  %v873 = vor.u32 %v868, %v872
  %v875 = vshll.u32 %v607, 16
  %v877 = vrot.slane %v875, 1
  %v878 = vsel %vm618, %v873, %v877
  %v880 = vshrl.u32 %v576, 16
  %v882 = vshll.u32 %v576, 16
  %v884 = vrot.slane %v882, 1
  %v885 = vor.u32 %v880, %v884
  %v887 = vshll.u32 %v608, 16
  %v889 = vrot.slane %v887, 1
  %v890 = vsel %vm618, %v885, %v889
  %v892 = vshrl.u32 %v577, 16
  %v894 = vshll.u32 %v577, 16
  %v896 = vrot.slane %v894, 1
  %v897 = vor.u32 %v892, %v896
  %v899 = vshll.u32 %v609, 16
  %v901 = vrot.slane %v899, 1
  %v902 = vsel %vm618, %v897, %v901
  %v904 = vshrl.u32 %v578, 16
  %v906 = vshll.u32 %v578, 16
  %v908 = vrot.slane %v906, 1
  %v909 = vor.u32 %v904, %v908
  %v911 = vshll.u32 %v610, 16
  %v913 = vrot.slane %v911, 1
  %v914 = vsel %vm618, %v909, %v913
  %v916 = vshrl.u32 %v579, 16
  %v918 = vshll.u32 %v579, 16
  %v920 = vrot.slane %v918, 1
  %v921 = vor.u32 %v916, %v920
  %v923 = vshll.u32 %v611, 16
  %v925 = vrot.slane %v923, 1
  %v926 = vsel %vm618, %v921, %v925
  %v928 = vshrl.u32 %v580, 16
  %v930 = vshll.u32 %v580, 16
  %v932 = vrot.slane %v930, 1
  %v933 = vor.u32 %v928, %v932
  %v935 = vshll.u32 %v612, 16
  %v937 = vrot.slane %v935, 1
  %v938 = vsel %vm618, %v933, %v937
  %v940 = vshrl.u32 %v581, 16
  %v942 = vshll.u32 %v581, 16
  %v944 = vrot.slane %v942, 1
  %v945 = vor.u32 %v940, %v944
  %v947 = vshll.u32 %v613, 16
  %v949 = vrot.slane %v947, 1
  %v950 = vsel %vm618, %v945, %v949
  %v952 = vshrl.u32 %v582, 16
  %v954 = vshll.u32 %v582, 16
  %v956 = vrot.slane %v954, 1
  %v957 = vor.u32 %v952, %v956
  %v959 = vshll.u32 %v614, 16
  %v961 = vrot.slane %v959, 1
  %v962 = vsel %vm618, %v957, %v961
  %v964 = vshrl.u32 %v583, 16
  %v966 = vshll.u32 %v583, 16
  %v968 = vrot.slane %v966, 1
  %v969 = vor.u32 %v964, %v968
  %v971 = vshll.u32 %v615, 16
  %v973 = vrot.slane %v971, 1
  %v974 = vsel %vm618, %v969, %v973
  %v976 = vshrl.u32 %v584, 16
  %v978 = vshll.u32 %v584, 16
  %v980 = vrot.slane %v978, 1
  %v981 = vor.u32 %v976, %v980
  %v983 = vshll.u32 %v616, 16
  %v985 = vrot.slane %v983, 1
  %v986 = vsel %vm618, %v981, %v985
  %987 = vrot.lane.b32.xlu0 %v626, 16
  %v988 = vpop.permute.xlu0 %987
  %989 = vrot.lane.b32.xlu0 %v638, 16
  %v990 = vpop.permute.xlu0 %989
  %991 = vrot.lane.b32.xlu0 %v650, 16
  %v992 = vpop.permute.xlu0 %991
  %993 = vrot.lane.b32.xlu0 %v662, 16
  %v994 = vpop.permute.xlu0 %993
  %995 = vrot.lane.b32.xlu0 %v674, 16
  %v996 = vpop.permute.xlu0 %995
  %997 = vrot.lane.b32.xlu0 %v686, 16
  %v998 = vpop.permute.xlu0 %997
  %999 = vrot.lane.b32.xlu0 %v698, 16
  %v1000 = vpop.permute.xlu0 %999
  %1001 = vrot.lane.b32.xlu0 %v710, 16
  %v1002 = vpop.permute.xlu0 %1001
  %1003 = vrot.lane.b32.xlu0 %v722, 16
  %v1004 = vpop.permute.xlu0 %1003
  %1005 = vrot.lane.b32.xlu0 %v734, 16
  %v1006 = vpop.permute.xlu0 %1005
  %1007 = vrot.lane.b32.xlu0 %v746, 16
  %v1008 = vpop.permute.xlu0 %1007
  %1009 = vrot.lane.b32.xlu0 %v758, 16
  %v1010 = vpop.permute.xlu0 %1009
  %1011 = vrot.lane.b32.xlu0 %v770, 16
  %v1012 = vpop.permute.xlu0 %1011
  %1013 = vrot.lane.b32.xlu0 %v782, 16
  %v1014 = vpop.permute.xlu0 %1013
  %1015 = vrot.lane.b32.xlu0 %v794, 16
  %v1016 = vpop.permute.xlu0 %1015
  %1017 = vrot.lane.b32.xlu0 %v806, 16
  %v1018 = vpop.permute.xlu0 %1017
  %1019 = vrot.lane.b32.xlu0 %v818, 16
  %v1020 = vpop.permute.xlu0 %1019
  %1021 = vrot.lane.b32.xlu0 %v830, 16
  %v1022 = vpop.permute.xlu0 %1021
  %1023 = vrot.lane.b32.xlu0 %v842, 16
  %v1024 = vpop.permute.xlu0 %1023
  %1025 = vrot.lane.b32.xlu0 %v854, 16
  %v1026 = vpop.permute.xlu0 %1025
  %1027 = vrot.lane.b32.xlu0 %v866, 16
  %v1028 = vpop.permute.xlu0 %1027
  %1029 = vrot.lane.b32.xlu0 %v878, 16
  %v1030 = vpop.permute.xlu0 %1029
  %1031 = vrot.lane.b32.xlu0 %v890, 16
  %v1032 = vpop.permute.xlu0 %1031
  %1033 = vrot.lane.b32.xlu0 %v902, 16
  %v1034 = vpop.permute.xlu0 %1033
  %1035 = vrot.lane.b32.xlu0 %v914, 16
  %v1036 = vpop.permute.xlu0 %1035
  %1037 = vrot.lane.b32.xlu0 %v926, 16
  %v1038 = vpop.permute.xlu0 %1037
  %1039 = vrot.lane.b32.xlu0 %v938, 16
  %v1040 = vpop.permute.xlu0 %1039
  %1041 = vrot.lane.b32.xlu0 %v950, 16
  %v1042 = vpop.permute.xlu0 %1041
  %1043 = vrot.lane.b32.xlu0 %v962, 16
  %v1044 = vpop.permute.xlu0 %1043
  %1045 = vrot.lane.b32.xlu0 %v974, 16
  %v1046 = vpop.permute.xlu0 %1045
  %1047 = vrot.lane.b32.xlu0 %v986, 16
  %v1048 = vpop.permute.xlu0 %1047
  %vm1110 = vcmask 1046528
  %v1111 = vrot.slane 0, 1
  %v1112 = vsel %vm1110, %v1111, %v1111
  %v1113 = vrot.slane %v554, 1
  %v1114 = vrot.slane %v586, 1
  %v1115 = vsel %vm1110, %v1113, %v1114
  %v1116 = vrot.slane %v555, 1
  %v1117 = vrot.slane %v587, 1
  %v1118 = vsel %vm1110, %v1116, %v1117
  %v1119 = vrot.slane %v556, 1
  %v1120 = vrot.slane %v588, 1
  %v1121 = vsel %vm1110, %v1119, %v1120
  %v1122 = vrot.slane %v557, 1
  %v1123 = vrot.slane %v589, 1
  %v1124 = vsel %vm1110, %v1122, %v1123
  %v1125 = vrot.slane %v558, 1
  %v1126 = vrot.slane %v590, 1
  %v1127 = vsel %vm1110, %v1125, %v1126
  %v1128 = vrot.slane %v559, 1
  %v1129 = vrot.slane %v591, 1
  %v1130 = vsel %vm1110, %v1128, %v1129
  %v1131 = vrot.slane %v560, 1
  %v1132 = vrot.slane %v592, 1
  %v1133 = vsel %vm1110, %v1131, %v1132
  %v1134 = vrot.slane %v561, 1
  %v1135 = vrot.slane %v593, 1
  %v1136 = vsel %vm1110, %v1134, %v1135
  %v1137 = vrot.slane %v562, 1
  %v1138 = vrot.slane %v594, 1
  %v1139 = vsel %vm1110, %v1137, %v1138
  %v1140 = vrot.slane %v563, 1
  %v1141 = vrot.slane %v595, 1
  %v1142 = vsel %vm1110, %v1140, %v1141
  %v1143 = vrot.slane %v564, 1
  %v1144 = vrot.slane %v596, 1
  %v1145 = vsel %vm1110, %v1143, %v1144
  %v1146 = vrot.slane %v565, 1
  %v1147 = vrot.slane %v597, 1
  %v1148 = vsel %vm1110, %v1146, %v1147
  %v1149 = vrot.slane %v566, 1
  %v1150 = vrot.slane %v598, 1
  %v1151 = vsel %vm1110, %v1149, %v1150
  %v1152 = vrot.slane %v567, 1
  %v1153 = vrot.slane %v599, 1
  %v1154 = vsel %vm1110, %v1152, %v1153
  %v1155 = vrot.slane %v568, 1
  %v1156 = vrot.slane %v600, 1
  %v1157 = vsel %vm1110, %v1155, %v1156
  %v1158 = vrot.slane %v570, 1
  %v1159 = vrot.slane %v602, 1
  %v1160 = vsel %vm1110, %v1158, %v1159
  %v1161 = vrot.slane %v571, 1
  %v1162 = vrot.slane %v603, 1
  %v1163 = vsel %vm1110, %v1161, %v1162
  %v1164 = vrot.slane %v572, 1
  %v1165 = vrot.slane %v604, 1
  %v1166 = vsel %vm1110, %v1164, %v1165
  %v1167 = vrot.slane %v573, 1
  %v1168 = vrot.slane %v605, 1
  %v1169 = vsel %vm1110, %v1167, %v1168
  %v1170 = vrot.slane %v574, 1
  %v1171 = vrot.slane %v606, 1
  %v1172 = vsel %vm1110, %v1170, %v1171
  %v1173 = vrot.slane %v575, 1
  %v1174 = vrot.slane %v607, 1
  %v1175 = vsel %vm1110, %v1173, %v1174
  %v1176 = vrot.slane %v576, 1
  %v1177 = vrot.slane %v608, 1
  %v1178 = vsel %vm1110, %v1176, %v1177
  %v1179 = vrot.slane %v577, 1
  %v1180 = vrot.slane %v609, 1
  %v1181 = vsel %vm1110, %v1179, %v1180
  %v1182 = vrot.slane %v578, 1
  %v1183 = vrot.slane %v610, 1
  %v1184 = vsel %vm1110, %v1182, %v1183
  %v1185 = vrot.slane %v579, 1
  %v1186 = vrot.slane %v611, 1
  %v1187 = vsel %vm1110, %v1185, %v1186
  %v1188 = vrot.slane %v580, 1
  %v1189 = vrot.slane %v612, 1
  %v1190 = vsel %vm1110, %v1188, %v1189
  %v1191 = vrot.slane %v581, 1
  %v1192 = vrot.slane %v613, 1
  %v1193 = vsel %vm1110, %v1191, %v1192
  %v1194 = vrot.slane %v582, 1
  %v1195 = vrot.slane %v614, 1
  %v1196 = vsel %vm1110, %v1194, %v1195
  %v1197 = vrot.slane %v583, 1
  %v1198 = vrot.slane %v615, 1
  %v1199 = vsel %vm1110, %v1197, %v1198
  %v1200 = vrot.slane %v584, 1
  %v1201 = vrot.slane %v616, 1
  %v1202 = vsel %vm1110, %v1200, %v1201
  %1203 = vrot.lane.b32.xlu0 %v1112, 32
  %v1204 = vpop.permute.xlu0 %1203
  %1205 = vrot.lane.b32.xlu0 %v1115, 32
  %v1206 = vpop.permute.xlu0 %1205
  %1207 = vrot.lane.b32.xlu0 %v1118, 32
  %v1208 = vpop.permute.xlu0 %1207
  %1209 = vrot.lane.b32.xlu0 %v1121, 32
  %v1210 = vpop.permute.xlu0 %1209
  %1211 = vrot.lane.b32.xlu0 %v1124, 32
  %v1212 = vpop.permute.xlu0 %1211
  %1213 = vrot.lane.b32.xlu0 %v1127, 32
  %v1214 = vpop.permute.xlu0 %1213
  %1215 = vrot.lane.b32.xlu0 %v1130, 32
  %v1216 = vpop.permute.xlu0 %1215
  %1217 = vrot.lane.b32.xlu0 %v1133, 32
  %v1218 = vpop.permute.xlu0 %1217
  %1219 = vrot.lane.b32.xlu0 %v1136, 32
  %v1220 = vpop.permute.xlu0 %1219
  %1221 = vrot.lane.b32.xlu0 %v1139, 32
  %v1222 = vpop.permute.xlu0 %1221
  %1223 = vrot.lane.b32.xlu0 %v1142, 32
  %v1224 = vpop.permute.xlu0 %1223
  %1225 = vrot.lane.b32.xlu0 %v1145, 32
  %v1226 = vpop.permute.xlu0 %1225
  %1227 = vrot.lane.b32.xlu0 %v1148, 32
  %v1228 = vpop.permute.xlu0 %1227
  %1229 = vrot.lane.b32.xlu0 %v1151, 32
  %v1230 = vpop.permute.xlu0 %1229
  %1231 = vrot.lane.b32.xlu0 %v1154, 32
  %v1232 = vpop.permute.xlu0 %1231
  %1233 = vrot.lane.b32.xlu0 %v1157, 32
  %v1234 = vpop.permute.xlu0 %1233
  %1235 = vrot.lane.b32.xlu0 %v1160, 32
  %v1236 = vpop.permute.xlu0 %1235
  %1237 = vrot.lane.b32.xlu0 %v1163, 32
  %v1238 = vpop.permute.xlu0 %1237
  %1239 = vrot.lane.b32.xlu0 %v1166, 32
  %v1240 = vpop.permute.xlu0 %1239
  %1241 = vrot.lane.b32.xlu0 %v1169, 32
  %v1242 = vpop.permute.xlu0 %1241
  %1243 = vrot.lane.b32.xlu0 %v1172, 32
  %v1244 = vpop.permute.xlu0 %1243
  %1245 = vrot.lane.b32.xlu0 %v1175, 32
  %v1246 = vpop.permute.xlu0 %1245
  %1247 = vrot.lane.b32.xlu0 %v1178, 32
  %v1248 = vpop.permute.xlu0 %1247
  %1249 = vrot.lane.b32.xlu0 %v1181, 32
  %v1250 = vpop.permute.xlu0 %1249
  %1251 = vrot.lane.b32.xlu0 %v1184, 32
  %v1252 = vpop.permute.xlu0 %1251
  %1253 = vrot.lane.b32.xlu0 %v1187, 32
  %v1254 = vpop.permute.xlu0 %1253
  %1255 = vrot.lane.b32.xlu0 %v1190, 32
  %v1256 = vpop.permute.xlu0 %1255
  %1257 = vrot.lane.b32.xlu0 %v1193, 32
  %v1258 = vpop.permute.xlu0 %1257
  %1259 = vrot.lane.b32.xlu0 %v1196, 32
  %v1260 = vpop.permute.xlu0 %1259
  %1261 = vrot.lane.b32.xlu0 %v1199, 32
  %v1262 = vpop.permute.xlu0 %1261
  %1263 = vrot.lane.b32.xlu0 %v1202, 32
  %v1264 = vpop.permute.xlu0 %1263
  %1267 = vrot.lane.b32.xlu0 %v554, 48
  %v1268 = vpop.permute.xlu0 %1267
  %1269 = vrot.lane.b32.xlu0 %v555, 48
  %v1270 = vpop.permute.xlu0 %1269
  %1271 = vrot.lane.b32.xlu0 %v556, 48
  %v1272 = vpop.permute.xlu0 %1271
  %1273 = vrot.lane.b32.xlu0 %v557, 48
  %v1274 = vpop.permute.xlu0 %1273
  %1275 = vrot.lane.b32.xlu0 %v558, 48
  %v1276 = vpop.permute.xlu0 %1275
  %1277 = vrot.lane.b32.xlu0 %v559, 48
  %v1278 = vpop.permute.xlu0 %1277
  %1279 = vrot.lane.b32.xlu0 %v560, 48
  %v1280 = vpop.permute.xlu0 %1279
  %1281 = vrot.lane.b32.xlu0 %v561, 48
  %v1282 = vpop.permute.xlu0 %1281
  %1283 = vrot.lane.b32.xlu0 %v562, 48
  %v1284 = vpop.permute.xlu0 %1283
  %1285 = vrot.lane.b32.xlu0 %v563, 48
  %v1286 = vpop.permute.xlu0 %1285
  %1287 = vrot.lane.b32.xlu0 %v564, 48
  %v1288 = vpop.permute.xlu0 %1287
  %1289 = vrot.lane.b32.xlu0 %v565, 48
  %v1290 = vpop.permute.xlu0 %1289
  %1291 = vrot.lane.b32.xlu0 %v566, 48
  %v1292 = vpop.permute.xlu0 %1291
  %1293 = vrot.lane.b32.xlu0 %v567, 48
  %v1294 = vpop.permute.xlu0 %1293
  %1295 = vrot.lane.b32.xlu0 %v568, 48
  %v1296 = vpop.permute.xlu0 %1295
  %1297 = vrot.lane.b32.xlu0 %v569, 48
  %v1298 = vpop.permute.xlu0 %1297
  %1299 = vrot.lane.b32.xlu0 %v570, 48
  %v1300 = vpop.permute.xlu0 %1299
  %1301 = vrot.lane.b32.xlu0 %v571, 48
  %v1302 = vpop.permute.xlu0 %1301
  %1303 = vrot.lane.b32.xlu0 %v572, 48
  %v1304 = vpop.permute.xlu0 %1303
  %1305 = vrot.lane.b32.xlu0 %v573, 48
  %v1306 = vpop.permute.xlu0 %1305
  %1307 = vrot.lane.b32.xlu0 %v574, 48
  %v1308 = vpop.permute.xlu0 %1307
  %1309 = vrot.lane.b32.xlu0 %v575, 48
  %v1310 = vpop.permute.xlu0 %1309
  %1311 = vrot.lane.b32.xlu0 %v576, 48
  %v1312 = vpop.permute.xlu0 %1311
  %1313 = vrot.lane.b32.xlu0 %v577, 48
  %v1314 = vpop.permute.xlu0 %1313
  %1315 = vrot.lane.b32.xlu0 %v578, 48
  %v1316 = vpop.permute.xlu0 %1315
  %1317 = vrot.lane.b32.xlu0 %v579, 48
  %v1318 = vpop.permute.xlu0 %1317
  %1319 = vrot.lane.b32.xlu0 %v580, 48
  %v1320 = vpop.permute.xlu0 %1319
  %1321 = vrot.lane.b32.xlu0 %v581, 48
  %v1322 = vpop.permute.xlu0 %1321
  %1323 = vrot.lane.b32.xlu0 %v582, 48
  %v1324 = vpop.permute.xlu0 %1323
  %1325 = vrot.lane.b32.xlu0 %v583, 48
  %v1326 = vpop.permute.xlu0 %1325
  %1327 = vrot.lane.b32.xlu0 %v584, 48
  %v1328 = vpop.permute.xlu0 %1327
  %1329 = vrot.lane.b32.xlu0 %v585, 48
  %v1330 = vpop.permute.xlu0 %1329
  %v1332 = vshrl.u32 %v569, 16
  %v1334 = vshll.u32 %v569, 16
  %v1336 = vrot.slane %v1334, 1
  %v1337 = vor.u32 %v1332, %v1336
  %v1339 = vshll.u32 %v601, 16
  %v1341 = vrot.slane %v1339, 1
  %v1342 = vsel %vm618, %v1337, %v1341
  %v1344 = vshrl.u32 %v585, 16
  %v1346 = vshll.u32 %v585, 16
  %v1348 = vrot.slane %v1346, 1
  %v1349 = vor.u32 %v1344, %v1348
  %v1351 = vshll.u32 %v617, 16
  %v1353 = vrot.slane %v1351, 1
  %v1354 = vsel %vm618, %v1349, %v1353
  %1355 = vrot.lane.b32.xlu0 %v638, 64
  %v1356 = vpop.permute.xlu0 %1355
  %1357 = vrot.lane.b32.xlu0 %v650, 64
  %v1358 = vpop.permute.xlu0 %1357
  %1359 = vrot.lane.b32.xlu0 %v662, 64
  %v1360 = vpop.permute.xlu0 %1359
  %1361 = vrot.lane.b32.xlu0 %v674, 64
  %v1362 = vpop.permute.xlu0 %1361
  %1363 = vrot.lane.b32.xlu0 %v686, 64
  %v1364 = vpop.permute.xlu0 %1363
  %1365 = vrot.lane.b32.xlu0 %v698, 64
  %v1366 = vpop.permute.xlu0 %1365
  %1367 = vrot.lane.b32.xlu0 %v710, 64
  %v1368 = vpop.permute.xlu0 %1367
  %1369 = vrot.lane.b32.xlu0 %v722, 64
  %v1370 = vpop.permute.xlu0 %1369
  %1371 = vrot.lane.b32.xlu0 %v734, 64
  %v1372 = vpop.permute.xlu0 %1371
  %1373 = vrot.lane.b32.xlu0 %v746, 64
  %v1374 = vpop.permute.xlu0 %1373
  %1375 = vrot.lane.b32.xlu0 %v758, 64
  %v1376 = vpop.permute.xlu0 %1375
  %1377 = vrot.lane.b32.xlu0 %v770, 64
  %v1378 = vpop.permute.xlu0 %1377
  %1379 = vrot.lane.b32.xlu0 %v782, 64
  %v1380 = vpop.permute.xlu0 %1379
  %1381 = vrot.lane.b32.xlu0 %v794, 64
  %v1382 = vpop.permute.xlu0 %1381
  %1383 = vrot.lane.b32.xlu0 %v806, 64
  %v1384 = vpop.permute.xlu0 %1383
  %1385 = vrot.lane.b32.xlu0 %v1342, 64
  %v1386 = vpop.permute.xlu0 %1385
  %1387 = vrot.lane.b32.xlu0 %v818, 64
  %v1388 = vpop.permute.xlu0 %1387
  %1389 = vrot.lane.b32.xlu0 %v830, 64
  %v1390 = vpop.permute.xlu0 %1389
  %1391 = vrot.lane.b32.xlu0 %v842, 64
  %v1392 = vpop.permute.xlu0 %1391
  %1393 = vrot.lane.b32.xlu0 %v854, 64
  %v1394 = vpop.permute.xlu0 %1393
  %1395 = vrot.lane.b32.xlu0 %v866, 64
  %v1396 = vpop.permute.xlu0 %1395
  %1397 = vrot.lane.b32.xlu0 %v878, 64
  %v1398 = vpop.permute.xlu0 %1397
  %1399 = vrot.lane.b32.xlu0 %v890, 64
  %v1400 = vpop.permute.xlu0 %1399
  %1401 = vrot.lane.b32.xlu0 %v902, 64
  %v1402 = vpop.permute.xlu0 %1401
  %1403 = vrot.lane.b32.xlu0 %v914, 64
  %v1404 = vpop.permute.xlu0 %1403
  %1405 = vrot.lane.b32.xlu0 %v926, 64
  %v1406 = vpop.permute.xlu0 %1405
  %1407 = vrot.lane.b32.xlu0 %v938, 64
  %v1408 = vpop.permute.xlu0 %1407
  %1409 = vrot.lane.b32.xlu0 %v950, 64
  %v1410 = vpop.permute.xlu0 %1409
  %1411 = vrot.lane.b32.xlu0 %v962, 64
  %v1412 = vpop.permute.xlu0 %1411
  %1413 = vrot.lane.b32.xlu0 %v974, 64
  %v1414 = vpop.permute.xlu0 %1413
  %1415 = vrot.lane.b32.xlu0 %v986, 64
  %v1416 = vpop.permute.xlu0 %1415
  %1417 = vrot.lane.b32.xlu0 %v1354, 64
  %v1418 = vpop.permute.xlu0 %1417
  %v1421 = vrot.slane %v569, 1
  %v1422 = vrot.slane %v601, 1
  %v1423 = vsel %vm1110, %v1421, %v1422
  %v1424 = vrot.slane %v585, 1
  %v1425 = vrot.slane %v617, 1
  %v1426 = vsel %vm1110, %v1424, %v1425
  %1427 = vrot.lane.b32.xlu0 %v1115, 80
  %v1428 = vpop.permute.xlu0 %1427
  %1429 = vrot.lane.b32.xlu0 %v1118, 80
  %v1430 = vpop.permute.xlu0 %1429
  %1431 = vrot.lane.b32.xlu0 %v1121, 80
  %v1432 = vpop.permute.xlu0 %1431
  %1433 = vrot.lane.b32.xlu0 %v1124, 80
  %v1434 = vpop.permute.xlu0 %1433
  %1435 = vrot.lane.b32.xlu0 %v1127, 80
  %v1436 = vpop.permute.xlu0 %1435
  %1437 = vrot.lane.b32.xlu0 %v1130, 80
  %v1438 = vpop.permute.xlu0 %1437
  %1439 = vrot.lane.b32.xlu0 %v1133, 80
  %v1440 = vpop.permute.xlu0 %1439
  %1441 = vrot.lane.b32.xlu0 %v1136, 80
  %v1442 = vpop.permute.xlu0 %1441
  %1443 = vrot.lane.b32.xlu0 %v1139, 80
  %v1444 = vpop.permute.xlu0 %1443
  %1445 = vrot.lane.b32.xlu0 %v1142, 80
  %v1446 = vpop.permute.xlu0 %1445
  %1447 = vrot.lane.b32.xlu0 %v1145, 80
  %v1448 = vpop.permute.xlu0 %1447
  %1449 = vrot.lane.b32.xlu0 %v1148, 80
  %v1450 = vpop.permute.xlu0 %1449
  %1451 = vrot.lane.b32.xlu0 %v1151, 80
  %v1452 = vpop.permute.xlu0 %1451
  %1453 = vrot.lane.b32.xlu0 %v1154, 80
  %v1454 = vpop.permute.xlu0 %1453
  %1455 = vrot.lane.b32.xlu0 %v1157, 80
  %v1456 = vpop.permute.xlu0 %1455
  %1457 = vrot.lane.b32.xlu0 %v1423, 80
  %v1458 = vpop.permute.xlu0 %1457
  %1459 = vrot.lane.b32.xlu0 %v1160, 80
  %v1460 = vpop.permute.xlu0 %1459
  %1461 = vrot.lane.b32.xlu0 %v1163, 80
  %v1462 = vpop.permute.xlu0 %1461
  %1463 = vrot.lane.b32.xlu0 %v1166, 80
  %v1464 = vpop.permute.xlu0 %1463
  %1465 = vrot.lane.b32.xlu0 %v1169, 80
  %v1466 = vpop.permute.xlu0 %1465
  %1467 = vrot.lane.b32.xlu0 %v1172, 80
  %v1468 = vpop.permute.xlu0 %1467
  %1469 = vrot.lane.b32.xlu0 %v1175, 80
  %v1470 = vpop.permute.xlu0 %1469
  %1471 = vrot.lane.b32.xlu0 %v1178, 80
  %v1472 = vpop.permute.xlu0 %1471
  %1473 = vrot.lane.b32.xlu0 %v1181, 80
  %v1474 = vpop.permute.xlu0 %1473
  %1475 = vrot.lane.b32.xlu0 %v1184, 80
  %v1476 = vpop.permute.xlu0 %1475
  %1477 = vrot.lane.b32.xlu0 %v1187, 80
  %v1478 = vpop.permute.xlu0 %1477
  %1479 = vrot.lane.b32.xlu0 %v1190, 80
  %v1480 = vpop.permute.xlu0 %1479
  %1481 = vrot.lane.b32.xlu0 %v1193, 80
  %v1482 = vpop.permute.xlu0 %1481
  %1483 = vrot.lane.b32.xlu0 %v1196, 80
  %v1484 = vpop.permute.xlu0 %1483
  %1485 = vrot.lane.b32.xlu0 %v1199, 80
  %v1486 = vpop.permute.xlu0 %1485
  %1487 = vrot.lane.b32.xlu0 %v1202, 80
  %v1488 = vpop.permute.xlu0 %1487
  %1489 = vrot.lane.b32.xlu0 %v1426, 80
  %v1490 = vpop.permute.xlu0 %1489
  %1491 = vrot.lane.b32.xlu0 %v555, 96
  %v1492 = vpop.permute.xlu0 %1491
  %1493 = vrot.lane.b32.xlu0 %v556, 96
  %v1494 = vpop.permute.xlu0 %1493
  %1495 = vrot.lane.b32.xlu0 %v557, 96
  %v1496 = vpop.permute.xlu0 %1495
  %1497 = vrot.lane.b32.xlu0 %v558, 96
  %v1498 = vpop.permute.xlu0 %1497
  %1499 = vrot.lane.b32.xlu0 %v559, 96
  %v1500 = vpop.permute.xlu0 %1499
  %1501 = vrot.lane.b32.xlu0 %v560, 96
  %v1502 = vpop.permute.xlu0 %1501
  %1503 = vrot.lane.b32.xlu0 %v561, 96
  %v1504 = vpop.permute.xlu0 %1503
  %1505 = vrot.lane.b32.xlu0 %v562, 96
  %v1506 = vpop.permute.xlu0 %1505
  %1507 = vrot.lane.b32.xlu0 %v563, 96
  %v1508 = vpop.permute.xlu0 %1507
  %1509 = vrot.lane.b32.xlu0 %v564, 96
  %v1510 = vpop.permute.xlu0 %1509
  %1511 = vrot.lane.b32.xlu0 %v565, 96
  %v1512 = vpop.permute.xlu0 %1511
  %1513 = vrot.lane.b32.xlu0 %v566, 96
  %v1514 = vpop.permute.xlu0 %1513
  %1515 = vrot.lane.b32.xlu0 %v567, 96
  %v1516 = vpop.permute.xlu0 %1515
  %1517 = vrot.lane.b32.xlu0 %v568, 96
  %v1518 = vpop.permute.xlu0 %1517
  %1519 = vrot.lane.b32.xlu0 %v569, 96
  %v1520 = vpop.permute.xlu0 %1519
  %1521 = vrot.lane.b32.xlu0 0, 96
  %v1522 = vpop.permute.xlu0 %1521
  %1523 = vrot.lane.b32.xlu0 %v571, 96
  %v1524 = vpop.permute.xlu0 %1523
  %1525 = vrot.lane.b32.xlu0 %v572, 96
  %v1526 = vpop.permute.xlu0 %1525
  %1527 = vrot.lane.b32.xlu0 %v573, 96
  %v1528 = vpop.permute.xlu0 %1527
  %1529 = vrot.lane.b32.xlu0 %v574, 96
  %v1530 = vpop.permute.xlu0 %1529
  %1531 = vrot.lane.b32.xlu0 %v575, 96
  %v1532 = vpop.permute.xlu0 %1531
  %1533 = vrot.lane.b32.xlu0 %v576, 96
  %v1534 = vpop.permute.xlu0 %1533
  %1535 = vrot.lane.b32.xlu0 %v577, 96
  %v1536 = vpop.permute.xlu0 %1535
  %1537 = vrot.lane.b32.xlu0 %v578, 96
  %v1538 = vpop.permute.xlu0 %1537
  %1539 = vrot.lane.b32.xlu0 %v579, 96
  %v1540 = vpop.permute.xlu0 %1539
  %1541 = vrot.lane.b32.xlu0 %v580, 96
  %v1542 = vpop.permute.xlu0 %1541
  %1543 = vrot.lane.b32.xlu0 %v581, 96
  %v1544 = vpop.permute.xlu0 %1543
  %1545 = vrot.lane.b32.xlu0 %v582, 96
  %v1546 = vpop.permute.xlu0 %1545
  %1547 = vrot.lane.b32.xlu0 %v583, 96
  %v1548 = vpop.permute.xlu0 %1547
  %1549 = vrot.lane.b32.xlu0 %v584, 96
  %v1550 = vpop.permute.xlu0 %1549
  %1551 = vrot.lane.b32.xlu0 %v585, 96
  %v1552 = vpop.permute.xlu0 %1551
  %1553 = vrot.lane.b32.xlu0 %v650, 112
  %v1554 = vpop.permute.xlu0 %1553
  %1555 = vrot.lane.b32.xlu0 %v662, 112
  %v1556 = vpop.permute.xlu0 %1555
  %1557 = vrot.lane.b32.xlu0 %v674, 112
  %v1558 = vpop.permute.xlu0 %1557
  %1559 = vrot.lane.b32.xlu0 %v686, 112
  %v1560 = vpop.permute.xlu0 %1559
  %1561 = vrot.lane.b32.xlu0 %v698, 112
  %v1562 = vpop.permute.xlu0 %1561
  %1563 = vrot.lane.b32.xlu0 %v710, 112
  %v1564 = vpop.permute.xlu0 %1563
  %1565 = vrot.lane.b32.xlu0 %v722, 112
  %v1566 = vpop.permute.xlu0 %1565
  %1567 = vrot.lane.b32.xlu0 %v734, 112
  %v1568 = vpop.permute.xlu0 %1567
  %1569 = vrot.lane.b32.xlu0 %v746, 112
  %v1570 = vpop.permute.xlu0 %1569
  %1571 = vrot.lane.b32.xlu0 %v758, 112
  %v1572 = vpop.permute.xlu0 %1571
  %1573 = vrot.lane.b32.xlu0 %v770, 112
  %v1574 = vpop.permute.xlu0 %1573
  %1575 = vrot.lane.b32.xlu0 %v782, 112
  %v1576 = vpop.permute.xlu0 %1575
  %1577 = vrot.lane.b32.xlu0 %v794, 112
  %v1578 = vpop.permute.xlu0 %1577
  %1579 = vrot.lane.b32.xlu0 %v806, 112
  %v1580 = vpop.permute.xlu0 %1579
  %1581 = vrot.lane.b32.xlu0 %v1342, 112
  %v1582 = vpop.permute.xlu0 %1581
  %1583 = vrot.lane.b32.xlu0 %v626, 112
  %v1584 = vpop.permute.xlu0 %1583
  %1585 = vrot.lane.b32.xlu0 %v830, 112
  %v1586 = vpop.permute.xlu0 %1585
  %1587 = vrot.lane.b32.xlu0 %v842, 112
  %v1588 = vpop.permute.xlu0 %1587
  %1589 = vrot.lane.b32.xlu0 %v854, 112
  %v1590 = vpop.permute.xlu0 %1589
  %1591 = vrot.lane.b32.xlu0 %v866, 112
  %v1592 = vpop.permute.xlu0 %1591
  %1593 = vrot.lane.b32.xlu0 %v878, 112
  %v1594 = vpop.permute.xlu0 %1593
  %1595 = vrot.lane.b32.xlu0 %v890, 112
  %v1596 = vpop.permute.xlu0 %1595
  %1597 = vrot.lane.b32.xlu0 %v902, 112
  %v1598 = vpop.permute.xlu0 %1597
  %1599 = vrot.lane.b32.xlu0 %v914, 112
  %v1600 = vpop.permute.xlu0 %1599
  %1601 = vrot.lane.b32.xlu0 %v926, 112
  %v1602 = vpop.permute.xlu0 %1601
  %1603 = vrot.lane.b32.xlu0 %v938, 112
  %v1604 = vpop.permute.xlu0 %1603
  %1605 = vrot.lane.b32.xlu0 %v950, 112
  %v1606 = vpop.permute.xlu0 %1605
  %1607 = vrot.lane.b32.xlu0 %v962, 112
  %v1608 = vpop.permute.xlu0 %1607
  %1609 = vrot.lane.b32.xlu0 %v974, 112
  %v1610 = vpop.permute.xlu0 %1609
  %1611 = vrot.lane.b32.xlu0 %v986, 112
  %v1612 = vpop.permute.xlu0 %1611
  %1613 = vrot.lane.b32.xlu0 %v1354, 112
  %v1614 = vpop.permute.xlu0 %1613
  %vm1615 = vcmask 130048
  %v1617 = vsel %vm1615, 0, %v988
  %v1619 = vsel %vm1615, %v554, %v990
  %v1621 = vsel %vm1615, %v555, %v992
  %v1623 = vsel %vm1615, %v556, %v994
  %v1625 = vsel %vm1615, %v557, %v996
  %v1627 = vsel %vm1615, %v558, %v998
  %v1629 = vsel %vm1615, %v559, %v1000
  %v1631 = vsel %vm1615, %v560, %v1002
  %v1633 = vsel %vm1615, %v561, %v1004
  %v1635 = vsel %vm1615, %v562, %v1006
  %v1637 = vsel %vm1615, %v563, %v1008
  %v1639 = vsel %vm1615, %v564, %v1010
  %v1641 = vsel %vm1615, %v565, %v1012
  %v1643 = vsel %vm1615, %v566, %v1014
  %v1645 = vsel %vm1615, %v567, %v1016
  %v1647 = vsel %vm1615, %v568, %v1018
  %v1649 = vsel %vm1615, %v570, %v1020
  %v1651 = vsel %vm1615, %v571, %v1022
  %v1653 = vsel %vm1615, %v572, %v1024
  %v1655 = vsel %vm1615, %v573, %v1026
  %v1657 = vsel %vm1615, %v574, %v1028
  %v1659 = vsel %vm1615, %v575, %v1030
  %v1661 = vsel %vm1615, %v576, %v1032
  %v1663 = vsel %vm1615, %v577, %v1034
  %v1665 = vsel %vm1615, %v578, %v1036
  %v1667 = vsel %vm1615, %v579, %v1038
  %v1669 = vsel %vm1615, %v580, %v1040
  %v1671 = vsel %vm1615, %v581, %v1042
  %v1673 = vsel %vm1615, %v582, %v1044
  %v1675 = vsel %vm1615, %v583, %v1046
  %v1677 = vsel %vm1615, %v584, %v1048
  %vm1678 = vcmask 261120
  %v1680 = vsel %vm1678, %v1617, %v1204
  %v1682 = vsel %vm1678, %v1619, %v1206
  %v1684 = vsel %vm1678, %v1621, %v1208
  %v1686 = vsel %vm1678, %v1623, %v1210
  %v1688 = vsel %vm1678, %v1625, %v1212
  %v1690 = vsel %vm1678, %v1627, %v1214
  %v1692 = vsel %vm1678, %v1629, %v1216
  %v1694 = vsel %vm1678, %v1631, %v1218
  %v1696 = vsel %vm1678, %v1633, %v1220
  %v1698 = vsel %vm1678, %v1635, %v1222
  %v1700 = vsel %vm1678, %v1637, %v1224
  %v1702 = vsel %vm1678, %v1639, %v1226
  %v1704 = vsel %vm1678, %v1641, %v1228
  %v1706 = vsel %vm1678, %v1643, %v1230
  %v1708 = vsel %vm1678, %v1645, %v1232
  %v1710 = vsel %vm1678, %v1647, %v1234
  %v1712 = vsel %vm1678, %v1649, %v1236
  %v1714 = vsel %vm1678, %v1651, %v1238
  %v1716 = vsel %vm1678, %v1653, %v1240
  %v1718 = vsel %vm1678, %v1655, %v1242
  %v1720 = vsel %vm1678, %v1657, %v1244
  %v1722 = vsel %vm1678, %v1659, %v1246
  %v1724 = vsel %vm1678, %v1661, %v1248
  %v1726 = vsel %vm1678, %v1663, %v1250
  %v1728 = vsel %vm1678, %v1665, %v1252
  %v1730 = vsel %vm1678, %v1667, %v1254
  %v1732 = vsel %vm1678, %v1669, %v1256
  %v1734 = vsel %vm1678, %v1671, %v1258
  %v1736 = vsel %vm1678, %v1673, %v1260
  %v1738 = vsel %vm1678, %v1675, %v1262
  %v1740 = vsel %vm1678, %v1677, %v1264
  %vm1741 = vcmask 392192
  %v1743 = vsel %vm1741, %v1680, %v1268
  %v1745 = vsel %vm1741, %v1682, %v1270
  %v1747 = vsel %vm1741, %v1684, %v1272
  %v1749 = vsel %vm1741, %v1686, %v1274
  %v1751 = vsel %vm1741, %v1688, %v1276
  %v1753 = vsel %vm1741, %v1690, %v1278
  %v1755 = vsel %vm1741, %v1692, %v1280
  %v1757 = vsel %vm1741, %v1694, %v1282
  %v1759 = vsel %vm1741, %v1696, %v1284
  %v1761 = vsel %vm1741, %v1698, %v1286
  %v1763 = vsel %vm1741, %v1700, %v1288
  %v1765 = vsel %vm1741, %v1702, %v1290
  %v1767 = vsel %vm1741, %v1704, %v1292
  %v1769 = vsel %vm1741, %v1706, %v1294
  %v1771 = vsel %vm1741, %v1708, %v1296
  %v1773 = vsel %vm1741, %v1710, %v1298
  %v1775 = vsel %vm1741, %v1680, %v1300
  %v1777 = vsel %vm1741, %v1712, %v1302
  %v1779 = vsel %vm1741, %v1714, %v1304
  %v1781 = vsel %vm1741, %v1716, %v1306
  %v1783 = vsel %vm1741, %v1718, %v1308
  %v1785 = vsel %vm1741, %v1720, %v1310
  %v1787 = vsel %vm1741, %v1722, %v1312
  %v1789 = vsel %vm1741, %v1724, %v1314
  %v1791 = vsel %vm1741, %v1726, %v1316
  %v1793 = vsel %vm1741, %v1728, %v1318
  %v1795 = vsel %vm1741, %v1730, %v1320
  %v1797 = vsel %vm1741, %v1732, %v1322
  %v1799 = vsel %vm1741, %v1734, %v1324
  %v1801 = vsel %vm1741, %v1736, %v1326
  %v1803 = vsel %vm1741, %v1738, %v1328
  %v1805 = vsel %vm1741, %v1740, %v1330
  %vm1806 = vcmask 523264
  %v1808 = vsel %vm1806, %v1743, %v1356
  %v1810 = vsel %vm1806, %v1745, %v1358
  %v1812 = vsel %vm1806, %v1747, %v1360
  %v1814 = vsel %vm1806, %v1749, %v1362
  %v1816 = vsel %vm1806, %v1751, %v1364
  %v1818 = vsel %vm1806, %v1753, %v1366
  %v1820 = vsel %vm1806, %v1755, %v1368
  %v1822 = vsel %vm1806, %v1757, %v1370
  %v1824 = vsel %vm1806, %v1759, %v1372
  %v1826 = vsel %vm1806, %v1761, %v1374
  %v1828 = vsel %vm1806, %v1763, %v1376
  %v1830 = vsel %vm1806, %v1765, %v1378
  %v1832 = vsel %vm1806, %v1767, %v1380
  %v1834 = vsel %vm1806, %v1769, %v1382
  %v1836 = vsel %vm1806, %v1771, %v1384
  %v1838 = vsel %vm1806, %v1773, %v1386
  %v1840 = vsel %vm1806, %v1775, %v1388
  %v1842 = vsel %vm1806, %v1777, %v1390
  %v1844 = vsel %vm1806, %v1779, %v1392
  %v1846 = vsel %vm1806, %v1781, %v1394
  %v1848 = vsel %vm1806, %v1783, %v1396
  %v1850 = vsel %vm1806, %v1785, %v1398
  %v1852 = vsel %vm1806, %v1787, %v1400
  %v1854 = vsel %vm1806, %v1789, %v1402
  %v1856 = vsel %vm1806, %v1791, %v1404
  %v1858 = vsel %vm1806, %v1793, %v1406
  %v1860 = vsel %vm1806, %v1795, %v1408
  %v1862 = vsel %vm1806, %v1797, %v1410
  %v1864 = vsel %vm1806, %v1799, %v1412
  %v1866 = vsel %vm1806, %v1801, %v1414
  %v1868 = vsel %vm1806, %v1803, %v1416
  %v1870 = vsel %vm1806, %v1805, %v1418
  %vm1871 = vcmask 654336
  %v1873 = vsel %vm1871, %v1808, %v1428
  %v1875 = vsel %vm1871, %v1810, %v1430
  %v1877 = vsel %vm1871, %v1812, %v1432
  %v1879 = vsel %vm1871, %v1814, %v1434
  %v1881 = vsel %vm1871, %v1816, %v1436
  %v1883 = vsel %vm1871, %v1818, %v1438
  %v1885 = vsel %vm1871, %v1820, %v1440
  %v1887 = vsel %vm1871, %v1822, %v1442
  %v1889 = vsel %vm1871, %v1824, %v1444
  %v1891 = vsel %vm1871, %v1826, %v1446
  %v1893 = vsel %vm1871, %v1828, %v1448
  %v1895 = vsel %vm1871, %v1830, %v1450
  %v1897 = vsel %vm1871, %v1832, %v1452
  %v1899 = vsel %vm1871, %v1834, %v1454
  %v1901 = vsel %vm1871, %v1836, %v1456
  %v1903 = vsel %vm1871, %v1838, %v1458
  %v1905 = vsel %vm1871, %v1840, %v1460
  %v1907 = vsel %vm1871, %v1842, %v1462
  %v1909 = vsel %vm1871, %v1844, %v1464
  %v1911 = vsel %vm1871, %v1846, %v1466
  %v1913 = vsel %vm1871, %v1848, %v1468
  %v1915 = vsel %vm1871, %v1850, %v1470
  %v1917 = vsel %vm1871, %v1852, %v1472
  %v1919 = vsel %vm1871, %v1854, %v1474
  %v1921 = vsel %vm1871, %v1856, %v1476
  %v1923 = vsel %vm1871, %v1858, %v1478
  %v1925 = vsel %vm1871, %v1860, %v1480
  %v1927 = vsel %vm1871, %v1862, %v1482
  %v1929 = vsel %vm1871, %v1864, %v1484
  %v1931 = vsel %vm1871, %v1866, %v1486
  %v1933 = vsel %vm1871, %v1868, %v1488
  %v1935 = vsel %vm1871, %v1870, %v1490
  %vm1936 = vcmask 785408
  %v1938 = vsel %vm1936, %v1873, %v1492
  %v1940 = vsel %vm1936, %v1875, %v1494
  %v1942 = vsel %vm1936, %v1877, %v1496
  %v1944 = vsel %vm1936, %v1879, %v1498
  %v1946 = vsel %vm1936, %v1881, %v1500
  %v1948 = vsel %vm1936, %v1883, %v1502
  %v1950 = vsel %vm1936, %v1885, %v1504
  %v1952 = vsel %vm1936, %v1887, %v1506
  %v1954 = vsel %vm1936, %v1889, %v1508
  %v1956 = vsel %vm1936, %v1891, %v1510
  %v1958 = vsel %vm1936, %v1893, %v1512
  %v1960 = vsel %vm1936, %v1895, %v1514
  %v1962 = vsel %vm1936, %v1897, %v1516
  %v1964 = vsel %vm1936, %v1899, %v1518
  %v1966 = vsel %vm1936, %v1901, %v1520
  %v1968 = vsel %vm1936, %v1903, %v1522
  %v1970 = vsel %vm1936, %v1905, %v1524
  %v1972 = vsel %vm1936, %v1907, %v1526
  %v1974 = vsel %vm1936, %v1909, %v1528
  %v1976 = vsel %vm1936, %v1911, %v1530
  %v1978 = vsel %vm1936, %v1913, %v1532
  %v1980 = vsel %vm1936, %v1915, %v1534
  %v1982 = vsel %vm1936, %v1917, %v1536
  %v1984 = vsel %vm1936, %v1919, %v1538
  %v1986 = vsel %vm1936, %v1921, %v1540
  %v1988 = vsel %vm1936, %v1923, %v1542
  %v1990 = vsel %vm1936, %v1925, %v1544
  %v1992 = vsel %vm1936, %v1927, %v1546
  %v1994 = vsel %vm1936, %v1929, %v1548
  %v1996 = vsel %vm1936, %v1931, %v1550
  %v1998 = vsel %vm1936, %v1933, %v1552
  %v1999 = vsel %vm1936, %v1935, %v1522
  %vm2000 = vcmask 916480
  %v2002 = vsel %vm2000, %v1938, %v1554
  %v2005 = vsel %vm2000, %v1940, %v1556
  %v2008 = vsel %vm2000, %v1942, %v1558
  %v2011 = vsel %vm2000, %v1944, %v1560
  %v2014 = vsel %vm2000, %v1946, %v1562
  %v2017 = vsel %vm2000, %v1948, %v1564
  %v2020 = vsel %vm2000, %v1950, %v1566
  %v2023 = vsel %vm2000, %v1952, %v1568
  %v2026 = vsel %vm2000, %v1954, %v1570
  %v2029 = vsel %vm2000, %v1956, %v1572
  %v2032 = vsel %vm2000, %v1958, %v1574
  %v2035 = vsel %vm2000, %v1960, %v1576
  %v2038 = vsel %vm2000, %v1962, %v1578
  %v2041 = vsel %vm2000, %v1964, %v1580
  %v2044 = vsel %vm2000, %v1966, %v1582
  %v2047 = vsel %vm2000, %v1968, %v1584
  %v2050 = vsel %vm2000, %v1970, %v1586
  %v2053 = vsel %vm2000, %v1972, %v1588
  %v2056 = vsel %vm2000, %v1974, %v1590
  %v2059 = vsel %vm2000, %v1976, %v1592
  %v2062 = vsel %vm2000, %v1978, %v1594
  %v2065 = vsel %vm2000, %v1980, %v1596
  %v2068 = vsel %vm2000, %v1982, %v1598
  %v2071 = vsel %vm2000, %v1984, %v1600
  %v2074 = vsel %vm2000, %v1986, %v1602
  %v2077 = vsel %vm2000, %v1988, %v1604
  %v2080 = vsel %vm2000, %v1990, %v1606
  %v2083 = vsel %vm2000, %v1992, %v1608
  %v2086 = vsel %vm2000, %v1994, %v1610
  %v2089 = vsel %vm2000, %v1996, %v1612
  %v2092 = vsel %vm2000, %v1998, %v1614
  %v2094 = vsel %vm2000, %v1999, %v1584
  %v2097 = vsel %vm1615, %v1118, 0
  %v2100 = vsel %vm1615, %v1121, 0
  %v2103 = vsel %vm1615, %v1124, 0
  %v2106 = vsel %vm1615, %v1127, 0
  %v2109 = vsel %vm1615, %v1130, 0
  %v2112 = vsel %vm1615, %v1133, 0
  %v2115 = vsel %vm1615, %v1136, 0
  %v2118 = vsel %vm1615, %v1139, 0
  %v2121 = vsel %vm1615, %v1142, 0
  %v2124 = vsel %vm1615, %v1145, 0
  %v2127 = vsel %vm1615, %v1148, 0
  %v2130 = vsel %vm1615, %v1151, 0
  %v2133 = vsel %vm1615, %v1154, 0
  %v2136 = vsel %vm1615, %v1157, 0
  %v2139 = vsel %vm1615, %v1423, 0
  %v2142 = vsel %vm1615, %v1112, 0
  %v2145 = vsel %vm1615, %v1163, 0
  %v2148 = vsel %vm1615, %v1166, 0
  %v2151 = vsel %vm1615, %v1169, 0
  %v2154 = vsel %vm1615, %v1172, 0
  %v2157 = vsel %vm1615, %v1175, 0
  %v2160 = vsel %vm1615, %v1178, 0
  %v2163 = vsel %vm1615, %v1181, 0
  %v2166 = vsel %vm1615, %v1184, 0
  %v2169 = vsel %vm1615, %v1187, 0
  %v2172 = vsel %vm1615, %v1190, 0
  %v2175 = vsel %vm1615, %v1193, 0
  %v2178 = vsel %vm1615, %v1196, 0
  %v2181 = vsel %vm1615, %v1199, 0
  %v2184 = vsel %vm1615, %v1202, 0
  %v2187 = vsel %vm1615, %v1426, 0
  %v2189 = vld [vmem:[%s1] sm:$0xf]
  %v2190 = vld [vmem:[%s1 + $0x4] sm:$0xf]
  %v2191 = vld [vmem:[%s1 + $0x8] sm:$0xf]
  %v2192 = vld [vmem:[%s1 + $0xc] sm:$0xf]
  %v2193 = vld [vmem:[%s1 + $0x10] sm:$0xf]
  %v2194 = vld [vmem:[%s1 + $0x14] sm:$0xf]
  %v2195 = vld [vmem:[%s1 + $0x18] sm:$0xf]
  %v2196 = vld [vmem:[%s1 + $0x1c] sm:$0xf]
  %v2197 = vld [vmem:[%s1 + $0x20] sm:$0xf]
  %v2198 = vld [vmem:[%s1 + $0x24] sm:$0xf]
  %v2199 = vld [vmem:[%s1 + $0x28] sm:$0xf]
  %v2200 = vld [vmem:[%s1 + $0x2c] sm:$0xf]
  %v2201 = vld [vmem:[%s1 + $0x30] sm:$0xf]
  %v2202 = vld [vmem:[%s1 + $0x34] sm:$0xf]
  %v2203 = vld [vmem:[%s1 + $0x38] sm:$0xf]
  %v2204 = vld [vmem:[%s1 + $0x3c] sm:$0xf]
  %v2205 = vld [vmem:[%s1 + $0x40] sm:$0xf]
  %v2206 = vld [vmem:[%s1 + $0x44] sm:$0xf]
  %v2207 = vld [vmem:[%s1 + $0x48] sm:$0xf]
  %v2208 = vld [vmem:[%s1 + $0x4c] sm:$0xf]
  %v2209 = vld [vmem:[%s1 + $0x50] sm:$0xf]
  %v2210 = vld [vmem:[%s1 + $0x54] sm:$0xf]
  %v2211 = vld [vmem:[%s1 + $0x58] sm:$0xf]
  %v2212 = vld [vmem:[%s1 + $0x5c] sm:$0xf]
  %v2213 = vld [vmem:[%s1 + $0x60] sm:$0xf]
  %v2214 = vld [vmem:[%s1 + $0x64] sm:$0xf]
  %v2215 = vld [vmem:[%s1 + $0x68] sm:$0xf]
  %v2216 = vld [vmem:[%s1 + $0x6c] sm:$0xf]
  %v2217 = vld [vmem:[%s1 + $0x70] sm:$0xf]
  %v2218 = vld [vmem:[%s1 + $0x74] sm:$0xf]
  %v2219 = vld [vmem:[%s1 + $0x78] sm:$0xf]
  %v2220 = vld [vmem:[%s1 + $0x7c] sm:$0xf]
  %v2221 = vld [vmem:[%s2] sm:$0x1]
  %v2223 = vperm.slane %v2221, 0
  %v2257 = vunpack.c.l.b16 %v2189
  %v2258 = vunpack.c.l.b16 %v2190
  %v2259 = vunpack.c.l.b16 %v2191
  %v2260 = vunpack.c.l.b16 %v2192
  %v2261 = vunpack.c.l.b16 %v2193
  %v2262 = vunpack.c.l.b16 %v2194
  %v2263 = vunpack.c.l.b16 %v2195
  %v2264 = vunpack.c.l.b16 %v2196
  %v2265 = vunpack.c.l.b16 %v2197
  %v2266 = vunpack.c.l.b16 %v2198
  %v2267 = vunpack.c.l.b16 %v2199
  %v2268 = vunpack.c.l.b16 %v2200
  %v2269 = vunpack.c.l.b16 %v2201
  %v2270 = vunpack.c.l.b16 %v2202
  %v2271 = vunpack.c.l.b16 %v2203
  %v2272 = vunpack.c.l.b16 %v2204
  %v2273 = vunpack.c.l.b16 %v2205
  %v2274 = vunpack.c.l.b16 %v2206
  %v2275 = vunpack.c.l.b16 %v2207
  %v2276 = vunpack.c.l.b16 %v2208
  %v2277 = vunpack.c.l.b16 %v2209
  %v2278 = vunpack.c.l.b16 %v2210
  %v2279 = vunpack.c.l.b16 %v2211
  %v2280 = vunpack.c.l.b16 %v2212
  %v2281 = vunpack.c.l.b16 %v2213
  %v2282 = vunpack.c.l.b16 %v2214
  %v2283 = vunpack.c.l.b16 %v2215
  %v2284 = vunpack.c.l.b16 %v2216
  %v2285 = vunpack.c.l.b16 %v2217
  %v2286 = vunpack.c.l.b16 %v2218
  %v2287 = vunpack.c.l.b16 %v2219
  %v2288 = vunpack.c.l.b16 %v2220
  %v2289 = vpack.c.b16 %v2258, %v2257
  %v2290 = vpack.c.b16 %v2260, %v2259
  %v2291 = vpack.c.b16 %v2262, %v2261
  %v2292 = vpack.c.b16 %v2264, %v2263
  %v2293 = vpack.c.b16 %v2266, %v2265
  %v2294 = vpack.c.b16 %v2268, %v2267
  %v2295 = vpack.c.b16 %v2270, %v2269
  %v2296 = vpack.c.b16 %v2272, %v2271
  %v2297 = vpack.c.b16 %v2274, %v2273
  %v2298 = vpack.c.b16 %v2276, %v2275
  %v2299 = vpack.c.b16 %v2278, %v2277
  %v2300 = vpack.c.b16 %v2280, %v2279
  %v2301 = vpack.c.b16 %v2282, %v2281
  %v2302 = vpack.c.b16 %v2284, %v2283
  %v2303 = vpack.c.b16 %v2286, %v2285
  %v2304 = vpack.c.b16 %v2288, %v2287
  %2321 = vmatpush.bf16.msra.mxu0 %v2296
  %2322 = vmatpush.bf16.msra.mxu0 %v2295
  %2323 = vmatpush.bf16.msra.mxu0 %v2294
  %2324 = vmatpush.bf16.msra.mxu0 %v2293
  %2325 = vmatpush.bf16.msra.mxu0 %v2292
  %2326 = vmatpush.bf16.msra.mxu0 %v2291
  %2327 = vmatpush.bf16.msra.mxu0 %v2290
  %2328 = vmatpush.bf16.msra.mxu0 %v2289
  %2329 = vmatmul.bf16.gmra.mxu0 %v2002
  %v2330 = vpop.f32.mrf.mxu0
  %v2331 = vadd.f32 %v2223, %v2330
  %v2332 = vpop.f32.mrf.mxu0
  %v2333 = vadd.f32 %v2223, %v2332
  %2334 = vmatmul.bf16.gmra.mxu0 %v2005
  %v2335 = vpop.f32.mrf.mxu0
  %v2336 = vadd.f32 %v2223, %v2335
  %v2337 = vpop.f32.mrf.mxu0
  %v2338 = vadd.f32 %v2223, %v2337
  %2339 = vmatmul.bf16.gmra.mxu0 %v2008
  %v2340 = vpop.f32.mrf.mxu0
  %v2341 = vadd.f32 %v2223, %v2340
  %v2342 = vpop.f32.mrf.mxu0
  %v2343 = vadd.f32 %v2223, %v2342
  %2344 = vmatmul.bf16.gmra.mxu0 %v2011
  %v2345 = vpop.f32.mrf.mxu0
  %v2346 = vadd.f32 %v2223, %v2345
  %v2347 = vpop.f32.mrf.mxu0
  %v2348 = vadd.f32 %v2223, %v2347
  %2349 = vmatmul.bf16.gmra.mxu0 %v2014
  %v2350 = vpop.f32.mrf.mxu0
  %v2351 = vadd.f32 %v2223, %v2350
  %v2352 = vpop.f32.mrf.mxu0
  %v2353 = vadd.f32 %v2223, %v2352
  %2354 = vmatmul.bf16.gmra.mxu0 %v2017
  %v2355 = vpop.f32.mrf.mxu0
  %v2356 = vadd.f32 %v2223, %v2355
  %v2357 = vpop.f32.mrf.mxu0
  %v2358 = vadd.f32 %v2223, %v2357
  %2359 = vmatmul.bf16.gmra.mxu0 %v2020
  %v2360 = vpop.f32.mrf.mxu0
  %v2361 = vadd.f32 %v2223, %v2360
  %v2362 = vpop.f32.mrf.mxu0
  %v2363 = vadd.f32 %v2223, %v2362
  %2364 = vmatmul.bf16.gmra.mxu0 %v2023
  %v2365 = vpop.f32.mrf.mxu0
  %v2366 = vadd.f32 %v2223, %v2365
  %v2367 = vpop.f32.mrf.mxu0
  %v2368 = vadd.f32 %v2223, %v2367
  %2369 = vmatmul.bf16.gmra.mxu0 %v2026
  %v2370 = vpop.f32.mrf.mxu0
  %v2371 = vadd.f32 %v2223, %v2370
  %v2372 = vpop.f32.mrf.mxu0
  %v2373 = vadd.f32 %v2223, %v2372
  %2374 = vmatmul.bf16.gmra.mxu0 %v2029
  %v2375 = vpop.f32.mrf.mxu0
  %v2376 = vadd.f32 %v2223, %v2375
  %v2377 = vpop.f32.mrf.mxu0
  %v2378 = vadd.f32 %v2223, %v2377
  %2379 = vmatmul.bf16.gmra.mxu0 %v2032
  %v2380 = vpop.f32.mrf.mxu0
  %v2381 = vadd.f32 %v2223, %v2380
  %v2382 = vpop.f32.mrf.mxu0
  %v2383 = vadd.f32 %v2223, %v2382
  %2384 = vmatmul.bf16.gmra.mxu0 %v2035
  %v2385 = vpop.f32.mrf.mxu0
  %v2386 = vadd.f32 %v2223, %v2385
  %v2387 = vpop.f32.mrf.mxu0
  %v2388 = vadd.f32 %v2223, %v2387
  %2389 = vmatmul.bf16.gmra.mxu0 %v2038
  %v2390 = vpop.f32.mrf.mxu0
  %v2391 = vadd.f32 %v2223, %v2390
  %v2392 = vpop.f32.mrf.mxu0
  %v2393 = vadd.f32 %v2223, %v2392
  %2394 = vmatmul.bf16.gmra.mxu0 %v2041
  %v2395 = vpop.f32.mrf.mxu0
  %v2396 = vadd.f32 %v2223, %v2395
  %v2397 = vpop.f32.mrf.mxu0
  %v2398 = vadd.f32 %v2223, %v2397
  %2399 = vmatmul.bf16.gmra.mxu0 %v2044
  %v2400 = vpop.f32.mrf.mxu0
  %v2401 = vadd.f32 %v2223, %v2400
  %v2402 = vpop.f32.mrf.mxu0
  %v2403 = vadd.f32 %v2223, %v2402
  %2404 = vmatmul.bf16.gmra.mxu0 %v2047
  %v2405 = vpop.f32.mrf.mxu0
  %v2406 = vadd.f32 %v2223, %v2405
  %v2407 = vpop.f32.mrf.mxu0
  %v2408 = vadd.f32 %v2223, %v2407
  %2409 = vmatmul.bf16.gmra.mxu0 %v2050
  %v2410 = vpop.f32.mrf.mxu0
  %v2411 = vadd.f32 %v2223, %v2410
  %v2412 = vpop.f32.mrf.mxu0
  %v2413 = vadd.f32 %v2223, %v2412
  %2414 = vmatmul.bf16.gmra.mxu0 %v2053
  %v2415 = vpop.f32.mrf.mxu0
  %v2416 = vadd.f32 %v2223, %v2415
  %v2417 = vpop.f32.mrf.mxu0
  %v2418 = vadd.f32 %v2223, %v2417
  %2419 = vmatmul.bf16.gmra.mxu0 %v2056
  %v2420 = vpop.f32.mrf.mxu0
  %v2421 = vadd.f32 %v2223, %v2420
  %v2422 = vpop.f32.mrf.mxu0
  %v2423 = vadd.f32 %v2223, %v2422
  %2424 = vmatmul.bf16.gmra.mxu0 %v2059
  %v2425 = vpop.f32.mrf.mxu0
  %v2426 = vadd.f32 %v2223, %v2425
  %v2427 = vpop.f32.mrf.mxu0
  %v2428 = vadd.f32 %v2223, %v2427
  %2429 = vmatmul.bf16.gmra.mxu0 %v2062
  %v2430 = vpop.f32.mrf.mxu0
  %v2431 = vadd.f32 %v2223, %v2430
  %v2432 = vpop.f32.mrf.mxu0
  %v2433 = vadd.f32 %v2223, %v2432
  %2434 = vmatmul.bf16.gmra.mxu0 %v2065
  %v2435 = vpop.f32.mrf.mxu0
  %v2436 = vadd.f32 %v2223, %v2435
  %v2437 = vpop.f32.mrf.mxu0
  %v2438 = vadd.f32 %v2223, %v2437
  %2439 = vmatmul.bf16.gmra.mxu0 %v2068
  %v2440 = vpop.f32.mrf.mxu0
  %v2441 = vadd.f32 %v2223, %v2440
  %v2442 = vpop.f32.mrf.mxu0
  %v2443 = vadd.f32 %v2223, %v2442
  %2444 = vmatmul.bf16.gmra.mxu0 %v2071
  %v2445 = vpop.f32.mrf.mxu0
  %v2446 = vadd.f32 %v2223, %v2445
  %v2447 = vpop.f32.mrf.mxu0
  %v2448 = vadd.f32 %v2223, %v2447
  %2449 = vmatmul.bf16.gmra.mxu0 %v2074
  %v2450 = vpop.f32.mrf.mxu0
  %v2451 = vadd.f32 %v2223, %v2450
  %v2452 = vpop.f32.mrf.mxu0
  %v2453 = vadd.f32 %v2223, %v2452
  %2454 = vmatmul.bf16.gmra.mxu0 %v2077
  %v2455 = vpop.f32.mrf.mxu0
  %v2456 = vadd.f32 %v2223, %v2455
  %v2457 = vpop.f32.mrf.mxu0
  %v2458 = vadd.f32 %v2223, %v2457
  %2459 = vmatmul.bf16.gmra.mxu0 %v2080
  %v2460 = vpop.f32.mrf.mxu0
  %v2461 = vadd.f32 %v2223, %v2460
  %v2462 = vpop.f32.mrf.mxu0
  %v2463 = vadd.f32 %v2223, %v2462
  %2464 = vmatmul.bf16.gmra.mxu0 %v2083
  %v2465 = vpop.f32.mrf.mxu0
  %v2466 = vadd.f32 %v2223, %v2465
  %v2467 = vpop.f32.mrf.mxu0
  %v2468 = vadd.f32 %v2223, %v2467
  %2469 = vmatmul.bf16.gmra.mxu0 %v2086
  %v2470 = vpop.f32.mrf.mxu0
  %v2471 = vadd.f32 %v2223, %v2470
  %v2472 = vpop.f32.mrf.mxu0
  %v2473 = vadd.f32 %v2223, %v2472
  %2474 = vmatmul.bf16.gmra.mxu0 %v2089
  %v2475 = vpop.f32.mrf.mxu0
  %v2476 = vadd.f32 %v2223, %v2475
  %v2477 = vpop.f32.mrf.mxu0
  %v2478 = vadd.f32 %v2223, %v2477
  %2479 = vmatmul.bf16.gmra.mxu0 %v2092
  %v2480 = vpop.f32.mrf.mxu0
  %v2481 = vadd.f32 %v2223, %v2480
  %v2482 = vpop.f32.mrf.mxu0
  %v2483 = vadd.f32 %v2223, %v2482
  %2484 = vmatmul.bf16.gmra.mxu0 %v2094
  %v2485 = vpop.f32.mrf.mxu0
  %v2486 = vadd.f32 %v2223, %v2485
  %v2487 = vpop.f32.mrf.mxu0
  %v2488 = vadd.f32 %v2223, %v2487
  %2489 = vdwg.mxu0
  %2490 = vmatpush.bf16.msra.mxu0 %v2304
  %2491 = vmatpush.bf16.msra.mxu0 %v2303
  %2492 = vmatpush.bf16.msra.mxu0 %v2302
  %2493 = vmatpush.bf16.msra.mxu0 %v2301
  %2494 = vmatpush.bf16.msra.mxu0 %v2300
  %2495 = vmatpush.bf16.msra.mxu0 %v2299
  %2496 = vmatpush.bf16.msra.mxu0 %v2298
  %2497 = vmatpush.bf16.msra.mxu0 %v2297
  %2498 = vmatmul.bf16.gmra.mxu0 %v2097
  %v2499 = vpop.f32.mrf.mxu0
  %v2500 = vadd.f32 %v2331, %v2499
  %v2501 = vpop.f32.mrf.mxu0
  %v2502 = vadd.f32 %v2333, %v2501
  %2503 = vmatmul.bf16.gmra.mxu0 %v2100
  %v2504 = vpop.f32.mrf.mxu0
  %v2505 = vadd.f32 %v2336, %v2504
  %v2506 = vpop.f32.mrf.mxu0
  %v2507 = vadd.f32 %v2338, %v2506
  %2508 = vmatmul.bf16.gmra.mxu0 %v2103
  %v2509 = vpop.f32.mrf.mxu0
  %v2510 = vadd.f32 %v2341, %v2509
  %v2511 = vpop.f32.mrf.mxu0
  %v2512 = vadd.f32 %v2343, %v2511
  %2513 = vmatmul.bf16.gmra.mxu0 %v2106
  %v2514 = vpop.f32.mrf.mxu0
  %v2515 = vadd.f32 %v2346, %v2514
  %v2516 = vpop.f32.mrf.mxu0
  %v2517 = vadd.f32 %v2348, %v2516
  %2518 = vmatmul.bf16.gmra.mxu0 %v2109
  %v2519 = vpop.f32.mrf.mxu0
  %v2520 = vadd.f32 %v2351, %v2519
  %v2521 = vpop.f32.mrf.mxu0
  %v2522 = vadd.f32 %v2353, %v2521
  %2523 = vmatmul.bf16.gmra.mxu0 %v2112
  %v2524 = vpop.f32.mrf.mxu0
  %v2525 = vadd.f32 %v2356, %v2524
  %v2526 = vpop.f32.mrf.mxu0
  %v2527 = vadd.f32 %v2358, %v2526
  %2528 = vmatmul.bf16.gmra.mxu0 %v2115
  %v2529 = vpop.f32.mrf.mxu0
  %v2530 = vadd.f32 %v2361, %v2529
  %v2531 = vpop.f32.mrf.mxu0
  %v2532 = vadd.f32 %v2363, %v2531
  %2533 = vmatmul.bf16.gmra.mxu0 %v2118
  %v2534 = vpop.f32.mrf.mxu0
  %v2535 = vadd.f32 %v2366, %v2534
  %v2536 = vpop.f32.mrf.mxu0
  %v2537 = vadd.f32 %v2368, %v2536
  %2538 = vmatmul.bf16.gmra.mxu0 %v2121
  %v2539 = vpop.f32.mrf.mxu0
  %v2540 = vadd.f32 %v2371, %v2539
  %v2541 = vpop.f32.mrf.mxu0
  %v2542 = vadd.f32 %v2373, %v2541
  %2543 = vmatmul.bf16.gmra.mxu0 %v2124
  %v2544 = vpop.f32.mrf.mxu0
  %v2545 = vadd.f32 %v2376, %v2544
  %v2546 = vpop.f32.mrf.mxu0
  %v2547 = vadd.f32 %v2378, %v2546
  %2548 = vmatmul.bf16.gmra.mxu0 %v2127
  %v2549 = vpop.f32.mrf.mxu0
  %v2550 = vadd.f32 %v2381, %v2549
  %v2551 = vpop.f32.mrf.mxu0
  %v2552 = vadd.f32 %v2383, %v2551
  %2553 = vmatmul.bf16.gmra.mxu0 %v2130
  %v2554 = vpop.f32.mrf.mxu0
  %v2555 = vadd.f32 %v2386, %v2554
  %v2556 = vpop.f32.mrf.mxu0
  %v2557 = vadd.f32 %v2388, %v2556
  %2558 = vmatmul.bf16.gmra.mxu0 %v2133
  %v2559 = vpop.f32.mrf.mxu0
  %v2560 = vadd.f32 %v2391, %v2559
  %v2561 = vpop.f32.mrf.mxu0
  %v2562 = vadd.f32 %v2393, %v2561
  %2563 = vmatmul.bf16.gmra.mxu0 %v2136
  %v2564 = vpop.f32.mrf.mxu0
  %v2565 = vadd.f32 %v2396, %v2564
  %v2566 = vpop.f32.mrf.mxu0
  %v2567 = vadd.f32 %v2398, %v2566
  %2568 = vmatmul.bf16.gmra.mxu0 %v2139
  %v2569 = vpop.f32.mrf.mxu0
  %v2570 = vadd.f32 %v2401, %v2569
  %v2571 = vpop.f32.mrf.mxu0
  %v2572 = vadd.f32 %v2403, %v2571
  %2573 = vmatmul.bf16.gmra.mxu0 %v2142
  %v2574 = vpop.f32.mrf.mxu0
  %v2575 = vadd.f32 %v2406, %v2574
  %v2576 = vpop.f32.mrf.mxu0
  %v2577 = vadd.f32 %v2408, %v2576
  %2578 = vmatmul.bf16.gmra.mxu0 %v2145
  %v2579 = vpop.f32.mrf.mxu0
  %v2580 = vadd.f32 %v2411, %v2579
  %v2581 = vpop.f32.mrf.mxu0
  %v2582 = vadd.f32 %v2413, %v2581
  %2583 = vmatmul.bf16.gmra.mxu0 %v2148
  %v2584 = vpop.f32.mrf.mxu0
  %v2585 = vadd.f32 %v2416, %v2584
  %v2586 = vpop.f32.mrf.mxu0
  %v2587 = vadd.f32 %v2418, %v2586
  %2588 = vmatmul.bf16.gmra.mxu0 %v2151
  %v2589 = vpop.f32.mrf.mxu0
  %v2590 = vadd.f32 %v2421, %v2589
  %v2591 = vpop.f32.mrf.mxu0
  %v2592 = vadd.f32 %v2423, %v2591
  %2593 = vmatmul.bf16.gmra.mxu0 %v2154
  %v2594 = vpop.f32.mrf.mxu0
  %v2595 = vadd.f32 %v2426, %v2594
  %v2596 = vpop.f32.mrf.mxu0
  %v2597 = vadd.f32 %v2428, %v2596
  %2598 = vmatmul.bf16.gmra.mxu0 %v2157
  %v2599 = vpop.f32.mrf.mxu0
  %v2600 = vadd.f32 %v2431, %v2599
  %v2601 = vpop.f32.mrf.mxu0
  %v2602 = vadd.f32 %v2433, %v2601
  %2603 = vmatmul.bf16.gmra.mxu0 %v2160
  %v2604 = vpop.f32.mrf.mxu0
  %v2605 = vadd.f32 %v2436, %v2604
  %v2606 = vpop.f32.mrf.mxu0
  %v2607 = vadd.f32 %v2438, %v2606
  %2608 = vmatmul.bf16.gmra.mxu0 %v2163
  %v2609 = vpop.f32.mrf.mxu0
  %v2610 = vadd.f32 %v2441, %v2609
  %v2611 = vpop.f32.mrf.mxu0
  %v2612 = vadd.f32 %v2443, %v2611
  %2613 = vmatmul.bf16.gmra.mxu0 %v2166
  %v2614 = vpop.f32.mrf.mxu0
  %v2615 = vadd.f32 %v2446, %v2614
  %v2616 = vpop.f32.mrf.mxu0
  %v2617 = vadd.f32 %v2448, %v2616
  %2618 = vmatmul.bf16.gmra.mxu0 %v2169
  %v2619 = vpop.f32.mrf.mxu0
  %v2620 = vadd.f32 %v2451, %v2619
  %v2621 = vpop.f32.mrf.mxu0
  %v2622 = vadd.f32 %v2453, %v2621
  %2623 = vmatmul.bf16.gmra.mxu0 %v2172
  %v2624 = vpop.f32.mrf.mxu0
  %v2625 = vadd.f32 %v2456, %v2624
  %v2626 = vpop.f32.mrf.mxu0
  %v2627 = vadd.f32 %v2458, %v2626
  %2628 = vmatmul.bf16.gmra.mxu0 %v2175
  %v2629 = vpop.f32.mrf.mxu0
  %v2630 = vadd.f32 %v2461, %v2629
  %v2631 = vpop.f32.mrf.mxu0
  %v2632 = vadd.f32 %v2463, %v2631
  %2633 = vmatmul.bf16.gmra.mxu0 %v2178
  %v2634 = vpop.f32.mrf.mxu0
  %v2635 = vadd.f32 %v2466, %v2634
  %v2636 = vpop.f32.mrf.mxu0
  %v2637 = vadd.f32 %v2468, %v2636
  %2638 = vmatmul.bf16.gmra.mxu0 %v2181
  %v2639 = vpop.f32.mrf.mxu0
  %v2640 = vadd.f32 %v2471, %v2639
  %v2641 = vpop.f32.mrf.mxu0
  %v2642 = vadd.f32 %v2473, %v2641
  %2643 = vmatmul.bf16.gmra.mxu0 %v2184
  %v2644 = vpop.f32.mrf.mxu0
  %v2645 = vadd.f32 %v2476, %v2644
  %v2646 = vpop.f32.mrf.mxu0
  %v2647 = vadd.f32 %v2478, %v2646
  %2648 = vmatmul.bf16.gmra.mxu0 %v2187
  %v2649 = vpop.f32.mrf.mxu0
  %v2650 = vadd.f32 %v2481, %v2649
  %v2651 = vpop.f32.mrf.mxu0
  %v2652 = vadd.f32 %v2483, %v2651
  %2653 = vmatmul.bf16.gmra.mxu0 %v2142
  %v2654 = vpop.f32.mrf.mxu0
  %v2655 = vadd.f32 %v2486, %v2654
  %v2656 = vpop.f32.mrf.mxu0
  %v2657 = vadd.f32 %v2488, %v2656
  %2658 = vdwg.mxu0
  %v2659 = vsel %vm1678, %v2500, 0.0
  %v2660 = vsel %vm1678, %v2502, 0.0
  %v2661 = vadd.f32 %v2659, %v2660
  %v2662 = vsel %vm1678, %v2505, 0.0
  %v2663 = vadd.f32 %v2661, %v2662
  %v2664 = vsel %vm1678, %v2507, 0.0
  %v2665 = vadd.f32 %v2663, %v2664
  %v2666 = vsel %vm1678, %v2510, 0.0
  %v2667 = vadd.f32 %v2665, %v2666
  %v2668 = vsel %vm1678, %v2512, 0.0
  %v2669 = vadd.f32 %v2667, %v2668
  %v2670 = vsel %vm1678, %v2515, 0.0
  %v2671 = vadd.f32 %v2669, %v2670
  %v2672 = vsel %vm1678, %v2517, 0.0
  %v2673 = vadd.f32 %v2671, %v2672
  %v2674 = vsel %vm1678, %v2520, 0.0
  %v2675 = vadd.f32 %v2673, %v2674
  %v2676 = vsel %vm1678, %v2522, 0.0
  %v2677 = vadd.f32 %v2675, %v2676
  %v2678 = vsel %vm1678, %v2525, 0.0
  %v2679 = vadd.f32 %v2677, %v2678
  %v2680 = vsel %vm1678, %v2527, 0.0
  %v2681 = vadd.f32 %v2679, %v2680
  %v2682 = vsel %vm1678, %v2530, 0.0
  %v2683 = vadd.f32 %v2681, %v2682
  %v2684 = vsel %vm1678, %v2532, 0.0
  %v2685 = vadd.f32 %v2683, %v2684
  %v2686 = vsel %vm1678, %v2535, 0.0
  %v2687 = vadd.f32 %v2685, %v2686
  %v2688 = vsel %vm1678, %v2537, 0.0
  %v2689 = vadd.f32 %v2687, %v2688
  %v2690 = vsel %vm1678, %v2540, 0.0
  %v2691 = vadd.f32 %v2689, %v2690
  %v2692 = vsel %vm1678, %v2542, 0.0
  %v2693 = vadd.f32 %v2691, %v2692
  %v2694 = vsel %vm1678, %v2545, 0.0
  %v2695 = vadd.f32 %v2693, %v2694
  %v2696 = vsel %vm1678, %v2547, 0.0
  %v2697 = vadd.f32 %v2695, %v2696
  %v2698 = vsel %vm1678, %v2550, 0.0
  %v2699 = vadd.f32 %v2697, %v2698
  %v2700 = vsel %vm1678, %v2552, 0.0
  %v2701 = vadd.f32 %v2699, %v2700
  %v2702 = vsel %vm1678, %v2555, 0.0
  %v2703 = vadd.f32 %v2701, %v2702
  %v2704 = vsel %vm1678, %v2557, 0.0
  %v2705 = vadd.f32 %v2703, %v2704
  %v2706 = vsel %vm1678, %v2560, 0.0
  %v2707 = vadd.f32 %v2705, %v2706
  %v2708 = vsel %vm1678, %v2562, 0.0
  %v2709 = vadd.f32 %v2707, %v2708
  %v2710 = vsel %vm1678, %v2565, 0.0
  %v2711 = vadd.f32 %v2709, %v2710
  %v2712 = vsel %vm1678, %v2567, 0.0
  %v2713 = vadd.f32 %v2711, %v2712
  %v2714 = vsel %vm1678, %v2570, 0.0
  %v2715 = vadd.f32 %v2713, %v2714
  %v2716 = vsel %vm1678, %v2572, 0.0
  %v2717 = vadd.f32 %v2715, %v2716
  %v2718 = vsel %vm1678, %v2575, 0.0
  %v2719 = vadd.f32 %v2717, %v2718
  %v2720 = vsel %vm1678, %v2577, 0.0
  %v2721 = vadd.f32 %v2719, %v2720
  %v2722 = vsel %vm1678, %v2580, 0.0
  %v2723 = vadd.f32 %v2721, %v2722
  %v2724 = vsel %vm1678, %v2582, 0.0
  %v2725 = vadd.f32 %v2723, %v2724
  %v2726 = vsel %vm1678, %v2585, 0.0
  %v2727 = vadd.f32 %v2725, %v2726
  %v2728 = vsel %vm1678, %v2587, 0.0
  %v2729 = vadd.f32 %v2727, %v2728
  %v2730 = vsel %vm1678, %v2590, 0.0
  %v2731 = vadd.f32 %v2729, %v2730
  %v2732 = vsel %vm1678, %v2592, 0.0
  %v2733 = vadd.f32 %v2731, %v2732
  %v2734 = vsel %vm1678, %v2595, 0.0
  %v2735 = vadd.f32 %v2733, %v2734
  %v2736 = vsel %vm1678, %v2597, 0.0
  %v2737 = vadd.f32 %v2735, %v2736
  %v2738 = vsel %vm1678, %v2600, 0.0
  %v2739 = vadd.f32 %v2737, %v2738
  %v2740 = vsel %vm1678, %v2602, 0.0
  %v2741 = vadd.f32 %v2739, %v2740
  %v2742 = vsel %vm1678, %v2605, 0.0
  %v2743 = vadd.f32 %v2741, %v2742
  %v2744 = vsel %vm1678, %v2607, 0.0
  %v2745 = vadd.f32 %v2743, %v2744
  %v2746 = vsel %vm1678, %v2610, 0.0
  %v2747 = vadd.f32 %v2745, %v2746
  %v2748 = vsel %vm1678, %v2612, 0.0
  %v2749 = vadd.f32 %v2747, %v2748
  %v2750 = vsel %vm1678, %v2615, 0.0
  %v2751 = vadd.f32 %v2749, %v2750
  %v2752 = vsel %vm1678, %v2617, 0.0
  %v2753 = vadd.f32 %v2751, %v2752
  %v2754 = vsel %vm1678, %v2620, 0.0
  %v2755 = vadd.f32 %v2753, %v2754
  %v2756 = vsel %vm1678, %v2622, 0.0
  %v2757 = vadd.f32 %v2755, %v2756
  %v2758 = vsel %vm1678, %v2625, 0.0
  %v2759 = vadd.f32 %v2757, %v2758
  %v2760 = vsel %vm1678, %v2627, 0.0
  %v2761 = vadd.f32 %v2759, %v2760
  %v2762 = vsel %vm1678, %v2630, 0.0
  %v2763 = vadd.f32 %v2761, %v2762
  %v2764 = vsel %vm1678, %v2632, 0.0
  %v2765 = vadd.f32 %v2763, %v2764
  %v2766 = vsel %vm1678, %v2635, 0.0
  %v2767 = vadd.f32 %v2765, %v2766
  %v2768 = vsel %vm1678, %v2637, 0.0
  %v2769 = vadd.f32 %v2767, %v2768
  %v2770 = vsel %vm1678, %v2640, 0.0
  %v2771 = vadd.f32 %v2769, %v2770
  %v2772 = vsel %vm1678, %v2642, 0.0
  %v2773 = vadd.f32 %v2771, %v2772
  %v2774 = vsel %vm1678, %v2645, 0.0
  %v2775 = vadd.f32 %v2773, %v2774
  %v2776 = vsel %vm1678, %v2647, 0.0
  %v2777 = vadd.f32 %v2775, %v2776
  %v2778 = vsel %vm1678, %v2650, 0.0
  %v2779 = vadd.f32 %v2777, %v2778
  %v2780 = vsel %vm1678, %v2652, 0.0
  %v2781 = vadd.f32 %v2779, %v2780
  %v2782 = vsel %vm1678, %v2655, 0.0
  %v2783 = vadd.f32 %v2781, %v2782
  %v2784 = vsel %vm1678, %v2657, 0.0
  %v2785 = vadd.f32 %v2783, %v2784
  %v2786 = vrot.slane %v2785, 4
  %v2787 = vadd.f32 %v2785, %v2786
  %v2788 = vrot.slane %v2787, 2
  %v2789 = vadd.f32 %v2787, %v2788
  %v2790 = vrot.slane %v2789, 1
  %v2791 = vadd.f32 %v2789, %v2790
  %v2792 = vrcp.pop 512.0
  %v2793 = vmul.f32 512.0, %v2792
  %v2794 = vsub.f32 1.0, %v2793
  %v2795 = vmul.f32 %v2792, %v2794
  %v2796 = vadd.f32 %v2792, %v2795
  %vm2797 = vweird.f32 %v2792
  %v2798 = vsel %vm2797, %v2792, %v2796
  %v2799 = vmul.f32 %v2791, %v2798
  %v2800 = vsub.f32 %v2500, %v2799
  %v2801 = vsub.f32 %v2502, %v2799
  %v2802 = vsub.f32 %v2505, %v2799
  %v2803 = vsub.f32 %v2507, %v2799
  %v2804 = vsub.f32 %v2510, %v2799
  %v2805 = vsub.f32 %v2512, %v2799
  %v2806 = vsub.f32 %v2515, %v2799
  %v2807 = vsub.f32 %v2517, %v2799
  %v2808 = vsub.f32 %v2520, %v2799
  %v2809 = vsub.f32 %v2522, %v2799
  %v2810 = vsub.f32 %v2525, %v2799
  %v2811 = vsub.f32 %v2527, %v2799
  %v2812 = vsub.f32 %v2530, %v2799
  %v2813 = vsub.f32 %v2532, %v2799
  %v2814 = vsub.f32 %v2535, %v2799
  %v2815 = vsub.f32 %v2537, %v2799
  %v2816 = vsub.f32 %v2540, %v2799
  %v2817 = vsub.f32 %v2542, %v2799
  %v2818 = vsub.f32 %v2545, %v2799
  %v2819 = vsub.f32 %v2547, %v2799
  %v2820 = vsub.f32 %v2550, %v2799
  %v2821 = vsub.f32 %v2552, %v2799
  %v2822 = vsub.f32 %v2555, %v2799
  %v2823 = vsub.f32 %v2557, %v2799
  %v2824 = vsub.f32 %v2560, %v2799
  %v2825 = vsub.f32 %v2562, %v2799
  %v2826 = vsub.f32 %v2565, %v2799
  %v2827 = vsub.f32 %v2567, %v2799
  %v2828 = vsub.f32 %v2570, %v2799
  %v2829 = vsub.f32 %v2572, %v2799
  %v2830 = vsub.f32 %v2575, %v2799
  %v2831 = vsub.f32 %v2577, %v2799
  %v2832 = vsub.f32 %v2580, %v2799
  %v2833 = vsub.f32 %v2582, %v2799
  %v2834 = vsub.f32 %v2585, %v2799
  %v2835 = vsub.f32 %v2587, %v2799
  %v2836 = vsub.f32 %v2590, %v2799
  %v2837 = vsub.f32 %v2592, %v2799
  %v2838 = vsub.f32 %v2595, %v2799
  %v2839 = vsub.f32 %v2597, %v2799
  %v2840 = vsub.f32 %v2600, %v2799
  %v2841 = vsub.f32 %v2602, %v2799
  %v2842 = vsub.f32 %v2605, %v2799
  %v2843 = vsub.f32 %v2607, %v2799
  %v2844 = vsub.f32 %v2610, %v2799
  %v2845 = vsub.f32 %v2612, %v2799
  %v2846 = vsub.f32 %v2615, %v2799
  %v2847 = vsub.f32 %v2617, %v2799
  %v2848 = vsub.f32 %v2620, %v2799
  %v2849 = vsub.f32 %v2622, %v2799
  %v2850 = vsub.f32 %v2625, %v2799
  %v2851 = vsub.f32 %v2627, %v2799
  %v2852 = vsub.f32 %v2630, %v2799
  %v2853 = vsub.f32 %v2632, %v2799
  %v2854 = vsub.f32 %v2635, %v2799
  %v2855 = vsub.f32 %v2637, %v2799
  %v2856 = vsub.f32 %v2640, %v2799
  %v2857 = vsub.f32 %v2642, %v2799
  %v2858 = vsub.f32 %v2645, %v2799
  %v2859 = vsub.f32 %v2647, %v2799
  %v2860 = vsub.f32 %v2650, %v2799
  %v2861 = vsub.f32 %v2652, %v2799
  %v2862 = vsub.f32 %v2655, %v2799
  %v2863 = vsub.f32 %v2657, %v2799
  %v2864 = vmul.f32 %v2800, %v2800
  %v2865 = vmul.f32 %v2801, %v2801
  %v2866 = vmul.f32 %v2802, %v2802
  %v2867 = vmul.f32 %v2803, %v2803
  %v2868 = vmul.f32 %v2804, %v2804
  %v2869 = vmul.f32 %v2805, %v2805
  %v2870 = vmul.f32 %v2806, %v2806
  %v2871 = vmul.f32 %v2807, %v2807
  %v2872 = vmul.f32 %v2808, %v2808
  %v2873 = vmul.f32 %v2809, %v2809
  %v2874 = vmul.f32 %v2810, %v2810
  %v2875 = vmul.f32 %v2811, %v2811
  %v2876 = vmul.f32 %v2812, %v2812
  %v2877 = vmul.f32 %v2813, %v2813
  %v2878 = vmul.f32 %v2814, %v2814
  %v2879 = vmul.f32 %v2815, %v2815
  %v2880 = vmul.f32 %v2816, %v2816
  %v2881 = vmul.f32 %v2817, %v2817
  %v2882 = vmul.f32 %v2818, %v2818
  %v2883 = vmul.f32 %v2819, %v2819
  %v2884 = vmul.f32 %v2820, %v2820
  %v2885 = vmul.f32 %v2821, %v2821
  %v2886 = vmul.f32 %v2822, %v2822
  %v2887 = vmul.f32 %v2823, %v2823
  %v2888 = vmul.f32 %v2824, %v2824
  %v2889 = vmul.f32 %v2825, %v2825
  %v2890 = vmul.f32 %v2826, %v2826
  %v2891 = vmul.f32 %v2827, %v2827
  %v2892 = vmul.f32 %v2828, %v2828
  %v2893 = vmul.f32 %v2829, %v2829
  %v2894 = vmul.f32 %v2830, %v2830
  %v2895 = vmul.f32 %v2831, %v2831
  %v2896 = vmul.f32 %v2832, %v2832
  %v2897 = vmul.f32 %v2833, %v2833
  %v2898 = vmul.f32 %v2834, %v2834
  %v2899 = vmul.f32 %v2835, %v2835
  %v2900 = vmul.f32 %v2836, %v2836
  %v2901 = vmul.f32 %v2837, %v2837
  %v2902 = vmul.f32 %v2838, %v2838
  %v2903 = vmul.f32 %v2839, %v2839
  %v2904 = vmul.f32 %v2840, %v2840
  %v2905 = vmul.f32 %v2841, %v2841
  %v2906 = vmul.f32 %v2842, %v2842
  %v2907 = vmul.f32 %v2843, %v2843
  %v2908 = vmul.f32 %v2844, %v2844
  %v2909 = vmul.f32 %v2845, %v2845
  %v2910 = vmul.f32 %v2846, %v2846
  %v2911 = vmul.f32 %v2847, %v2847
  %v2912 = vmul.f32 %v2848, %v2848
  %v2913 = vmul.f32 %v2849, %v2849
  %v2914 = vmul.f32 %v2850, %v2850
  %v2915 = vmul.f32 %v2851, %v2851
  %v2916 = vmul.f32 %v2852, %v2852
  %v2917 = vmul.f32 %v2853, %v2853
  %v2918 = vmul.f32 %v2854, %v2854
  %v2919 = vmul.f32 %v2855, %v2855
  %v2920 = vmul.f32 %v2856, %v2856
  %v2921 = vmul.f32 %v2857, %v2857
  %v2922 = vmul.f32 %v2858, %v2858
  %v2923 = vmul.f32 %v2859, %v2859
  %v2924 = vmul.f32 %v2860, %v2860
  %v2925 = vmul.f32 %v2861, %v2861
  %v2926 = vmul.f32 %v2862, %v2862
  %v2927 = vmul.f32 %v2863, %v2863
  %v2928 = vsel %vm1678, %v2864, 0.0
  %v2929 = vsel %vm1678, %v2865, 0.0
  %v2930 = vadd.f32 %v2928, %v2929
  %v2931 = vsel %vm1678, %v2866, 0.0
  %v2932 = vadd.f32 %v2930, %v2931
  %v2933 = vsel %vm1678, %v2867, 0.0
  %v2934 = vadd.f32 %v2932, %v2933
  %v2935 = vsel %vm1678, %v2868, 0.0
  %v2936 = vadd.f32 %v2934, %v2935
  %v2937 = vsel %vm1678, %v2869, 0.0
  %v2938 = vadd.f32 %v2936, %v2937
  %v2939 = vsel %vm1678, %v2870, 0.0
  %v2940 = vadd.f32 %v2938, %v2939
  %v2941 = vsel %vm1678, %v2871, 0.0
  %v2942 = vadd.f32 %v2940, %v2941
  %v2943 = vsel %vm1678, %v2872, 0.0
  %v2944 = vadd.f32 %v2942, %v2943
  %v2945 = vsel %vm1678, %v2873, 0.0
  %v2946 = vadd.f32 %v2944, %v2945
  %v2947 = vsel %vm1678, %v2874, 0.0
  %v2948 = vadd.f32 %v2946, %v2947
  %v2949 = vsel %vm1678, %v2875, 0.0
  %v2950 = vadd.f32 %v2948, %v2949
  %v2951 = vsel %vm1678, %v2876, 0.0
  %v2952 = vadd.f32 %v2950, %v2951
  %v2953 = vsel %vm1678, %v2877, 0.0
  %v2954 = vadd.f32 %v2952, %v2953
  %v2955 = vsel %vm1678, %v2878, 0.0
  %v2956 = vadd.f32 %v2954, %v2955
  %v2957 = vsel %vm1678, %v2879, 0.0
  %v2958 = vadd.f32 %v2956, %v2957
  %v2959 = vsel %vm1678, %v2880, 0.0
  %v2960 = vadd.f32 %v2958, %v2959
  %v2961 = vsel %vm1678, %v2881, 0.0
  %v2962 = vadd.f32 %v2960, %v2961
  %v2963 = vsel %vm1678, %v2882, 0.0
  %v2964 = vadd.f32 %v2962, %v2963
  %v2965 = vsel %vm1678, %v2883, 0.0
  %v2966 = vadd.f32 %v2964, %v2965
  %v2967 = vsel %vm1678, %v2884, 0.0
  %v2968 = vadd.f32 %v2966, %v2967
  %v2969 = vsel %vm1678, %v2885, 0.0
  %v2970 = vadd.f32 %v2968, %v2969
  %v2971 = vsel %vm1678, %v2886, 0.0
  %v2972 = vadd.f32 %v2970, %v2971
  %v2973 = vsel %vm1678, %v2887, 0.0
  %v2974 = vadd.f32 %v2972, %v2973
  %v2975 = vsel %vm1678, %v2888, 0.0
  %v2976 = vadd.f32 %v2974, %v2975
  %v2977 = vsel %vm1678, %v2889, 0.0
  %v2978 = vadd.f32 %v2976, %v2977
  %v2979 = vsel %vm1678, %v2890, 0.0
  %v2980 = vadd.f32 %v2978, %v2979
  %v2981 = vsel %vm1678, %v2891, 0.0
  %v2982 = vadd.f32 %v2980, %v2981
  %v2983 = vsel %vm1678, %v2892, 0.0
  %v2984 = vadd.f32 %v2982, %v2983
  %v2985 = vsel %vm1678, %v2893, 0.0
  %v2986 = vadd.f32 %v2984, %v2985
  %v2987 = vsel %vm1678, %v2894, 0.0
  %v2988 = vadd.f32 %v2986, %v2987
  %v2989 = vsel %vm1678, %v2895, 0.0
  %v2990 = vadd.f32 %v2988, %v2989
  %v2991 = vsel %vm1678, %v2896, 0.0
  %v2992 = vadd.f32 %v2990, %v2991
  %v2993 = vsel %vm1678, %v2897, 0.0
  %v2994 = vadd.f32 %v2992, %v2993
  %v2995 = vsel %vm1678, %v2898, 0.0
  %v2996 = vadd.f32 %v2994, %v2995
  %v2997 = vsel %vm1678, %v2899, 0.0
  %v2998 = vadd.f32 %v2996, %v2997
  %v2999 = vsel %vm1678, %v2900, 0.0
  %v3000 = vadd.f32 %v2998, %v2999
  %v3001 = vsel %vm1678, %v2901, 0.0
  %v3002 = vadd.f32 %v3000, %v3001
  %v3003 = vsel %vm1678, %v2902, 0.0
  %v3004 = vadd.f32 %v3002, %v3003
  %v3005 = vsel %vm1678, %v2903, 0.0
  %v3006 = vadd.f32 %v3004, %v3005
  %v3007 = vsel %vm1678, %v2904, 0.0
  %v3008 = vadd.f32 %v3006, %v3007
  %v3009 = vsel %vm1678, %v2905, 0.0
  %v3010 = vadd.f32 %v3008, %v3009
  %v3011 = vsel %vm1678, %v2906, 0.0
  %v3012 = vadd.f32 %v3010, %v3011
  %v3013 = vsel %vm1678, %v2907, 0.0
  %v3014 = vadd.f32 %v3012, %v3013
  %v3015 = vsel %vm1678, %v2908, 0.0
  %v3016 = vadd.f32 %v3014, %v3015
  %v3017 = vsel %vm1678, %v2909, 0.0
  %v3018 = vadd.f32 %v3016, %v3017
  %v3019 = vsel %vm1678, %v2910, 0.0
  %v3020 = vadd.f32 %v3018, %v3019
  %v3021 = vsel %vm1678, %v2911, 0.0
  %v3022 = vadd.f32 %v3020, %v3021
  %v3023 = vsel %vm1678, %v2912, 0.0
  %v3024 = vadd.f32 %v3022, %v3023
  %v3025 = vsel %vm1678, %v2913, 0.0
  %v3026 = vadd.f32 %v3024, %v3025
  %v3027 = vsel %vm1678, %v2914, 0.0
  %v3028 = vadd.f32 %v3026, %v3027
  %v3029 = vsel %vm1678, %v2915, 0.0
  %v3030 = vadd.f32 %v3028, %v3029
  %v3031 = vsel %vm1678, %v2916, 0.0
  %v3032 = vadd.f32 %v3030, %v3031
  %v3033 = vsel %vm1678, %v2917, 0.0
  %v3034 = vadd.f32 %v3032, %v3033
  %v3035 = vsel %vm1678, %v2918, 0.0
  %v3036 = vadd.f32 %v3034, %v3035
  %v3037 = vsel %vm1678, %v2919, 0.0
  %v3038 = vadd.f32 %v3036, %v3037
  %v3039 = vsel %vm1678, %v2920, 0.0
  %v3040 = vadd.f32 %v3038, %v3039
  %v3041 = vsel %vm1678, %v2921, 0.0
  %v3042 = vadd.f32 %v3040, %v3041
  %v3043 = vsel %vm1678, %v2922, 0.0
  %v3044 = vadd.f32 %v3042, %v3043
  %v3045 = vsel %vm1678, %v2923, 0.0
  %v3046 = vadd.f32 %v3044, %v3045
  %v3047 = vsel %vm1678, %v2924, 0.0
  %v3048 = vadd.f32 %v3046, %v3047
  %v3049 = vsel %vm1678, %v2925, 0.0
  %v3050 = vadd.f32 %v3048, %v3049
  %v3051 = vsel %vm1678, %v2926, 0.0
  %v3052 = vadd.f32 %v3050, %v3051
  %v3053 = vsel %vm1678, %v2927, 0.0
  %v3054 = vadd.f32 %v3052, %v3053
  %v3055 = vrot.slane %v3054, 4
  %v3056 = vadd.f32 %v3054, %v3055
  %v3057 = vrot.slane %v3056, 2
  %v3058 = vadd.f32 %v3056, %v3057
  %v3059 = vrot.slane %v3058, 1
  %v3060 = vadd.f32 %v3058, %v3059
  %v3061 = vmul.f32 %v3060, %v2798
  %v3062 = vld [vmem:[%s3] sm:$0x1]
  %v3063 = vadd.f32 %v3061, 1e-05
  %v3064 = vrsqrt.pop %v3063
  %v3065 = vmul.f32 %v3064, %v3063
  %v3066 = vmul.f32 %v3065, %v3064
  %v3067 = vmul.f32 0.5, %v3066
  %v3068 = vsub.f32 1.5, %v3067
  %v3069 = vmul.f32 %v3064, %v3068
  %vm3070 = vweird.f32 %v3063
  %vm3071 = vweird.f32 %v3064
  %vm3072 = vmor %vm3070, %vm3071
  %v3073 = vsel %vm3072, %v3064, %v3069
  %v3074 = vmul.f32 %v3062, %v3073
  %v3076 = vperm.slane %v3074, 0
  %v3078 = vmul.f32 %v2800, %v3076
  %v3079 = vmul.f32 %v2801, %v3076
  %v3080 = vmul.f32 %v2802, %v3076
  %v3081 = vmul.f32 %v2803, %v3076
  %v3082 = vmul.f32 %v2804, %v3076
  %v3083 = vmul.f32 %v2805, %v3076
  %v3084 = vmul.f32 %v2806, %v3076
  %v3085 = vmul.f32 %v2807, %v3076
  %v3086 = vmul.f32 %v2808, %v3076
  %v3087 = vmul.f32 %v2809, %v3076
  %v3088 = vmul.f32 %v2810, %v3076
  %v3089 = vmul.f32 %v2811, %v3076
  %v3090 = vmul.f32 %v2812, %v3076
  %v3091 = vmul.f32 %v2813, %v3076
  %v3092 = vmul.f32 %v2814, %v3076
  %v3093 = vmul.f32 %v2815, %v3076
  %v3094 = vmul.f32 %v2816, %v3076
  %v3095 = vmul.f32 %v2817, %v3076
  %v3096 = vmul.f32 %v2818, %v3076
  %v3097 = vmul.f32 %v2819, %v3076
  %v3098 = vmul.f32 %v2820, %v3076
  %v3099 = vmul.f32 %v2821, %v3076
  %v3100 = vmul.f32 %v2822, %v3076
  %v3101 = vmul.f32 %v2823, %v3076
  %v3102 = vmul.f32 %v2824, %v3076
  %v3103 = vmul.f32 %v2825, %v3076
  %v3104 = vmul.f32 %v2826, %v3076
  %v3105 = vmul.f32 %v2827, %v3076
  %v3106 = vmul.f32 %v2828, %v3076
  %v3107 = vmul.f32 %v2829, %v3076
  %v3108 = vmul.f32 %v2830, %v3076
  %v3109 = vmul.f32 %v2831, %v3076
  %v3110 = vmul.f32 %v2832, %v3076
  %v3111 = vmul.f32 %v2833, %v3076
  %v3112 = vmul.f32 %v2834, %v3076
  %v3113 = vmul.f32 %v2835, %v3076
  %v3114 = vmul.f32 %v2836, %v3076
  %v3115 = vmul.f32 %v2837, %v3076
  %v3116 = vmul.f32 %v2838, %v3076
  %v3117 = vmul.f32 %v2839, %v3076
  %v3118 = vmul.f32 %v2840, %v3076
  %v3119 = vmul.f32 %v2841, %v3076
  %v3120 = vmul.f32 %v2842, %v3076
  %v3121 = vmul.f32 %v2843, %v3076
  %v3122 = vmul.f32 %v2844, %v3076
  %v3123 = vmul.f32 %v2845, %v3076
  %v3124 = vmul.f32 %v2846, %v3076
  %v3125 = vmul.f32 %v2847, %v3076
  %v3126 = vmul.f32 %v2848, %v3076
  %v3127 = vmul.f32 %v2849, %v3076
  %v3128 = vmul.f32 %v2850, %v3076
  %v3129 = vmul.f32 %v2851, %v3076
  %v3130 = vmul.f32 %v2852, %v3076
  %v3131 = vmul.f32 %v2853, %v3076
  %v3132 = vmul.f32 %v2854, %v3076
  %v3133 = vmul.f32 %v2855, %v3076
  %v3134 = vmul.f32 %v2856, %v3076
  %v3135 = vmul.f32 %v2857, %v3076
  %v3136 = vmul.f32 %v2858, %v3076
  %v3137 = vmul.f32 %v2859, %v3076
  %v3138 = vmul.f32 %v2860, %v3076
  %v3139 = vmul.f32 %v2861, %v3076
  %v3140 = vmul.f32 %v2862, %v3076
  %v3141 = vmul.f32 %v2863, %v3076
  %v3142 = vld [vmem:[%s4] sm:$0x1]
  %v3144 = vperm.slane %v3142, 0
  %v3146 = vadd.f32 %v3078, %v3144
  %v3147 = vadd.f32 %v3079, %v3144
  %v3148 = vadd.f32 %v3080, %v3144
  %v3149 = vadd.f32 %v3081, %v3144
  %v3150 = vadd.f32 %v3082, %v3144
  %v3151 = vadd.f32 %v3083, %v3144
  %v3152 = vadd.f32 %v3084, %v3144
  %v3153 = vadd.f32 %v3085, %v3144
  %v3154 = vadd.f32 %v3086, %v3144
  %v3155 = vadd.f32 %v3087, %v3144
  %v3156 = vadd.f32 %v3088, %v3144
  %v3157 = vadd.f32 %v3089, %v3144
  %v3158 = vadd.f32 %v3090, %v3144
  %v3159 = vadd.f32 %v3091, %v3144
  %v3160 = vadd.f32 %v3092, %v3144
  %v3161 = vadd.f32 %v3093, %v3144
  %v3162 = vadd.f32 %v3094, %v3144
  %v3163 = vadd.f32 %v3095, %v3144
  %v3164 = vadd.f32 %v3096, %v3144
  %v3165 = vadd.f32 %v3097, %v3144
  %v3166 = vadd.f32 %v3098, %v3144
  %v3167 = vadd.f32 %v3099, %v3144
  %v3168 = vadd.f32 %v3100, %v3144
  %v3169 = vadd.f32 %v3101, %v3144
  %v3170 = vadd.f32 %v3102, %v3144
  %v3171 = vadd.f32 %v3103, %v3144
  %v3172 = vadd.f32 %v3104, %v3144
  %v3173 = vadd.f32 %v3105, %v3144
  %v3174 = vadd.f32 %v3106, %v3144
  %v3175 = vadd.f32 %v3107, %v3144
  %v3176 = vadd.f32 %v3108, %v3144
  %v3177 = vadd.f32 %v3109, %v3144
  %v3178 = vadd.f32 %v3110, %v3144
  %v3179 = vadd.f32 %v3111, %v3144
  %v3180 = vadd.f32 %v3112, %v3144
  %v3181 = vadd.f32 %v3113, %v3144
  %v3182 = vadd.f32 %v3114, %v3144
  %v3183 = vadd.f32 %v3115, %v3144
  %v3184 = vadd.f32 %v3116, %v3144
  %v3185 = vadd.f32 %v3117, %v3144
  %v3186 = vadd.f32 %v3118, %v3144
  %v3187 = vadd.f32 %v3119, %v3144
  %v3188 = vadd.f32 %v3120, %v3144
  %v3189 = vadd.f32 %v3121, %v3144
  %v3190 = vadd.f32 %v3122, %v3144
  %v3191 = vadd.f32 %v3123, %v3144
  %v3192 = vadd.f32 %v3124, %v3144
  %v3193 = vadd.f32 %v3125, %v3144
  %v3194 = vadd.f32 %v3126, %v3144
  %v3195 = vadd.f32 %v3127, %v3144
  %v3196 = vadd.f32 %v3128, %v3144
  %v3197 = vadd.f32 %v3129, %v3144
  %v3198 = vadd.f32 %v3130, %v3144
  %v3199 = vadd.f32 %v3131, %v3144
  %v3200 = vadd.f32 %v3132, %v3144
  %v3201 = vadd.f32 %v3133, %v3144
  %v3202 = vadd.f32 %v3134, %v3144
  %v3203 = vadd.f32 %v3135, %v3144
  %v3204 = vadd.f32 %v3136, %v3144
  %v3205 = vadd.f32 %v3137, %v3144
  %v3206 = vadd.f32 %v3138, %v3144
  %v3207 = vadd.f32 %v3139, %v3144
  %v3208 = vadd.f32 %v3140, %v3144
  %v3209 = vadd.f32 %v3141, %v3144
  %v3210 = vmax.f32 %v3146, 0.0
  %v3211 = vmax.f32 %v3147, 0.0
  %v3212 = vmax.f32 %v3148, 0.0
  %v3213 = vmax.f32 %v3149, 0.0
  %v3214 = vmax.f32 %v3150, 0.0
  %v3215 = vmax.f32 %v3151, 0.0
  %v3216 = vmax.f32 %v3152, 0.0
  %v3217 = vmax.f32 %v3153, 0.0
  %v3218 = vmax.f32 %v3154, 0.0
  %v3219 = vmax.f32 %v3155, 0.0
  %v3220 = vmax.f32 %v3156, 0.0
  %v3221 = vmax.f32 %v3157, 0.0
  %v3222 = vmax.f32 %v3158, 0.0
  %v3223 = vmax.f32 %v3159, 0.0
  %v3224 = vmax.f32 %v3160, 0.0
  %v3225 = vmax.f32 %v3161, 0.0
  %v3226 = vmax.f32 %v3162, 0.0
  %v3227 = vmax.f32 %v3163, 0.0
  %v3228 = vmax.f32 %v3164, 0.0
  %v3229 = vmax.f32 %v3165, 0.0
  %v3230 = vmax.f32 %v3166, 0.0
  %v3231 = vmax.f32 %v3167, 0.0
  %v3232 = vmax.f32 %v3168, 0.0
  %v3233 = vmax.f32 %v3169, 0.0
  %v3234 = vmax.f32 %v3170, 0.0
  %v3235 = vmax.f32 %v3171, 0.0
  %v3236 = vmax.f32 %v3172, 0.0
  %v3237 = vmax.f32 %v3173, 0.0
  %v3238 = vmax.f32 %v3174, 0.0
  %v3239 = vmax.f32 %v3175, 0.0
  %v3240 = vmax.f32 %v3176, 0.0
  %v3241 = vmax.f32 %v3177, 0.0
  %v3242 = vmax.f32 %v3178, 0.0
  %v3243 = vmax.f32 %v3179, 0.0
  %v3244 = vmax.f32 %v3180, 0.0
  %v3245 = vmax.f32 %v3181, 0.0
  %v3246 = vmax.f32 %v3182, 0.0
  %v3247 = vmax.f32 %v3183, 0.0
  %v3248 = vmax.f32 %v3184, 0.0
  %v3249 = vmax.f32 %v3185, 0.0
  %v3250 = vmax.f32 %v3186, 0.0
  %v3251 = vmax.f32 %v3187, 0.0
  %v3252 = vmax.f32 %v3188, 0.0
  %v3253 = vmax.f32 %v3189, 0.0
  %v3254 = vmax.f32 %v3190, 0.0
  %v3255 = vmax.f32 %v3191, 0.0
  %v3256 = vmax.f32 %v3192, 0.0
  %v3257 = vmax.f32 %v3193, 0.0
  %v3258 = vmax.f32 %v3194, 0.0
  %v3259 = vmax.f32 %v3195, 0.0
  %v3260 = vmax.f32 %v3196, 0.0
  %v3261 = vmax.f32 %v3197, 0.0
  %v3262 = vmax.f32 %v3198, 0.0
  %v3263 = vmax.f32 %v3199, 0.0
  %v3264 = vmax.f32 %v3200, 0.0
  %v3265 = vmax.f32 %v3201, 0.0
  %v3266 = vmax.f32 %v3202, 0.0
  %v3267 = vmax.f32 %v3203, 0.0
  %v3268 = vmax.f32 %v3204, 0.0
  %v3269 = vmax.f32 %v3205, 0.0
  %v3270 = vmax.f32 %v3206, 0.0
  %v3271 = vmax.f32 %v3207, 0.0
  %v3272 = vmax.f32 %v3208, 0.0
  %v3273 = vmax.f32 %v3209, 0.0
  %v3274 = vpack.c.bf16 %v3210, %v3210
  %v3275 = vpack.c.bf16 %v3211, %v3211
  %v3276 = vpack.c.bf16 %v3212, %v3212
  %v3277 = vpack.c.bf16 %v3213, %v3213
  %v3278 = vpack.c.bf16 %v3214, %v3214
  %v3279 = vpack.c.bf16 %v3215, %v3215
  %v3280 = vpack.c.bf16 %v3216, %v3216
  %v3281 = vpack.c.bf16 %v3217, %v3217
  %v3282 = vpack.c.bf16 %v3218, %v3218
  %v3283 = vpack.c.bf16 %v3219, %v3219
  %v3284 = vpack.c.bf16 %v3220, %v3220
  %v3285 = vpack.c.bf16 %v3221, %v3221
  %v3286 = vpack.c.bf16 %v3222, %v3222
  %v3287 = vpack.c.bf16 %v3223, %v3223
  %v3288 = vpack.c.bf16 %v3224, %v3224
  %v3289 = vpack.c.bf16 %v3225, %v3225
  %v3290 = vpack.c.bf16 %v3226, %v3226
  %v3291 = vpack.c.bf16 %v3227, %v3227
  %v3292 = vpack.c.bf16 %v3228, %v3228
  %v3293 = vpack.c.bf16 %v3229, %v3229
  %v3294 = vpack.c.bf16 %v3230, %v3230
  %v3295 = vpack.c.bf16 %v3231, %v3231
  %v3296 = vpack.c.bf16 %v3232, %v3232
  %v3297 = vpack.c.bf16 %v3233, %v3233
  %v3298 = vpack.c.bf16 %v3234, %v3234
  %v3299 = vpack.c.bf16 %v3235, %v3235
  %v3300 = vpack.c.bf16 %v3236, %v3236
  %v3301 = vpack.c.bf16 %v3237, %v3237
  %v3302 = vpack.c.bf16 %v3238, %v3238
  %v3303 = vpack.c.bf16 %v3239, %v3239
  %v3304 = vpack.c.bf16 %v3240, %v3240
  %v3305 = vpack.c.bf16 %v3241, %v3241
  %v3306 = vpack.c.bf16 %v3242, %v3242
  %v3307 = vpack.c.bf16 %v3243, %v3243
  %v3308 = vpack.c.bf16 %v3244, %v3244
  %v3309 = vpack.c.bf16 %v3245, %v3245
  %v3310 = vpack.c.bf16 %v3246, %v3246
  %v3311 = vpack.c.bf16 %v3247, %v3247
  %v3312 = vpack.c.bf16 %v3248, %v3248
  %v3313 = vpack.c.bf16 %v3249, %v3249
  %v3314 = vpack.c.bf16 %v3250, %v3250
  %v3315 = vpack.c.bf16 %v3251, %v3251
  %v3316 = vpack.c.bf16 %v3252, %v3252
  %v3317 = vpack.c.bf16 %v3253, %v3253
  %v3318 = vpack.c.bf16 %v3254, %v3254
  %v3319 = vpack.c.bf16 %v3255, %v3255
  %v3320 = vpack.c.bf16 %v3256, %v3256
  %v3321 = vpack.c.bf16 %v3257, %v3257
  %v3322 = vpack.c.bf16 %v3258, %v3258
  %v3323 = vpack.c.bf16 %v3259, %v3259
  %v3324 = vpack.c.bf16 %v3260, %v3260
  %v3325 = vpack.c.bf16 %v3261, %v3261
  %v3326 = vpack.c.bf16 %v3262, %v3262
  %v3327 = vpack.c.bf16 %v3263, %v3263
  %v3328 = vpack.c.bf16 %v3264, %v3264
  %v3329 = vpack.c.bf16 %v3265, %v3265
  %v3330 = vpack.c.bf16 %v3266, %v3266
  %v3331 = vpack.c.bf16 %v3267, %v3267
  %v3332 = vpack.c.bf16 %v3268, %v3268
  %v3333 = vpack.c.bf16 %v3269, %v3269
  %v3334 = vpack.c.bf16 %v3270, %v3270
  %v3335 = vpack.c.bf16 %v3271, %v3271
  %v3336 = vpack.c.bf16 %v3272, %v3272
  %v3337 = vpack.c.bf16 %v3273, %v3273
  %v3402 = vunpack.c.l.b16 %v3274
  %v3403 = vunpack.c.l.b16 %v3275
  %v3404 = vunpack.c.l.b16 %v3276
  %v3405 = vunpack.c.l.b16 %v3277
  %v3406 = vunpack.c.l.b16 %v3278
  %v3407 = vunpack.c.l.b16 %v3279
  %v3408 = vunpack.c.l.b16 %v3280
  %v3409 = vunpack.c.l.b16 %v3281
  %v3410 = vunpack.c.l.b16 %v3282
  %v3411 = vunpack.c.l.b16 %v3283
  %v3412 = vunpack.c.l.b16 %v3284
  %v3413 = vunpack.c.l.b16 %v3285
  %v3414 = vunpack.c.l.b16 %v3286
  %v3415 = vunpack.c.l.b16 %v3287
  %v3416 = vunpack.c.l.b16 %v3288
  %v3417 = vunpack.c.l.b16 %v3289
  %v3418 = vunpack.c.l.b16 %v3290
  %v3419 = vunpack.c.l.b16 %v3291
  %v3420 = vunpack.c.l.b16 %v3292
  %v3421 = vunpack.c.l.b16 %v3293
  %v3422 = vunpack.c.l.b16 %v3294
  %v3423 = vunpack.c.l.b16 %v3295
  %v3424 = vunpack.c.l.b16 %v3296
  %v3425 = vunpack.c.l.b16 %v3297
  %v3426 = vunpack.c.l.b16 %v3298
  %v3427 = vunpack.c.l.b16 %v3299
  %v3428 = vunpack.c.l.b16 %v3300
  %v3429 = vunpack.c.l.b16 %v3301
  %v3430 = vunpack.c.l.b16 %v3302
  %v3431 = vunpack.c.l.b16 %v3303
  %v3432 = vunpack.c.l.b16 %v3304
  %v3433 = vunpack.c.l.b16 %v3305
  %v3434 = vunpack.c.l.b16 %v3306
  %v3435 = vunpack.c.l.b16 %v3307
  %v3436 = vunpack.c.l.b16 %v3308
  %v3437 = vunpack.c.l.b16 %v3309
  %v3438 = vunpack.c.l.b16 %v3310
  %v3439 = vunpack.c.l.b16 %v3311
  %v3440 = vunpack.c.l.b16 %v3312
  %v3441 = vunpack.c.l.b16 %v3313
  %v3442 = vunpack.c.l.b16 %v3314
  %v3443 = vunpack.c.l.b16 %v3315
  %v3444 = vunpack.c.l.b16 %v3316
  %v3445 = vunpack.c.l.b16 %v3317
  %v3446 = vunpack.c.l.b16 %v3318
  %v3447 = vunpack.c.l.b16 %v3319
  %v3448 = vunpack.c.l.b16 %v3320
  %v3449 = vunpack.c.l.b16 %v3321
  %v3450 = vunpack.c.l.b16 %v3322
  %v3451 = vunpack.c.l.b16 %v3323
  %v3452 = vunpack.c.l.b16 %v3324
  %v3453 = vunpack.c.l.b16 %v3325
  %v3454 = vunpack.c.l.b16 %v3326
  %v3455 = vunpack.c.l.b16 %v3327
  %v3456 = vunpack.c.l.b16 %v3328
  %v3457 = vunpack.c.l.b16 %v3329
  %v3458 = vunpack.c.l.b16 %v3330
  %v3459 = vunpack.c.l.b16 %v3331
  %v3460 = vunpack.c.l.b16 %v3332
  %v3461 = vunpack.c.l.b16 %v3333
  %v3462 = vunpack.c.l.b16 %v3334
  %v3463 = vunpack.c.l.b16 %v3335
  %v3464 = vunpack.c.l.b16 %v3336
  %v3465 = vunpack.c.l.b16 %v3337
  %v3466 = vpack.c.b16 %v3403, %v3402
  %v3467 = vpack.c.b16 %v3405, %v3404
  %v3468 = vpack.c.b16 %v3407, %v3406
  %v3469 = vpack.c.b16 %v3409, %v3408
  %v3470 = vpack.c.b16 %v3411, %v3410
  %v3471 = vpack.c.b16 %v3413, %v3412
  %v3472 = vpack.c.b16 %v3415, %v3414
  %v3473 = vpack.c.b16 %v3417, %v3416
  %v3474 = vpack.c.b16 %v3419, %v3418
  %v3475 = vpack.c.b16 %v3421, %v3420
  %v3476 = vpack.c.b16 %v3423, %v3422
  %v3477 = vpack.c.b16 %v3425, %v3424
  %v3478 = vpack.c.b16 %v3427, %v3426
  %v3479 = vpack.c.b16 %v3429, %v3428
  %v3480 = vpack.c.b16 %v3431, %v3430
  %v3481 = vpack.c.b16 %v3433, %v3432
  %v3482 = vpack.c.b16 %v3435, %v3434
  %v3483 = vpack.c.b16 %v3437, %v3436
  %v3484 = vpack.c.b16 %v3439, %v3438
  %v3485 = vpack.c.b16 %v3441, %v3440
  %v3486 = vpack.c.b16 %v3443, %v3442
  %v3487 = vpack.c.b16 %v3445, %v3444
  %v3488 = vpack.c.b16 %v3447, %v3446
  %v3489 = vpack.c.b16 %v3449, %v3448
  %v3490 = vpack.c.b16 %v3451, %v3450
  %v3491 = vpack.c.b16 %v3453, %v3452
  %v3492 = vpack.c.b16 %v3455, %v3454
  %v3493 = vpack.c.b16 %v3457, %v3456
  %v3494 = vpack.c.b16 %v3459, %v3458
  %v3495 = vpack.c.b16 %v3461, %v3460
  %v3496 = vpack.c.b16 %v3463, %v3462
  %v3497 = vpack.c.b16 %v3465, %v3464
  %v3499 = vshrl.u32 %v3466, 16
  %v3501 = vrot.slane %v3499, 7
  %v3502 = vshll.u32 %v3466, 16
  %v3504 = vor.u32 %v3501, %v3502
  %v3506 = vshrl.u32 %v3467, 16
  %v3508 = vrot.slane %v3506, 7
  %v3509 = vshll.u32 %v3467, 16
  %v3511 = vor.u32 %v3508, %v3509
  %v3513 = vshrl.u32 %v3468, 16
  %v3515 = vrot.slane %v3513, 7
  %v3516 = vshll.u32 %v3468, 16
  %v3518 = vor.u32 %v3515, %v3516
  %v3520 = vshrl.u32 %v3469, 16
  %v3522 = vrot.slane %v3520, 7
  %v3523 = vshll.u32 %v3469, 16
  %v3525 = vor.u32 %v3522, %v3523
  %v3527 = vshrl.u32 %v3470, 16
  %v3529 = vrot.slane %v3527, 7
  %v3530 = vshll.u32 %v3470, 16
  %v3532 = vor.u32 %v3529, %v3530
  %v3534 = vshrl.u32 %v3471, 16
  %v3536 = vrot.slane %v3534, 7
  %v3537 = vshll.u32 %v3471, 16
  %v3539 = vor.u32 %v3536, %v3537
  %v3541 = vshrl.u32 %v3472, 16
  %v3543 = vrot.slane %v3541, 7
  %v3544 = vshll.u32 %v3472, 16
  %v3546 = vor.u32 %v3543, %v3544
  %v3548 = vshrl.u32 %v3473, 16
  %v3550 = vrot.slane %v3548, 7
  %v3551 = vshll.u32 %v3473, 16
  %v3553 = vor.u32 %v3550, %v3551
  %v3555 = vshrl.u32 %v3474, 16
  %v3557 = vrot.slane %v3555, 7
  %v3558 = vshll.u32 %v3474, 16
  %v3560 = vor.u32 %v3557, %v3558
  %v3562 = vshrl.u32 %v3475, 16
  %v3564 = vrot.slane %v3562, 7
  %v3565 = vshll.u32 %v3475, 16
  %v3567 = vor.u32 %v3564, %v3565
  %v3569 = vshrl.u32 %v3476, 16
  %v3571 = vrot.slane %v3569, 7
  %v3572 = vshll.u32 %v3476, 16
  %v3574 = vor.u32 %v3571, %v3572
  %v3576 = vshrl.u32 %v3477, 16
  %v3578 = vrot.slane %v3576, 7
  %v3579 = vshll.u32 %v3477, 16
  %v3581 = vor.u32 %v3578, %v3579
  %v3583 = vshrl.u32 %v3478, 16
  %v3585 = vrot.slane %v3583, 7
  %v3586 = vshll.u32 %v3478, 16
  %v3588 = vor.u32 %v3585, %v3586
  %v3590 = vshrl.u32 %v3479, 16
  %v3592 = vrot.slane %v3590, 7
  %v3593 = vshll.u32 %v3479, 16
  %v3595 = vor.u32 %v3592, %v3593
  %v3597 = vshrl.u32 %v3480, 16
  %v3599 = vrot.slane %v3597, 7
  %v3600 = vshll.u32 %v3480, 16
  %v3602 = vor.u32 %v3599, %v3600
  %v3604 = vshrl.u32 %v3481, 16
  %v3606 = vrot.slane %v3604, 7
  %v3607 = vshll.u32 %v3481, 16
  %v3609 = vor.u32 %v3606, %v3607
  %v3611 = vshrl.u32 %v3482, 16
  %v3613 = vrot.slane %v3611, 7
  %v3614 = vshll.u32 %v3482, 16
  %v3616 = vor.u32 %v3613, %v3614
  %v3618 = vshrl.u32 %v3483, 16
  %v3620 = vrot.slane %v3618, 7
  %v3621 = vshll.u32 %v3483, 16
  %v3623 = vor.u32 %v3620, %v3621
  %v3625 = vshrl.u32 %v3484, 16
  %v3627 = vrot.slane %v3625, 7
  %v3628 = vshll.u32 %v3484, 16
  %v3630 = vor.u32 %v3627, %v3628
  %v3632 = vshrl.u32 %v3485, 16
  %v3634 = vrot.slane %v3632, 7
  %v3635 = vshll.u32 %v3485, 16
  %v3637 = vor.u32 %v3634, %v3635
  %v3639 = vshrl.u32 %v3486, 16
  %v3641 = vrot.slane %v3639, 7
  %v3642 = vshll.u32 %v3486, 16
  %v3644 = vor.u32 %v3641, %v3642
  %v3646 = vshrl.u32 %v3487, 16
  %v3648 = vrot.slane %v3646, 7
  %v3649 = vshll.u32 %v3487, 16
  %v3651 = vor.u32 %v3648, %v3649
  %v3653 = vshrl.u32 %v3488, 16
  %v3655 = vrot.slane %v3653, 7
  %v3656 = vshll.u32 %v3488, 16
  %v3658 = vor.u32 %v3655, %v3656
  %v3660 = vshrl.u32 %v3489, 16
  %v3662 = vrot.slane %v3660, 7
  %v3663 = vshll.u32 %v3489, 16
  %v3665 = vor.u32 %v3662, %v3663
  %v3667 = vshrl.u32 %v3490, 16
  %v3669 = vrot.slane %v3667, 7
  %v3670 = vshll.u32 %v3490, 16
  %v3672 = vor.u32 %v3669, %v3670
  %v3674 = vshrl.u32 %v3491, 16
  %v3676 = vrot.slane %v3674, 7
  %v3677 = vshll.u32 %v3491, 16
  %v3679 = vor.u32 %v3676, %v3677
  %v3681 = vshrl.u32 %v3492, 16
  %v3683 = vrot.slane %v3681, 7
  %v3684 = vshll.u32 %v3492, 16
  %v3686 = vor.u32 %v3683, %v3684
  %v3688 = vshrl.u32 %v3493, 16
  %v3690 = vrot.slane %v3688, 7
  %v3691 = vshll.u32 %v3493, 16
  %v3693 = vor.u32 %v3690, %v3691
  %v3695 = vshrl.u32 %v3494, 16
  %v3697 = vrot.slane %v3695, 7
  %v3698 = vshll.u32 %v3494, 16
  %v3700 = vor.u32 %v3697, %v3698
  %v3702 = vshrl.u32 %v3495, 16
  %v3704 = vrot.slane %v3702, 7
  %v3705 = vshll.u32 %v3495, 16
  %v3707 = vor.u32 %v3704, %v3705
  %v3709 = vshrl.u32 %v3496, 16
  %v3711 = vrot.slane %v3709, 7
  %v3712 = vshll.u32 %v3496, 16
  %v3714 = vor.u32 %v3711, %v3712
  %v3716 = vshrl.u32 %v3497, 16
  %v3718 = vrot.slane %v3716, 7
  %v3719 = vshll.u32 %v3497, 16
  %v3721 = vor.u32 %v3718, %v3719
  %v3786 = vsel %vm553, 0, %v3504
  %v3787 = vsel %vm553, 0, %v3511
  %v3788 = vsel %vm553, 0, %v3518
  %v3789 = vsel %vm553, 0, %v3525
  %v3790 = vsel %vm553, 0, %v3532
  %v3791 = vsel %vm553, 0, %v3539
  %v3792 = vsel %vm553, 0, %v3546
  %v3793 = vsel %vm553, 0, %v3553
  %v3794 = vsel %vm553, 0, %v3560
  %v3795 = vsel %vm553, 0, %v3567
  %v3796 = vsel %vm553, 0, %v3574
  %v3797 = vsel %vm553, 0, %v3581
  %v3798 = vsel %vm553, 0, %v3588
  %v3799 = vsel %vm553, 0, %v3595
  %v3800 = vsel %vm553, 0, %v3602
  %v3801 = vsel %vm553, 0, %v3609
  %v3802 = vsel %vm553, 0, %v3616
  %v3803 = vsel %vm553, 0, %v3623
  %v3804 = vsel %vm553, 0, %v3630
  %v3805 = vsel %vm553, 0, %v3637
  %v3806 = vsel %vm553, 0, %v3644
  %v3807 = vsel %vm553, 0, %v3651
  %v3808 = vsel %vm553, 0, %v3658
  %v3809 = vsel %vm553, 0, %v3665
  %v3810 = vsel %vm553, 0, %v3672
  %v3811 = vsel %vm553, 0, %v3679
  %v3812 = vsel %vm553, 0, %v3686
  %v3813 = vsel %vm553, 0, %v3693
  %v3814 = vsel %vm553, 0, %v3700
  %v3815 = vsel %vm553, 0, %v3707
  %v3816 = vsel %vm553, 0, %v3714
  %v3817 = vsel %vm553, 0, %v3721
  %v3818 = vsel %vm553, %v3501, 0
  %v3819 = vsel %vm553, %v3508, 0
  %v3820 = vsel %vm553, %v3515, 0
  %v3821 = vsel %vm553, %v3522, 0
  %v3822 = vsel %vm553, %v3529, 0
  %v3823 = vsel %vm553, %v3536, 0
  %v3824 = vsel %vm553, %v3543, 0
  %v3825 = vsel %vm553, %v3550, 0
  %v3826 = vsel %vm553, %v3557, 0
  %v3827 = vsel %vm553, %v3564, 0
  %v3828 = vsel %vm553, %v3571, 0
  %v3829 = vsel %vm553, %v3578, 0
  %v3830 = vsel %vm553, %v3585, 0
  %v3831 = vsel %vm553, %v3592, 0
  %v3832 = vsel %vm553, %v3599, 0
  %v3833 = vsel %vm553, %v3606, 0
  %v3834 = vsel %vm553, %v3613, 0
  %v3835 = vsel %vm553, %v3620, 0
  %v3836 = vsel %vm553, %v3627, 0
  %v3837 = vsel %vm553, %v3634, 0
  %v3838 = vsel %vm553, %v3641, 0
  %v3839 = vsel %vm553, %v3648, 0
  %v3840 = vsel %vm553, %v3655, 0
  %v3841 = vsel %vm553, %v3662, 0
  %v3842 = vsel %vm553, %v3669, 0
  %v3843 = vsel %vm553, %v3676, 0
  %v3844 = vsel %vm553, %v3683, 0
  %v3845 = vsel %vm553, %v3690, 0
  %v3846 = vsel %vm553, %v3697, 0
  %v3847 = vsel %vm553, %v3704, 0
  %v3848 = vsel %vm553, %v3711, 0
  %v3849 = vsel %vm553, %v3718, 0
  %v3851 = vshrl.u32 %v3786, 16
  %v3853 = vshll.u32 %v3786, 16
  %v3855 = vrot.slane %v3853, 1
  %v3856 = vor.u32 %v3851, %v3855
  %v3858 = vshll.u32 %v3818, 16
  %v3860 = vrot.slane %v3858, 1
  %v3861 = vsel %vm618, %v3856, %v3860
  %v3863 = vshrl.u32 %v3787, 16
  %v3865 = vshll.u32 %v3787, 16
  %v3867 = vrot.slane %v3865, 1
  %v3868 = vor.u32 %v3863, %v3867
  %v3870 = vshll.u32 %v3819, 16
  %v3872 = vrot.slane %v3870, 1
  %v3873 = vsel %vm618, %v3868, %v3872
  %v3875 = vshrl.u32 %v3788, 16
  %v3877 = vshll.u32 %v3788, 16
  %v3879 = vrot.slane %v3877, 1
  %v3880 = vor.u32 %v3875, %v3879
  %v3882 = vshll.u32 %v3820, 16
  %v3884 = vrot.slane %v3882, 1
  %v3885 = vsel %vm618, %v3880, %v3884
  %v3887 = vshrl.u32 %v3789, 16
  %v3889 = vshll.u32 %v3789, 16
  %v3891 = vrot.slane %v3889, 1
  %v3892 = vor.u32 %v3887, %v3891
  %v3894 = vshll.u32 %v3821, 16
  %v3896 = vrot.slane %v3894, 1
  %v3897 = vsel %vm618, %v3892, %v3896
  %v3899 = vshrl.u32 %v3790, 16
  %v3901 = vshll.u32 %v3790, 16
  %v3903 = vrot.slane %v3901, 1
  %v3904 = vor.u32 %v3899, %v3903
  %v3906 = vshll.u32 %v3822, 16
  %v3908 = vrot.slane %v3906, 1
  %v3909 = vsel %vm618, %v3904, %v3908
  %v3911 = vshrl.u32 %v3791, 16
  %v3913 = vshll.u32 %v3791, 16
  %v3915 = vrot.slane %v3913, 1
  %v3916 = vor.u32 %v3911, %v3915
  %v3918 = vshll.u32 %v3823, 16
  %v3920 = vrot.slane %v3918, 1
  %v3921 = vsel %vm618, %v3916, %v3920
  %v3923 = vshrl.u32 %v3792, 16
  %v3925 = vshll.u32 %v3792, 16
  %v3927 = vrot.slane %v3925, 1
  %v3928 = vor.u32 %v3923, %v3927
  %v3930 = vshll.u32 %v3824, 16
  %v3932 = vrot.slane %v3930, 1
  %v3933 = vsel %vm618, %v3928, %v3932
  %v3935 = vshrl.u32 %v3793, 16
  %v3937 = vshll.u32 %v3793, 16
  %v3939 = vrot.slane %v3937, 1
  %v3940 = vor.u32 %v3935, %v3939
  %v3942 = vshll.u32 %v3825, 16
  %v3944 = vrot.slane %v3942, 1
  %v3945 = vsel %vm618, %v3940, %v3944
  %v3947 = vshrl.u32 %v3794, 16
  %v3949 = vshll.u32 %v3794, 16
  %v3951 = vrot.slane %v3949, 1
  %v3952 = vor.u32 %v3947, %v3951
  %v3954 = vshll.u32 %v3826, 16
  %v3956 = vrot.slane %v3954, 1
  %v3957 = vsel %vm618, %v3952, %v3956
  %v3959 = vshrl.u32 %v3795, 16
  %v3961 = vshll.u32 %v3795, 16
  %v3963 = vrot.slane %v3961, 1
  %v3964 = vor.u32 %v3959, %v3963
  %v3966 = vshll.u32 %v3827, 16
  %v3968 = vrot.slane %v3966, 1
  %v3969 = vsel %vm618, %v3964, %v3968
  %v3971 = vshrl.u32 %v3796, 16
  %v3973 = vshll.u32 %v3796, 16
  %v3975 = vrot.slane %v3973, 1
  %v3976 = vor.u32 %v3971, %v3975
  %v3978 = vshll.u32 %v3828, 16
  %v3980 = vrot.slane %v3978, 1
  %v3981 = vsel %vm618, %v3976, %v3980
  %v3983 = vshrl.u32 %v3797, 16
  %v3985 = vshll.u32 %v3797, 16
  %v3987 = vrot.slane %v3985, 1
  %v3988 = vor.u32 %v3983, %v3987
  %v3990 = vshll.u32 %v3829, 16
  %v3992 = vrot.slane %v3990, 1
  %v3993 = vsel %vm618, %v3988, %v3992
  %v3995 = vshrl.u32 %v3798, 16
  %v3997 = vshll.u32 %v3798, 16
  %v3999 = vrot.slane %v3997, 1
  %v4000 = vor.u32 %v3995, %v3999
  %v4002 = vshll.u32 %v3830, 16
  %v4004 = vrot.slane %v4002, 1
  %v4005 = vsel %vm618, %v4000, %v4004
  %v4007 = vshrl.u32 %v3799, 16
  %v4009 = vshll.u32 %v3799, 16
  %v4011 = vrot.slane %v4009, 1
  %v4012 = vor.u32 %v4007, %v4011
  %v4014 = vshll.u32 %v3831, 16
  %v4016 = vrot.slane %v4014, 1
  %v4017 = vsel %vm618, %v4012, %v4016
  %v4019 = vshrl.u32 %v3800, 16
  %v4021 = vshll.u32 %v3800, 16
  %v4023 = vrot.slane %v4021, 1
  %v4024 = vor.u32 %v4019, %v4023
  %v4026 = vshll.u32 %v3832, 16
  %v4028 = vrot.slane %v4026, 1
  %v4029 = vsel %vm618, %v4024, %v4028
  %v4031 = vshrl.u32 %v3802, 16
  %v4033 = vshll.u32 %v3802, 16
  %v4035 = vrot.slane %v4033, 1
  %v4036 = vor.u32 %v4031, %v4035
  %v4038 = vshll.u32 %v3834, 16
  %v4040 = vrot.slane %v4038, 1
  %v4041 = vsel %vm618, %v4036, %v4040
  %v4043 = vshrl.u32 %v3803, 16
  %v4045 = vshll.u32 %v3803, 16
  %v4047 = vrot.slane %v4045, 1
  %v4048 = vor.u32 %v4043, %v4047
  %v4050 = vshll.u32 %v3835, 16
  %v4052 = vrot.slane %v4050, 1
  %v4053 = vsel %vm618, %v4048, %v4052
  %v4055 = vshrl.u32 %v3804, 16
  %v4057 = vshll.u32 %v3804, 16
  %v4059 = vrot.slane %v4057, 1
  %v4060 = vor.u32 %v4055, %v4059
  %v4062 = vshll.u32 %v3836, 16
  %v4064 = vrot.slane %v4062, 1
  %v4065 = vsel %vm618, %v4060, %v4064
  %v4067 = vshrl.u32 %v3805, 16
  %v4069 = vshll.u32 %v3805, 16
  %v4071 = vrot.slane %v4069, 1
  %v4072 = vor.u32 %v4067, %v4071
  %v4074 = vshll.u32 %v3837, 16
  %v4076 = vrot.slane %v4074, 1
  %v4077 = vsel %vm618, %v4072, %v4076
  %v4079 = vshrl.u32 %v3806, 16
  %v4081 = vshll.u32 %v3806, 16
  %v4083 = vrot.slane %v4081, 1
  %v4084 = vor.u32 %v4079, %v4083
  %v4086 = vshll.u32 %v3838, 16
  %v4088 = vrot.slane %v4086, 1
  %v4089 = vsel %vm618, %v4084, %v4088
  %v4091 = vshrl.u32 %v3807, 16
  %v4093 = vshll.u32 %v3807, 16
  %v4095 = vrot.slane %v4093, 1
  %v4096 = vor.u32 %v4091, %v4095
  %v4098 = vshll.u32 %v3839, 16
  %v4100 = vrot.slane %v4098, 1
  %v4101 = vsel %vm618, %v4096, %v4100
  %v4103 = vshrl.u32 %v3808, 16
  %v4105 = vshll.u32 %v3808, 16
  %v4107 = vrot.slane %v4105, 1
  %v4108 = vor.u32 %v4103, %v4107
  %v4110 = vshll.u32 %v3840, 16
  %v4112 = vrot.slane %v4110, 1
  %v4113 = vsel %vm618, %v4108, %v4112
  %v4115 = vshrl.u32 %v3809, 16
  %v4117 = vshll.u32 %v3809, 16
  %v4119 = vrot.slane %v4117, 1
  %v4120 = vor.u32 %v4115, %v4119
  %v4122 = vshll.u32 %v3841, 16
  %v4124 = vrot.slane %v4122, 1
  %v4125 = vsel %vm618, %v4120, %v4124
  %v4127 = vshrl.u32 %v3810, 16
  %v4129 = vshll.u32 %v3810, 16
  %v4131 = vrot.slane %v4129, 1
  %v4132 = vor.u32 %v4127, %v4131
  %v4134 = vshll.u32 %v3842, 16
  %v4136 = vrot.slane %v4134, 1
  %v4137 = vsel %vm618, %v4132, %v4136
  %v4139 = vshrl.u32 %v3811, 16
  %v4141 = vshll.u32 %v3811, 16
  %v4143 = vrot.slane %v4141, 1
  %v4144 = vor.u32 %v4139, %v4143
  %v4146 = vshll.u32 %v3843, 16
  %v4148 = vrot.slane %v4146, 1
  %v4149 = vsel %vm618, %v4144, %v4148
  %v4151 = vshrl.u32 %v3812, 16
  %v4153 = vshll.u32 %v3812, 16
  %v4155 = vrot.slane %v4153, 1
  %v4156 = vor.u32 %v4151, %v4155
  %v4158 = vshll.u32 %v3844, 16
  %v4160 = vrot.slane %v4158, 1
  %v4161 = vsel %vm618, %v4156, %v4160
  %v4163 = vshrl.u32 %v3813, 16
  %v4165 = vshll.u32 %v3813, 16
  %v4167 = vrot.slane %v4165, 1
  %v4168 = vor.u32 %v4163, %v4167
  %v4170 = vshll.u32 %v3845, 16
  %v4172 = vrot.slane %v4170, 1
  %v4173 = vsel %vm618, %v4168, %v4172
  %v4175 = vshrl.u32 %v3814, 16
  %v4177 = vshll.u32 %v3814, 16
  %v4179 = vrot.slane %v4177, 1
  %v4180 = vor.u32 %v4175, %v4179
  %v4182 = vshll.u32 %v3846, 16
  %v4184 = vrot.slane %v4182, 1
  %v4185 = vsel %vm618, %v4180, %v4184
  %v4187 = vshrl.u32 %v3815, 16
  %v4189 = vshll.u32 %v3815, 16
  %v4191 = vrot.slane %v4189, 1
  %v4192 = vor.u32 %v4187, %v4191
  %v4194 = vshll.u32 %v3847, 16
  %v4196 = vrot.slane %v4194, 1
  %v4197 = vsel %vm618, %v4192, %v4196
  %v4199 = vshrl.u32 %v3816, 16
  %v4201 = vshll.u32 %v3816, 16
  %v4203 = vrot.slane %v4201, 1
  %v4204 = vor.u32 %v4199, %v4203
  %v4206 = vshll.u32 %v3848, 16
  %v4208 = vrot.slane %v4206, 1
  %v4209 = vsel %vm618, %v4204, %v4208
  %4210 = vrot.lane.b32.xlu0 %v626, 32
  %v4211 = vpop.permute.xlu0 %4210
  %4212 = vrot.lane.b32.xlu0 %v3861, 32
  %v4213 = vpop.permute.xlu0 %4212
  %4214 = vrot.lane.b32.xlu0 %v3873, 32
  %v4215 = vpop.permute.xlu0 %4214
  %4216 = vrot.lane.b32.xlu0 %v3885, 32
  %v4217 = vpop.permute.xlu0 %4216
  %4218 = vrot.lane.b32.xlu0 %v3897, 32
  %v4219 = vpop.permute.xlu0 %4218
  %4220 = vrot.lane.b32.xlu0 %v3909, 32
  %v4221 = vpop.permute.xlu0 %4220
  %4222 = vrot.lane.b32.xlu0 %v3921, 32
  %v4223 = vpop.permute.xlu0 %4222
  %4224 = vrot.lane.b32.xlu0 %v3933, 32
  %v4225 = vpop.permute.xlu0 %4224
  %4226 = vrot.lane.b32.xlu0 %v3945, 32
  %v4227 = vpop.permute.xlu0 %4226
  %4228 = vrot.lane.b32.xlu0 %v3957, 32
  %v4229 = vpop.permute.xlu0 %4228
  %4230 = vrot.lane.b32.xlu0 %v3969, 32
  %v4231 = vpop.permute.xlu0 %4230
  %4232 = vrot.lane.b32.xlu0 %v3981, 32
  %v4233 = vpop.permute.xlu0 %4232
  %4234 = vrot.lane.b32.xlu0 %v3993, 32
  %v4235 = vpop.permute.xlu0 %4234
  %4236 = vrot.lane.b32.xlu0 %v4005, 32
  %v4237 = vpop.permute.xlu0 %4236
  %4238 = vrot.lane.b32.xlu0 %v4017, 32
  %v4239 = vpop.permute.xlu0 %4238
  %4240 = vrot.lane.b32.xlu0 %v4029, 32
  %v4241 = vpop.permute.xlu0 %4240
  %4242 = vrot.lane.b32.xlu0 %v4041, 32
  %v4243 = vpop.permute.xlu0 %4242
  %4244 = vrot.lane.b32.xlu0 %v4053, 32
  %v4245 = vpop.permute.xlu0 %4244
  %4246 = vrot.lane.b32.xlu0 %v4065, 32
  %v4247 = vpop.permute.xlu0 %4246
  %4248 = vrot.lane.b32.xlu0 %v4077, 32
  %v4249 = vpop.permute.xlu0 %4248
  %4250 = vrot.lane.b32.xlu0 %v4089, 32
  %v4251 = vpop.permute.xlu0 %4250
  %4252 = vrot.lane.b32.xlu0 %v4101, 32
  %v4253 = vpop.permute.xlu0 %4252
  %4254 = vrot.lane.b32.xlu0 %v4113, 32
  %v4255 = vpop.permute.xlu0 %4254
  %4256 = vrot.lane.b32.xlu0 %v4125, 32
  %v4257 = vpop.permute.xlu0 %4256
  %4258 = vrot.lane.b32.xlu0 %v4137, 32
  %v4259 = vpop.permute.xlu0 %4258
  %4260 = vrot.lane.b32.xlu0 %v4149, 32
  %v4261 = vpop.permute.xlu0 %4260
  %4262 = vrot.lane.b32.xlu0 %v4161, 32
  %v4263 = vpop.permute.xlu0 %4262
  %4264 = vrot.lane.b32.xlu0 %v4173, 32
  %v4265 = vpop.permute.xlu0 %4264
  %4266 = vrot.lane.b32.xlu0 %v4185, 32
  %v4267 = vpop.permute.xlu0 %4266
  %4268 = vrot.lane.b32.xlu0 %v4197, 32
  %v4269 = vpop.permute.xlu0 %4268
  %4270 = vrot.lane.b32.xlu0 %v4209, 32
  %v4271 = vpop.permute.xlu0 %4270
  %v4332 = vrot.slane %v3786, 1
  %v4333 = vrot.slane %v3818, 1
  %v4334 = vsel %vm1110, %v4332, %v4333
  %v4335 = vrot.slane %v3787, 1
  %v4336 = vrot.slane %v3819, 1
  %v4337 = vsel %vm1110, %v4335, %v4336
  %v4338 = vrot.slane %v3788, 1
  %v4339 = vrot.slane %v3820, 1
  %v4340 = vsel %vm1110, %v4338, %v4339
  %v4341 = vrot.slane %v3789, 1
  %v4342 = vrot.slane %v3821, 1
  %v4343 = vsel %vm1110, %v4341, %v4342
  %v4344 = vrot.slane %v3790, 1
  %v4345 = vrot.slane %v3822, 1
  %v4346 = vsel %vm1110, %v4344, %v4345
  %v4347 = vrot.slane %v3791, 1
  %v4348 = vrot.slane %v3823, 1
  %v4349 = vsel %vm1110, %v4347, %v4348
  %v4350 = vrot.slane %v3792, 1
  %v4351 = vrot.slane %v3824, 1
  %v4352 = vsel %vm1110, %v4350, %v4351
  %v4353 = vrot.slane %v3793, 1
  %v4354 = vrot.slane %v3825, 1
  %v4355 = vsel %vm1110, %v4353, %v4354
  %v4356 = vrot.slane %v3794, 1
  %v4357 = vrot.slane %v3826, 1
  %v4358 = vsel %vm1110, %v4356, %v4357
  %v4359 = vrot.slane %v3795, 1
  %v4360 = vrot.slane %v3827, 1
  %v4361 = vsel %vm1110, %v4359, %v4360
  %v4362 = vrot.slane %v3796, 1
  %v4363 = vrot.slane %v3828, 1
  %v4364 = vsel %vm1110, %v4362, %v4363
  %v4365 = vrot.slane %v3797, 1
  %v4366 = vrot.slane %v3829, 1
  %v4367 = vsel %vm1110, %v4365, %v4366
  %v4368 = vrot.slane %v3798, 1
  %v4369 = vrot.slane %v3830, 1
  %v4370 = vsel %vm1110, %v4368, %v4369
  %v4371 = vrot.slane %v3799, 1
  %v4372 = vrot.slane %v3831, 1
  %v4373 = vsel %vm1110, %v4371, %v4372
  %v4374 = vrot.slane %v3800, 1
  %v4375 = vrot.slane %v3832, 1
  %v4376 = vsel %vm1110, %v4374, %v4375
  %v4377 = vrot.slane %v3802, 1
  %v4378 = vrot.slane %v3834, 1
  %v4379 = vsel %vm1110, %v4377, %v4378
  %v4380 = vrot.slane %v3803, 1
  %v4381 = vrot.slane %v3835, 1
  %v4382 = vsel %vm1110, %v4380, %v4381
  %v4383 = vrot.slane %v3804, 1
  %v4384 = vrot.slane %v3836, 1
  %v4385 = vsel %vm1110, %v4383, %v4384
  %v4386 = vrot.slane %v3805, 1
  %v4387 = vrot.slane %v3837, 1
  %v4388 = vsel %vm1110, %v4386, %v4387
  %v4389 = vrot.slane %v3806, 1
  %v4390 = vrot.slane %v3838, 1
  %v4391 = vsel %vm1110, %v4389, %v4390
  %v4392 = vrot.slane %v3807, 1
  %v4393 = vrot.slane %v3839, 1
  %v4394 = vsel %vm1110, %v4392, %v4393
  %v4395 = vrot.slane %v3808, 1
  %v4396 = vrot.slane %v3840, 1
  %v4397 = vsel %vm1110, %v4395, %v4396
  %v4398 = vrot.slane %v3809, 1
  %v4399 = vrot.slane %v3841, 1
  %v4400 = vsel %vm1110, %v4398, %v4399
  %v4401 = vrot.slane %v3810, 1
  %v4402 = vrot.slane %v3842, 1
  %v4403 = vsel %vm1110, %v4401, %v4402
  %v4404 = vrot.slane %v3811, 1
  %v4405 = vrot.slane %v3843, 1
  %v4406 = vsel %vm1110, %v4404, %v4405
  %v4407 = vrot.slane %v3812, 1
  %v4408 = vrot.slane %v3844, 1
  %v4409 = vsel %vm1110, %v4407, %v4408
  %v4410 = vrot.slane %v3813, 1
  %v4411 = vrot.slane %v3845, 1
  %v4412 = vsel %vm1110, %v4410, %v4411
  %v4413 = vrot.slane %v3814, 1
  %v4414 = vrot.slane %v3846, 1
  %v4415 = vsel %vm1110, %v4413, %v4414
  %v4416 = vrot.slane %v3815, 1
  %v4417 = vrot.slane %v3847, 1
  %v4418 = vsel %vm1110, %v4416, %v4417
  %v4419 = vrot.slane %v3816, 1
  %v4420 = vrot.slane %v3848, 1
  %v4421 = vsel %vm1110, %v4419, %v4420
  %4422 = vrot.lane.b32.xlu0 %v1112, 64
  %v4423 = vpop.permute.xlu0 %4422
  %4424 = vrot.lane.b32.xlu0 %v4334, 64
  %v4425 = vpop.permute.xlu0 %4424
  %4426 = vrot.lane.b32.xlu0 %v4337, 64
  %v4427 = vpop.permute.xlu0 %4426
  %4428 = vrot.lane.b32.xlu0 %v4340, 64
  %v4429 = vpop.permute.xlu0 %4428
  %4430 = vrot.lane.b32.xlu0 %v4343, 64
  %v4431 = vpop.permute.xlu0 %4430
  %4432 = vrot.lane.b32.xlu0 %v4346, 64
  %v4433 = vpop.permute.xlu0 %4432
  %4434 = vrot.lane.b32.xlu0 %v4349, 64
  %v4435 = vpop.permute.xlu0 %4434
  %4436 = vrot.lane.b32.xlu0 %v4352, 64
  %v4437 = vpop.permute.xlu0 %4436
  %4438 = vrot.lane.b32.xlu0 %v4355, 64
  %v4439 = vpop.permute.xlu0 %4438
  %4440 = vrot.lane.b32.xlu0 %v4358, 64
  %v4441 = vpop.permute.xlu0 %4440
  %4442 = vrot.lane.b32.xlu0 %v4361, 64
  %v4443 = vpop.permute.xlu0 %4442
  %4444 = vrot.lane.b32.xlu0 %v4364, 64
  %v4445 = vpop.permute.xlu0 %4444
  %4446 = vrot.lane.b32.xlu0 %v4367, 64
  %v4447 = vpop.permute.xlu0 %4446
  %4448 = vrot.lane.b32.xlu0 %v4370, 64
  %v4449 = vpop.permute.xlu0 %4448
  %4450 = vrot.lane.b32.xlu0 %v4373, 64
  %v4451 = vpop.permute.xlu0 %4450
  %4452 = vrot.lane.b32.xlu0 %v4376, 64
  %v4453 = vpop.permute.xlu0 %4452
  %4454 = vrot.lane.b32.xlu0 %v4379, 64
  %v4455 = vpop.permute.xlu0 %4454
  %4456 = vrot.lane.b32.xlu0 %v4382, 64
  %v4457 = vpop.permute.xlu0 %4456
  %4458 = vrot.lane.b32.xlu0 %v4385, 64
  %v4459 = vpop.permute.xlu0 %4458
  %4460 = vrot.lane.b32.xlu0 %v4388, 64
  %v4461 = vpop.permute.xlu0 %4460
  %4462 = vrot.lane.b32.xlu0 %v4391, 64
  %v4463 = vpop.permute.xlu0 %4462
  %4464 = vrot.lane.b32.xlu0 %v4394, 64
  %v4465 = vpop.permute.xlu0 %4464
  %4466 = vrot.lane.b32.xlu0 %v4397, 64
  %v4467 = vpop.permute.xlu0 %4466
  %4468 = vrot.lane.b32.xlu0 %v4400, 64
  %v4469 = vpop.permute.xlu0 %4468
  %4470 = vrot.lane.b32.xlu0 %v4403, 64
  %v4471 = vpop.permute.xlu0 %4470
  %4472 = vrot.lane.b32.xlu0 %v4406, 64
  %v4473 = vpop.permute.xlu0 %4472
  %4474 = vrot.lane.b32.xlu0 %v4409, 64
  %v4475 = vpop.permute.xlu0 %4474
  %4476 = vrot.lane.b32.xlu0 %v4412, 64
  %v4477 = vpop.permute.xlu0 %4476
  %4478 = vrot.lane.b32.xlu0 %v4415, 64
  %v4479 = vpop.permute.xlu0 %4478
  %4480 = vrot.lane.b32.xlu0 %v4418, 64
  %v4481 = vpop.permute.xlu0 %4480
  %4482 = vrot.lane.b32.xlu0 %v4421, 64
  %v4483 = vpop.permute.xlu0 %4482
  %4486 = vrot.lane.b32.xlu0 %v3786, 96
  %v4487 = vpop.permute.xlu0 %4486
  %4488 = vrot.lane.b32.xlu0 %v3787, 96
  %v4489 = vpop.permute.xlu0 %4488
  %4490 = vrot.lane.b32.xlu0 %v3788, 96
  %v4491 = vpop.permute.xlu0 %4490
  %4492 = vrot.lane.b32.xlu0 %v3789, 96
  %v4493 = vpop.permute.xlu0 %4492
  %4494 = vrot.lane.b32.xlu0 %v3790, 96
  %v4495 = vpop.permute.xlu0 %4494
  %4496 = vrot.lane.b32.xlu0 %v3791, 96
  %v4497 = vpop.permute.xlu0 %4496
  %4498 = vrot.lane.b32.xlu0 %v3792, 96
  %v4499 = vpop.permute.xlu0 %4498
  %4500 = vrot.lane.b32.xlu0 %v3793, 96
  %v4501 = vpop.permute.xlu0 %4500
  %4502 = vrot.lane.b32.xlu0 %v3794, 96
  %v4503 = vpop.permute.xlu0 %4502
  %4504 = vrot.lane.b32.xlu0 %v3795, 96
  %v4505 = vpop.permute.xlu0 %4504
  %4506 = vrot.lane.b32.xlu0 %v3796, 96
  %v4507 = vpop.permute.xlu0 %4506
  %4508 = vrot.lane.b32.xlu0 %v3797, 96
  %v4509 = vpop.permute.xlu0 %4508
  %4510 = vrot.lane.b32.xlu0 %v3798, 96
  %v4511 = vpop.permute.xlu0 %4510
  %4512 = vrot.lane.b32.xlu0 %v3799, 96
  %v4513 = vpop.permute.xlu0 %4512
  %4514 = vrot.lane.b32.xlu0 %v3800, 96
  %v4515 = vpop.permute.xlu0 %4514
  %4516 = vrot.lane.b32.xlu0 %v3801, 96
  %v4517 = vpop.permute.xlu0 %4516
  %4518 = vrot.lane.b32.xlu0 %v3802, 96
  %v4519 = vpop.permute.xlu0 %4518
  %4520 = vrot.lane.b32.xlu0 %v3803, 96
  %v4521 = vpop.permute.xlu0 %4520
  %4522 = vrot.lane.b32.xlu0 %v3804, 96
  %v4523 = vpop.permute.xlu0 %4522
  %4524 = vrot.lane.b32.xlu0 %v3805, 96
  %v4525 = vpop.permute.xlu0 %4524
  %4526 = vrot.lane.b32.xlu0 %v3806, 96
  %v4527 = vpop.permute.xlu0 %4526
  %4528 = vrot.lane.b32.xlu0 %v3807, 96
  %v4529 = vpop.permute.xlu0 %4528
  %4530 = vrot.lane.b32.xlu0 %v3808, 96
  %v4531 = vpop.permute.xlu0 %4530
  %4532 = vrot.lane.b32.xlu0 %v3809, 96
  %v4533 = vpop.permute.xlu0 %4532
  %4534 = vrot.lane.b32.xlu0 %v3810, 96
  %v4535 = vpop.permute.xlu0 %4534
  %4536 = vrot.lane.b32.xlu0 %v3811, 96
  %v4537 = vpop.permute.xlu0 %4536
  %4538 = vrot.lane.b32.xlu0 %v3812, 96
  %v4539 = vpop.permute.xlu0 %4538
  %4540 = vrot.lane.b32.xlu0 %v3813, 96
  %v4541 = vpop.permute.xlu0 %4540
  %4542 = vrot.lane.b32.xlu0 %v3814, 96
  %v4543 = vpop.permute.xlu0 %4542
  %4544 = vrot.lane.b32.xlu0 %v3815, 96
  %v4545 = vpop.permute.xlu0 %4544
  %4546 = vrot.lane.b32.xlu0 %v3816, 96
  %v4547 = vpop.permute.xlu0 %4546
  %4548 = vrot.lane.b32.xlu0 %v3817, 96
  %v4549 = vpop.permute.xlu0 %4548
  %v4551 = vshrl.u32 %v3801, 16
  %v4553 = vshll.u32 %v3801, 16
  %v4555 = vrot.slane %v4553, 1
  %v4556 = vor.u32 %v4551, %v4555
  %v4558 = vshll.u32 %v3833, 16
  %v4560 = vrot.slane %v4558, 1
  %v4561 = vsel %vm618, %v4556, %v4560
  %v4563 = vshrl.u32 %v3817, 16
  %v4565 = vshll.u32 %v3817, 16
  %v4567 = vrot.slane %v4565, 1
  %v4568 = vor.u32 %v4563, %v4567
  %v4570 = vshll.u32 %v3849, 16
  %v4572 = vrot.slane %v4570, 1
  %v4573 = vsel %vm618, %v4568, %v4572
  %v4576 = vrot.slane %v3801, 1
  %v4577 = vrot.slane %v3833, 1
  %v4578 = vsel %vm1110, %v4576, %v4577
  %v4579 = vrot.slane %v3817, 1
  %v4580 = vrot.slane %v3849, 1
  %v4581 = vsel %vm1110, %v4579, %v4580
  %4582 = vrot.lane.b32.xlu0 %v4334, 32
  %v4583 = vpop.permute.xlu0 %4582
  %4584 = vrot.lane.b32.xlu0 %v4337, 32
  %v4585 = vpop.permute.xlu0 %4584
  %4586 = vrot.lane.b32.xlu0 %v4340, 32
  %v4587 = vpop.permute.xlu0 %4586
  %4588 = vrot.lane.b32.xlu0 %v4343, 32
  %v4589 = vpop.permute.xlu0 %4588
  %4590 = vrot.lane.b32.xlu0 %v4346, 32
  %v4591 = vpop.permute.xlu0 %4590
  %4592 = vrot.lane.b32.xlu0 %v4349, 32
  %v4593 = vpop.permute.xlu0 %4592
  %4594 = vrot.lane.b32.xlu0 %v4352, 32
  %v4595 = vpop.permute.xlu0 %4594
  %4596 = vrot.lane.b32.xlu0 %v4355, 32
  %v4597 = vpop.permute.xlu0 %4596
  %4598 = vrot.lane.b32.xlu0 %v4358, 32
  %v4599 = vpop.permute.xlu0 %4598
  %4600 = vrot.lane.b32.xlu0 %v4361, 32
  %v4601 = vpop.permute.xlu0 %4600
  %4602 = vrot.lane.b32.xlu0 %v4364, 32
  %v4603 = vpop.permute.xlu0 %4602
  %4604 = vrot.lane.b32.xlu0 %v4367, 32
  %v4605 = vpop.permute.xlu0 %4604
  %4606 = vrot.lane.b32.xlu0 %v4370, 32
  %v4607 = vpop.permute.xlu0 %4606
  %4608 = vrot.lane.b32.xlu0 %v4373, 32
  %v4609 = vpop.permute.xlu0 %4608
  %4610 = vrot.lane.b32.xlu0 %v4376, 32
  %v4611 = vpop.permute.xlu0 %4610
  %4612 = vrot.lane.b32.xlu0 %v4578, 32
  %v4613 = vpop.permute.xlu0 %4612
  %4614 = vrot.lane.b32.xlu0 %v4379, 32
  %v4615 = vpop.permute.xlu0 %4614
  %4616 = vrot.lane.b32.xlu0 %v4382, 32
  %v4617 = vpop.permute.xlu0 %4616
  %4618 = vrot.lane.b32.xlu0 %v4385, 32
  %v4619 = vpop.permute.xlu0 %4618
  %4620 = vrot.lane.b32.xlu0 %v4388, 32
  %v4621 = vpop.permute.xlu0 %4620
  %4622 = vrot.lane.b32.xlu0 %v4391, 32
  %v4623 = vpop.permute.xlu0 %4622
  %4624 = vrot.lane.b32.xlu0 %v4394, 32
  %v4625 = vpop.permute.xlu0 %4624
  %4626 = vrot.lane.b32.xlu0 %v4397, 32
  %v4627 = vpop.permute.xlu0 %4626
  %4628 = vrot.lane.b32.xlu0 %v4400, 32
  %v4629 = vpop.permute.xlu0 %4628
  %4630 = vrot.lane.b32.xlu0 %v4403, 32
  %v4631 = vpop.permute.xlu0 %4630
  %4632 = vrot.lane.b32.xlu0 %v4406, 32
  %v4633 = vpop.permute.xlu0 %4632
  %4634 = vrot.lane.b32.xlu0 %v4409, 32
  %v4635 = vpop.permute.xlu0 %4634
  %4636 = vrot.lane.b32.xlu0 %v4412, 32
  %v4637 = vpop.permute.xlu0 %4636
  %4638 = vrot.lane.b32.xlu0 %v4415, 32
  %v4639 = vpop.permute.xlu0 %4638
  %4640 = vrot.lane.b32.xlu0 %v4418, 32
  %v4641 = vpop.permute.xlu0 %4640
  %4642 = vrot.lane.b32.xlu0 %v4421, 32
  %v4643 = vpop.permute.xlu0 %4642
  %4644 = vrot.lane.b32.xlu0 %v4581, 32
  %v4645 = vpop.permute.xlu0 %4644
  %4646 = vrot.lane.b32.xlu0 %v3787, 64
  %v4647 = vpop.permute.xlu0 %4646
  %4648 = vrot.lane.b32.xlu0 %v3788, 64
  %v4649 = vpop.permute.xlu0 %4648
  %4650 = vrot.lane.b32.xlu0 %v3789, 64
  %v4651 = vpop.permute.xlu0 %4650
  %4652 = vrot.lane.b32.xlu0 %v3790, 64
  %v4653 = vpop.permute.xlu0 %4652
  %4654 = vrot.lane.b32.xlu0 %v3791, 64
  %v4655 = vpop.permute.xlu0 %4654
  %4656 = vrot.lane.b32.xlu0 %v3792, 64
  %v4657 = vpop.permute.xlu0 %4656
  %4658 = vrot.lane.b32.xlu0 %v3793, 64
  %v4659 = vpop.permute.xlu0 %4658
  %4660 = vrot.lane.b32.xlu0 %v3794, 64
  %v4661 = vpop.permute.xlu0 %4660
  %4662 = vrot.lane.b32.xlu0 %v3795, 64
  %v4663 = vpop.permute.xlu0 %4662
  %4664 = vrot.lane.b32.xlu0 %v3796, 64
  %v4665 = vpop.permute.xlu0 %4664
  %4666 = vrot.lane.b32.xlu0 %v3797, 64
  %v4667 = vpop.permute.xlu0 %4666
  %4668 = vrot.lane.b32.xlu0 %v3798, 64
  %v4669 = vpop.permute.xlu0 %4668
  %4670 = vrot.lane.b32.xlu0 %v3799, 64
  %v4671 = vpop.permute.xlu0 %4670
  %4672 = vrot.lane.b32.xlu0 %v3800, 64
  %v4673 = vpop.permute.xlu0 %4672
  %4674 = vrot.lane.b32.xlu0 %v3801, 64
  %v4675 = vpop.permute.xlu0 %4674
  %4676 = vrot.lane.b32.xlu0 0, 64
  %v4677 = vpop.permute.xlu0 %4676
  %4678 = vrot.lane.b32.xlu0 %v3803, 64
  %v4679 = vpop.permute.xlu0 %4678
  %4680 = vrot.lane.b32.xlu0 %v3804, 64
  %v4681 = vpop.permute.xlu0 %4680
  %4682 = vrot.lane.b32.xlu0 %v3805, 64
  %v4683 = vpop.permute.xlu0 %4682
  %4684 = vrot.lane.b32.xlu0 %v3806, 64
  %v4685 = vpop.permute.xlu0 %4684
  %4686 = vrot.lane.b32.xlu0 %v3807, 64
  %v4687 = vpop.permute.xlu0 %4686
  %4688 = vrot.lane.b32.xlu0 %v3808, 64
  %v4689 = vpop.permute.xlu0 %4688
  %4690 = vrot.lane.b32.xlu0 %v3809, 64
  %v4691 = vpop.permute.xlu0 %4690
  %4692 = vrot.lane.b32.xlu0 %v3810, 64
  %v4693 = vpop.permute.xlu0 %4692
  %4694 = vrot.lane.b32.xlu0 %v3811, 64
  %v4695 = vpop.permute.xlu0 %4694
  %4696 = vrot.lane.b32.xlu0 %v3812, 64
  %v4697 = vpop.permute.xlu0 %4696
  %4698 = vrot.lane.b32.xlu0 %v3813, 64
  %v4699 = vpop.permute.xlu0 %4698
  %4700 = vrot.lane.b32.xlu0 %v3814, 64
  %v4701 = vpop.permute.xlu0 %4700
  %4702 = vrot.lane.b32.xlu0 %v3815, 64
  %v4703 = vpop.permute.xlu0 %4702
  %4704 = vrot.lane.b32.xlu0 %v3816, 64
  %v4705 = vpop.permute.xlu0 %4704
  %4706 = vrot.lane.b32.xlu0 %v3817, 64
  %v4707 = vpop.permute.xlu0 %4706
  %4708 = vrot.lane.b32.xlu0 %v3873, 96
  %v4709 = vpop.permute.xlu0 %4708
  %4710 = vrot.lane.b32.xlu0 %v3885, 96
  %v4711 = vpop.permute.xlu0 %4710
  %4712 = vrot.lane.b32.xlu0 %v3897, 96
  %v4713 = vpop.permute.xlu0 %4712
  %4714 = vrot.lane.b32.xlu0 %v3909, 96
  %v4715 = vpop.permute.xlu0 %4714
  %4716 = vrot.lane.b32.xlu0 %v3921, 96
  %v4717 = vpop.permute.xlu0 %4716
  %4718 = vrot.lane.b32.xlu0 %v3933, 96
  %v4719 = vpop.permute.xlu0 %4718
  %4720 = vrot.lane.b32.xlu0 %v3945, 96
  %v4721 = vpop.permute.xlu0 %4720
  %4722 = vrot.lane.b32.xlu0 %v3957, 96
  %v4723 = vpop.permute.xlu0 %4722
  %4724 = vrot.lane.b32.xlu0 %v3969, 96
  %v4725 = vpop.permute.xlu0 %4724
  %4726 = vrot.lane.b32.xlu0 %v3981, 96
  %v4727 = vpop.permute.xlu0 %4726
  %4728 = vrot.lane.b32.xlu0 %v3993, 96
  %v4729 = vpop.permute.xlu0 %4728
  %4730 = vrot.lane.b32.xlu0 %v4005, 96
  %v4731 = vpop.permute.xlu0 %4730
  %4732 = vrot.lane.b32.xlu0 %v4017, 96
  %v4733 = vpop.permute.xlu0 %4732
  %4734 = vrot.lane.b32.xlu0 %v4029, 96
  %v4735 = vpop.permute.xlu0 %4734
  %4736 = vrot.lane.b32.xlu0 %v4561, 96
  %v4737 = vpop.permute.xlu0 %4736
  %4738 = vrot.lane.b32.xlu0 %v626, 96
  %v4739 = vpop.permute.xlu0 %4738
  %4740 = vrot.lane.b32.xlu0 %v4053, 96
  %v4741 = vpop.permute.xlu0 %4740
  %4742 = vrot.lane.b32.xlu0 %v4065, 96
  %v4743 = vpop.permute.xlu0 %4742
  %4744 = vrot.lane.b32.xlu0 %v4077, 96
  %v4745 = vpop.permute.xlu0 %4744
  %4746 = vrot.lane.b32.xlu0 %v4089, 96
  %v4747 = vpop.permute.xlu0 %4746
  %4748 = vrot.lane.b32.xlu0 %v4101, 96
  %v4749 = vpop.permute.xlu0 %4748
  %4750 = vrot.lane.b32.xlu0 %v4113, 96
  %v4751 = vpop.permute.xlu0 %4750
  %4752 = vrot.lane.b32.xlu0 %v4125, 96
  %v4753 = vpop.permute.xlu0 %4752
  %4754 = vrot.lane.b32.xlu0 %v4137, 96
  %v4755 = vpop.permute.xlu0 %4754
  %4756 = vrot.lane.b32.xlu0 %v4149, 96
  %v4757 = vpop.permute.xlu0 %4756
  %4758 = vrot.lane.b32.xlu0 %v4161, 96
  %v4759 = vpop.permute.xlu0 %4758
  %4760 = vrot.lane.b32.xlu0 %v4173, 96
  %v4761 = vpop.permute.xlu0 %4760
  %4762 = vrot.lane.b32.xlu0 %v4185, 96
  %v4763 = vpop.permute.xlu0 %4762
  %4764 = vrot.lane.b32.xlu0 %v4197, 96
  %v4765 = vpop.permute.xlu0 %4764
  %4766 = vrot.lane.b32.xlu0 %v4209, 96
  %v4767 = vpop.permute.xlu0 %4766
  %4768 = vrot.lane.b32.xlu0 %v4573, 96
  %v4769 = vpop.permute.xlu0 %4768
  %v4771 = vsel %vm1678, 0, %v4211
  %v4773 = vsel %vm1678, %v3786, %v4213
  %v4775 = vsel %vm1678, %v3787, %v4215
  %v4777 = vsel %vm1678, %v3788, %v4217
  %v4779 = vsel %vm1678, %v3789, %v4219
  %v4781 = vsel %vm1678, %v3790, %v4221
  %v4783 = vsel %vm1678, %v3791, %v4223
  %v4785 = vsel %vm1678, %v3792, %v4225
  %v4787 = vsel %vm1678, %v3793, %v4227
  %v4789 = vsel %vm1678, %v3794, %v4229
  %v4791 = vsel %vm1678, %v3795, %v4231
  %v4793 = vsel %vm1678, %v3796, %v4233
  %v4795 = vsel %vm1678, %v3797, %v4235
  %v4797 = vsel %vm1678, %v3798, %v4237
  %v4799 = vsel %vm1678, %v3799, %v4239
  %v4801 = vsel %vm1678, %v3800, %v4241
  %v4803 = vsel %vm1678, %v3802, %v4243
  %v4805 = vsel %vm1678, %v3803, %v4245
  %v4807 = vsel %vm1678, %v3804, %v4247
  %v4809 = vsel %vm1678, %v3805, %v4249
  %v4811 = vsel %vm1678, %v3806, %v4251
  %v4813 = vsel %vm1678, %v3807, %v4253
  %v4815 = vsel %vm1678, %v3808, %v4255
  %v4817 = vsel %vm1678, %v3809, %v4257
  %v4819 = vsel %vm1678, %v3810, %v4259
  %v4821 = vsel %vm1678, %v3811, %v4261
  %v4823 = vsel %vm1678, %v3812, %v4263
  %v4825 = vsel %vm1678, %v3813, %v4265
  %v4827 = vsel %vm1678, %v3814, %v4267
  %v4829 = vsel %vm1678, %v3815, %v4269
  %v4831 = vsel %vm1678, %v3816, %v4271
  %v4833 = vsel %vm1806, %v4771, %v4423
  %v4835 = vsel %vm1806, %v4773, %v4425
  %v4837 = vsel %vm1806, %v4775, %v4427
  %v4839 = vsel %vm1806, %v4777, %v4429
  %v4841 = vsel %vm1806, %v4779, %v4431
  %v4843 = vsel %vm1806, %v4781, %v4433
  %v4845 = vsel %vm1806, %v4783, %v4435
  %v4847 = vsel %vm1806, %v4785, %v4437
  %v4849 = vsel %vm1806, %v4787, %v4439
  %v4851 = vsel %vm1806, %v4789, %v4441
  %v4853 = vsel %vm1806, %v4791, %v4443
  %v4855 = vsel %vm1806, %v4793, %v4445
  %v4857 = vsel %vm1806, %v4795, %v4447
  %v4859 = vsel %vm1806, %v4797, %v4449
  %v4861 = vsel %vm1806, %v4799, %v4451
  %v4863 = vsel %vm1806, %v4801, %v4453
  %v4865 = vsel %vm1806, %v4803, %v4455
  %v4867 = vsel %vm1806, %v4805, %v4457
  %v4869 = vsel %vm1806, %v4807, %v4459
  %v4871 = vsel %vm1806, %v4809, %v4461
  %v4873 = vsel %vm1806, %v4811, %v4463
  %v4875 = vsel %vm1806, %v4813, %v4465
  %v4877 = vsel %vm1806, %v4815, %v4467
  %v4879 = vsel %vm1806, %v4817, %v4469
  %v4881 = vsel %vm1806, %v4819, %v4471
  %v4883 = vsel %vm1806, %v4821, %v4473
  %v4885 = vsel %vm1806, %v4823, %v4475
  %v4887 = vsel %vm1806, %v4825, %v4477
  %v4889 = vsel %vm1806, %v4827, %v4479
  %v4891 = vsel %vm1806, %v4829, %v4481
  %v4893 = vsel %vm1806, %v4831, %v4483
  %v4895 = vsel %vm1936, %v4833, %v4487
  %v4898 = vsel %vm1936, %v4835, %v4489
  %v4901 = vsel %vm1936, %v4837, %v4491
  %v4904 = vsel %vm1936, %v4839, %v4493
  %v4907 = vsel %vm1936, %v4841, %v4495
  %v4910 = vsel %vm1936, %v4843, %v4497
  %v4913 = vsel %vm1936, %v4845, %v4499
  %v4916 = vsel %vm1936, %v4847, %v4501
  %v4919 = vsel %vm1936, %v4849, %v4503
  %v4922 = vsel %vm1936, %v4851, %v4505
  %v4925 = vsel %vm1936, %v4853, %v4507
  %v4928 = vsel %vm1936, %v4855, %v4509
  %v4931 = vsel %vm1936, %v4857, %v4511
  %v4934 = vsel %vm1936, %v4859, %v4513
  %v4937 = vsel %vm1936, %v4861, %v4515
  %v4940 = vsel %vm1936, %v4863, %v4517
  %v4943 = vsel %vm1936, %v4833, %v4519
  %v4946 = vsel %vm1936, %v4865, %v4521
  %v4949 = vsel %vm1936, %v4867, %v4523
  %v4952 = vsel %vm1936, %v4869, %v4525
  %v4955 = vsel %vm1936, %v4871, %v4527
  %v4958 = vsel %vm1936, %v4873, %v4529
  %v4961 = vsel %vm1936, %v4875, %v4531
  %v4964 = vsel %vm1936, %v4877, %v4533
  %v4967 = vsel %vm1936, %v4879, %v4535
  %v4970 = vsel %vm1936, %v4881, %v4537
  %v4973 = vsel %vm1936, %v4883, %v4539
  %v4976 = vsel %vm1936, %v4885, %v4541
  %v4979 = vsel %vm1936, %v4887, %v4543
  %v4982 = vsel %vm1936, %v4889, %v4545
  %v4985 = vsel %vm1936, %v4891, %v4547
  %v4988 = vsel %vm1936, %v4893, %v4549
  %v4992 = vsel %vm1678, %v3861, %v4583
  %v4995 = vsel %vm1678, %v3873, %v4585
  %v4998 = vsel %vm1678, %v3885, %v4587
  %v5001 = vsel %vm1678, %v3897, %v4589
  %v5004 = vsel %vm1678, %v3909, %v4591
  %v5007 = vsel %vm1678, %v3921, %v4593
  %v5010 = vsel %vm1678, %v3933, %v4595
  %v5013 = vsel %vm1678, %v3945, %v4597
  %v5016 = vsel %vm1678, %v3957, %v4599
  %v5019 = vsel %vm1678, %v3969, %v4601
  %v5022 = vsel %vm1678, %v3981, %v4603
  %v5025 = vsel %vm1678, %v3993, %v4605
  %v5028 = vsel %vm1678, %v4005, %v4607
  %v5031 = vsel %vm1678, %v4017, %v4609
  %v5034 = vsel %vm1678, %v4029, %v4611
  %v5037 = vsel %vm1678, %v4561, %v4613
  %v5040 = vsel %vm1678, %v4041, %v4615
  %v5043 = vsel %vm1678, %v4053, %v4617
  %v5046 = vsel %vm1678, %v4065, %v4619
  %v5049 = vsel %vm1678, %v4077, %v4621
  %v5052 = vsel %vm1678, %v4089, %v4623
  %v5055 = vsel %vm1678, %v4101, %v4625
  %v5058 = vsel %vm1678, %v4113, %v4627
  %v5061 = vsel %vm1678, %v4125, %v4629
  %v5064 = vsel %vm1678, %v4137, %v4631
  %v5067 = vsel %vm1678, %v4149, %v4633
  %v5070 = vsel %vm1678, %v4161, %v4635
  %v5073 = vsel %vm1678, %v4173, %v4637
  %v5076 = vsel %vm1678, %v4185, %v4639
  %v5079 = vsel %vm1678, %v4197, %v4641
  %v5082 = vsel %vm1678, %v4209, %v4643
  %v5085 = vsel %vm1678, %v4573, %v4645
  %v5087 = vsel %vm1806, %v4992, %v4647
  %v5089 = vsel %vm1806, %v4995, %v4649
  %v5091 = vsel %vm1806, %v4998, %v4651
  %v5093 = vsel %vm1806, %v5001, %v4653
  %v5095 = vsel %vm1806, %v5004, %v4655
  %v5097 = vsel %vm1806, %v5007, %v4657
  %v5099 = vsel %vm1806, %v5010, %v4659
  %v5101 = vsel %vm1806, %v5013, %v4661
  %v5103 = vsel %vm1806, %v5016, %v4663
  %v5105 = vsel %vm1806, %v5019, %v4665
  %v5107 = vsel %vm1806, %v5022, %v4667
  %v5109 = vsel %vm1806, %v5025, %v4669
  %v5111 = vsel %vm1806, %v5028, %v4671
  %v5113 = vsel %vm1806, %v5031, %v4673
  %v5115 = vsel %vm1806, %v5034, %v4675
  %v5117 = vsel %vm1806, %v5037, %v4677
  %v5119 = vsel %vm1806, %v5040, %v4679
  %v5121 = vsel %vm1806, %v5043, %v4681
  %v5123 = vsel %vm1806, %v5046, %v4683
  %v5125 = vsel %vm1806, %v5049, %v4685
  %v5127 = vsel %vm1806, %v5052, %v4687
  %v5129 = vsel %vm1806, %v5055, %v4689
  %v5131 = vsel %vm1806, %v5058, %v4691
  %v5133 = vsel %vm1806, %v5061, %v4693
  %v5135 = vsel %vm1806, %v5064, %v4695
  %v5137 = vsel %vm1806, %v5067, %v4697
  %v5139 = vsel %vm1806, %v5070, %v4699
  %v5141 = vsel %vm1806, %v5073, %v4701
  %v5143 = vsel %vm1806, %v5076, %v4703
  %v5145 = vsel %vm1806, %v5079, %v4705
  %v5147 = vsel %vm1806, %v5082, %v4707
  %v5148 = vsel %vm1806, %v5085, %v4677
  %v5150 = vsel %vm1936, %v5087, %v4709
  %v5153 = vsel %vm1936, %v5089, %v4711
  %v5156 = vsel %vm1936, %v5091, %v4713
  %v5159 = vsel %vm1936, %v5093, %v4715
  %v5162 = vsel %vm1936, %v5095, %v4717
  %v5165 = vsel %vm1936, %v5097, %v4719
  %v5168 = vsel %vm1936, %v5099, %v4721
  %v5171 = vsel %vm1936, %v5101, %v4723
  %v5174 = vsel %vm1936, %v5103, %v4725
  %v5177 = vsel %vm1936, %v5105, %v4727
  %v5180 = vsel %vm1936, %v5107, %v4729
  %v5183 = vsel %vm1936, %v5109, %v4731
  %v5186 = vsel %vm1936, %v5111, %v4733
  %v5189 = vsel %vm1936, %v5113, %v4735
  %v5192 = vsel %vm1936, %v5115, %v4737
  %v5195 = vsel %vm1936, %v5117, %v4739
  %v5198 = vsel %vm1936, %v5119, %v4741
  %v5201 = vsel %vm1936, %v5121, %v4743
  %v5204 = vsel %vm1936, %v5123, %v4745
  %v5207 = vsel %vm1936, %v5125, %v4747
  %v5210 = vsel %vm1936, %v5127, %v4749
  %v5213 = vsel %vm1936, %v5129, %v4751
  %v5216 = vsel %vm1936, %v5131, %v4753
  %v5219 = vsel %vm1936, %v5133, %v4755
  %v5222 = vsel %vm1936, %v5135, %v4757
  %v5225 = vsel %vm1936, %v5137, %v4759
  %v5228 = vsel %vm1936, %v5139, %v4761
  %v5231 = vsel %vm1936, %v5141, %v4763
  %v5234 = vsel %vm1936, %v5143, %v4765
  %v5237 = vsel %vm1936, %v5145, %v4767
  %v5240 = vsel %vm1936, %v5147, %v4769
  %v5242 = vsel %vm1936, %v5148, %v4739
  %v5245 = vsel %vm1678, %v4337, 0
  %v5248 = vsel %vm1678, %v4340, 0
  %v5251 = vsel %vm1678, %v4343, 0
  %v5254 = vsel %vm1678, %v4346, 0
  %v5257 = vsel %vm1678, %v4349, 0
  %v5260 = vsel %vm1678, %v4352, 0
  %v5263 = vsel %vm1678, %v4355, 0
  %v5266 = vsel %vm1678, %v4358, 0
  %v5269 = vsel %vm1678, %v4361, 0
  %v5272 = vsel %vm1678, %v4364, 0
  %v5275 = vsel %vm1678, %v4367, 0
  %v5278 = vsel %vm1678, %v4370, 0
  %v5281 = vsel %vm1678, %v4373, 0
  %v5284 = vsel %vm1678, %v4376, 0
  %v5287 = vsel %vm1678, %v4578, 0
  %v5289 = vsel %vm1678, %v1112, 0
  %v5292 = vsel %vm1678, %v4382, 0
  %v5295 = vsel %vm1678, %v4385, 0
  %v5298 = vsel %vm1678, %v4388, 0
  %v5301 = vsel %vm1678, %v4391, 0
  %v5304 = vsel %vm1678, %v4394, 0
  %v5307 = vsel %vm1678, %v4397, 0
  %v5310 = vsel %vm1678, %v4400, 0
  %v5313 = vsel %vm1678, %v4403, 0
  %v5316 = vsel %vm1678, %v4406, 0
  %v5319 = vsel %vm1678, %v4409, 0
  %v5322 = vsel %vm1678, %v4412, 0
  %v5325 = vsel %vm1678, %v4415, 0
  %v5328 = vsel %vm1678, %v4418, 0
  %v5331 = vsel %vm1678, %v4421, 0
  %v5334 = vsel %vm1678, %v4581, 0
  %v5336 = vld [vmem:[%s5] sm:$0xf]
  %v5337 = vld [vmem:[%s5 + $0x4] sm:$0xf]
  %v5338 = vld [vmem:[%s5 + $0x8] sm:$0xf]
  %v5339 = vld [vmem:[%s5 + $0xc] sm:$0xf]
  %v5340 = vld [vmem:[%s5 + $0x10] sm:$0xf]
  %v5341 = vld [vmem:[%s5 + $0x14] sm:$0xf]
  %v5342 = vld [vmem:[%s5 + $0x18] sm:$0xf]
  %v5343 = vld [vmem:[%s5 + $0x1c] sm:$0xf]
  %v5344 = vld [vmem:[%s5 + $0x20] sm:$0xf]
  %v5345 = vld [vmem:[%s5 + $0x24] sm:$0xf]
  %v5346 = vld [vmem:[%s5 + $0x28] sm:$0xf]
  %v5347 = vld [vmem:[%s5 + $0x2c] sm:$0xf]
  %v5348 = vld [vmem:[%s5 + $0x30] sm:$0xf]
  %v5349 = vld [vmem:[%s5 + $0x34] sm:$0xf]
  %v5350 = vld [vmem:[%s5 + $0x38] sm:$0xf]
  %v5351 = vld [vmem:[%s5 + $0x3c] sm:$0xf]
  %v5352 = vld [vmem:[%s5 + $0x40] sm:$0xf]
  %v5353 = vld [vmem:[%s5 + $0x44] sm:$0xf]
  %v5354 = vld [vmem:[%s5 + $0x48] sm:$0xf]
  %v5355 = vld [vmem:[%s5 + $0x4c] sm:$0xf]
  %v5356 = vld [vmem:[%s5 + $0x50] sm:$0xf]
  %v5357 = vld [vmem:[%s5 + $0x54] sm:$0xf]
  %v5358 = vld [vmem:[%s5 + $0x58] sm:$0xf]
  %v5359 = vld [vmem:[%s5 + $0x5c] sm:$0xf]
  %v5360 = vld [vmem:[%s5 + $0x60] sm:$0xf]
  %v5361 = vld [vmem:[%s5 + $0x64] sm:$0xf]
  %v5362 = vld [vmem:[%s5 + $0x68] sm:$0xf]
  %v5363 = vld [vmem:[%s5 + $0x6c] sm:$0xf]
  %v5364 = vld [vmem:[%s5 + $0x70] sm:$0xf]
  %v5365 = vld [vmem:[%s5 + $0x74] sm:$0xf]
  %v5366 = vld [vmem:[%s5 + $0x78] sm:$0xf]
  %v5367 = vld [vmem:[%s5 + $0x7c] sm:$0xf]
  %v5368 = vld [vmem:[%s5 + $0x80] sm:$0xf]
  %v5369 = vld [vmem:[%s5 + $0x84] sm:$0xf]
  %v5370 = vld [vmem:[%s5 + $0x88] sm:$0xf]
  %v5371 = vld [vmem:[%s5 + $0x8c] sm:$0xf]
  %v5372 = vld [vmem:[%s5 + $0x90] sm:$0xf]
  %v5373 = vld [vmem:[%s5 + $0x94] sm:$0xf]
  %v5374 = vld [vmem:[%s5 + $0x98] sm:$0xf]
  %v5375 = vld [vmem:[%s5 + $0x9c] sm:$0xf]
  %v5376 = vld [vmem:[%s5 + $0xa0] sm:$0xf]
  %v5377 = vld [vmem:[%s5 + $0xa4] sm:$0xf]
  %v5378 = vld [vmem:[%s5 + $0xa8] sm:$0xf]
  %v5379 = vld [vmem:[%s5 + $0xac] sm:$0xf]
  %v5380 = vld [vmem:[%s5 + $0xb0] sm:$0xf]
  %v5381 = vld [vmem:[%s5 + $0xb4] sm:$0xf]
  %v5382 = vld [vmem:[%s5 + $0xb8] sm:$0xf]
  %v5383 = vld [vmem:[%s5 + $0xbc] sm:$0xf]
  %v5384 = vld [vmem:[%s6] sm:$0x1]
  %v5386 = vperm.slane %v5384, 0
  %v5436 = vunpack.c.l.b16 %v5336
  %v5437 = vunpack.c.l.b16 %v5337
  %v5438 = vunpack.c.l.b16 %v5338
  %v5439 = vunpack.c.l.b16 %v5339
  %v5440 = vunpack.c.l.b16 %v5340
  %v5441 = vunpack.c.l.b16 %v5341
  %v5442 = vunpack.c.l.b16 %v5342
  %v5443 = vunpack.c.l.b16 %v5343
  %v5444 = vunpack.c.l.b16 %v5344
  %v5445 = vunpack.c.l.b16 %v5345
  %v5446 = vunpack.c.l.b16 %v5346
  %v5447 = vunpack.c.l.b16 %v5347
  %v5448 = vunpack.c.l.b16 %v5348
  %v5449 = vunpack.c.l.b16 %v5349
  %v5450 = vunpack.c.l.b16 %v5350
  %v5451 = vunpack.c.l.b16 %v5351
  %v5452 = vunpack.c.l.b16 %v5352
  %v5453 = vunpack.c.l.b16 %v5353
  %v5454 = vunpack.c.l.b16 %v5354
  %v5455 = vunpack.c.l.b16 %v5355
  %v5456 = vunpack.c.l.b16 %v5356
  %v5457 = vunpack.c.l.b16 %v5357
  %v5458 = vunpack.c.l.b16 %v5358
  %v5459 = vunpack.c.l.b16 %v5359
  %v5460 = vunpack.c.l.b16 %v5360
  %v5461 = vunpack.c.l.b16 %v5361
  %v5462 = vunpack.c.l.b16 %v5362
  %v5463 = vunpack.c.l.b16 %v5363
  %v5464 = vunpack.c.l.b16 %v5364
  %v5465 = vunpack.c.l.b16 %v5365
  %v5466 = vunpack.c.l.b16 %v5366
  %v5467 = vunpack.c.l.b16 %v5367
  %v5468 = vunpack.c.l.b16 %v5368
  %v5469 = vunpack.c.l.b16 %v5369
  %v5470 = vunpack.c.l.b16 %v5370
  %v5471 = vunpack.c.l.b16 %v5371
  %v5472 = vunpack.c.l.b16 %v5372
  %v5473 = vunpack.c.l.b16 %v5373
  %v5474 = vunpack.c.l.b16 %v5374
  %v5475 = vunpack.c.l.b16 %v5375
  %v5476 = vunpack.c.l.b16 %v5376
  %v5477 = vunpack.c.l.b16 %v5377
  %v5478 = vunpack.c.l.b16 %v5378
  %v5479 = vunpack.c.l.b16 %v5379
  %v5480 = vunpack.c.l.b16 %v5380
  %v5481 = vunpack.c.l.b16 %v5381
  %v5482 = vunpack.c.l.b16 %v5382
  %v5483 = vunpack.c.l.b16 %v5383
  %v5484 = vpack.c.b16 %v5437, %v5436
  %v5485 = vpack.c.b16 %v5439, %v5438
  %v5486 = vpack.c.b16 %v5441, %v5440
  %v5487 = vpack.c.b16 %v5443, %v5442
  %v5488 = vpack.c.b16 %v5445, %v5444
  %v5489 = vpack.c.b16 %v5447, %v5446
  %v5490 = vpack.c.b16 %v5449, %v5448
  %v5491 = vpack.c.b16 %v5451, %v5450
  %v5492 = vpack.c.b16 %v5453, %v5452
  %v5493 = vpack.c.b16 %v5455, %v5454
  %v5494 = vpack.c.b16 %v5457, %v5456
  %v5495 = vpack.c.b16 %v5459, %v5458
  %v5496 = vpack.c.b16 %v5461, %v5460
  %v5497 = vpack.c.b16 %v5463, %v5462
  %v5498 = vpack.c.b16 %v5465, %v5464
  %v5499 = vpack.c.b16 %v5467, %v5466
  %v5500 = vpack.c.b16 %v5469, %v5468
  %v5501 = vpack.c.b16 %v5471, %v5470
  %v5502 = vpack.c.b16 %v5473, %v5472
  %v5503 = vpack.c.b16 %v5475, %v5474
  %v5504 = vpack.c.b16 %v5477, %v5476
  %v5505 = vpack.c.b16 %v5479, %v5478
  %v5506 = vpack.c.b16 %v5481, %v5480
  %v5507 = vpack.c.b16 %v5483, %v5482
  %5532 = vmatpush.bf16.msra.mxu0 %v5491
  %5533 = vmatpush.bf16.msra.mxu0 %v5490
  %5534 = vmatpush.bf16.msra.mxu0 %v5489
  %5535 = vmatpush.bf16.msra.mxu0 %v5488
  %5536 = vmatpush.bf16.msra.mxu0 %v5487
  %5537 = vmatpush.bf16.msra.mxu0 %v5486
  %5538 = vmatpush.bf16.msra.mxu0 %v5485
  %5539 = vmatpush.bf16.msra.mxu0 %v5484
  %5540 = vmatmul.bf16.gmra.mxu0 %v4895
  %v5541 = vpop.f32.mrf.mxu0
  %v5542 = vadd.f32 %v5386, %v5541
  %v5543 = vpop.f32.mrf.mxu0
  %v5544 = vadd.f32 %v5386, %v5543
  %5545 = vmatmul.bf16.gmra.mxu0 %v4898
  %v5546 = vpop.f32.mrf.mxu0
  %v5547 = vadd.f32 %v5386, %v5546
  %v5548 = vpop.f32.mrf.mxu0
  %v5549 = vadd.f32 %v5386, %v5548
  %5550 = vmatmul.bf16.gmra.mxu0 %v4901
  %v5551 = vpop.f32.mrf.mxu0
  %v5552 = vadd.f32 %v5386, %v5551
  %v5553 = vpop.f32.mrf.mxu0
  %v5554 = vadd.f32 %v5386, %v5553
  %5555 = vmatmul.bf16.gmra.mxu0 %v4904
  %v5556 = vpop.f32.mrf.mxu0
  %v5557 = vadd.f32 %v5386, %v5556
  %v5558 = vpop.f32.mrf.mxu0
  %v5559 = vadd.f32 %v5386, %v5558
  %5560 = vmatmul.bf16.gmra.mxu0 %v4907
  %v5561 = vpop.f32.mrf.mxu0
  %v5562 = vadd.f32 %v5386, %v5561
  %v5563 = vpop.f32.mrf.mxu0
  %v5564 = vadd.f32 %v5386, %v5563
  %5565 = vmatmul.bf16.gmra.mxu0 %v4910
  %v5566 = vpop.f32.mrf.mxu0
  %v5567 = vadd.f32 %v5386, %v5566
  %v5568 = vpop.f32.mrf.mxu0
  %v5569 = vadd.f32 %v5386, %v5568
  %5570 = vmatmul.bf16.gmra.mxu0 %v4913
  %v5571 = vpop.f32.mrf.mxu0
  %v5572 = vadd.f32 %v5386, %v5571
  %v5573 = vpop.f32.mrf.mxu0
  %v5574 = vadd.f32 %v5386, %v5573
  %5575 = vmatmul.bf16.gmra.mxu0 %v4916
  %v5576 = vpop.f32.mrf.mxu0
  %v5577 = vadd.f32 %v5386, %v5576
  %v5578 = vpop.f32.mrf.mxu0
  %v5579 = vadd.f32 %v5386, %v5578
  %5580 = vmatmul.bf16.gmra.mxu0 %v4919
  %v5581 = vpop.f32.mrf.mxu0
  %v5582 = vadd.f32 %v5386, %v5581
  %v5583 = vpop.f32.mrf.mxu0
  %v5584 = vadd.f32 %v5386, %v5583
  %5585 = vmatmul.bf16.gmra.mxu0 %v4922
  %v5586 = vpop.f32.mrf.mxu0
  %v5587 = vadd.f32 %v5386, %v5586
  %v5588 = vpop.f32.mrf.mxu0
  %v5589 = vadd.f32 %v5386, %v5588
  %5590 = vmatmul.bf16.gmra.mxu0 %v4925
  %v5591 = vpop.f32.mrf.mxu0
  %v5592 = vadd.f32 %v5386, %v5591
  %v5593 = vpop.f32.mrf.mxu0
  %v5594 = vadd.f32 %v5386, %v5593
  %5595 = vmatmul.bf16.gmra.mxu0 %v4928
  %v5596 = vpop.f32.mrf.mxu0
  %v5597 = vadd.f32 %v5386, %v5596
  %v5598 = vpop.f32.mrf.mxu0
  %v5599 = vadd.f32 %v5386, %v5598
  %5600 = vmatmul.bf16.gmra.mxu0 %v4931
  %v5601 = vpop.f32.mrf.mxu0
  %v5602 = vadd.f32 %v5386, %v5601
  %v5603 = vpop.f32.mrf.mxu0
  %v5604 = vadd.f32 %v5386, %v5603
  %5605 = vmatmul.bf16.gmra.mxu0 %v4934
  %v5606 = vpop.f32.mrf.mxu0
  %v5607 = vadd.f32 %v5386, %v5606
  %v5608 = vpop.f32.mrf.mxu0
  %v5609 = vadd.f32 %v5386, %v5608
  %5610 = vmatmul.bf16.gmra.mxu0 %v4937
  %v5611 = vpop.f32.mrf.mxu0
  %v5612 = vadd.f32 %v5386, %v5611
  %v5613 = vpop.f32.mrf.mxu0
  %v5614 = vadd.f32 %v5386, %v5613
  %5615 = vmatmul.bf16.gmra.mxu0 %v4940
  %v5616 = vpop.f32.mrf.mxu0
  %v5617 = vadd.f32 %v5386, %v5616
  %v5618 = vpop.f32.mrf.mxu0
  %v5619 = vadd.f32 %v5386, %v5618
  %5620 = vmatmul.bf16.gmra.mxu0 %v4943
  %v5621 = vpop.f32.mrf.mxu0
  %v5622 = vadd.f32 %v5386, %v5621
  %v5623 = vpop.f32.mrf.mxu0
  %v5624 = vadd.f32 %v5386, %v5623
  %5625 = vmatmul.bf16.gmra.mxu0 %v4946
  %v5626 = vpop.f32.mrf.mxu0
  %v5627 = vadd.f32 %v5386, %v5626
  %v5628 = vpop.f32.mrf.mxu0
  %v5629 = vadd.f32 %v5386, %v5628
  %5630 = vmatmul.bf16.gmra.mxu0 %v4949
  %v5631 = vpop.f32.mrf.mxu0
  %v5632 = vadd.f32 %v5386, %v5631
  %v5633 = vpop.f32.mrf.mxu0
  %v5634 = vadd.f32 %v5386, %v5633
  %5635 = vmatmul.bf16.gmra.mxu0 %v4952
  %v5636 = vpop.f32.mrf.mxu0
  %v5637 = vadd.f32 %v5386, %v5636
  %v5638 = vpop.f32.mrf.mxu0
  %v5639 = vadd.f32 %v5386, %v5638
  %5640 = vmatmul.bf16.gmra.mxu0 %v4955
  %v5641 = vpop.f32.mrf.mxu0
  %v5642 = vadd.f32 %v5386, %v5641
  %v5643 = vpop.f32.mrf.mxu0
  %v5644 = vadd.f32 %v5386, %v5643
  %5645 = vmatmul.bf16.gmra.mxu0 %v4958
  %v5646 = vpop.f32.mrf.mxu0
  %v5647 = vadd.f32 %v5386, %v5646
  %v5648 = vpop.f32.mrf.mxu0
  %v5649 = vadd.f32 %v5386, %v5648
  %5650 = vmatmul.bf16.gmra.mxu0 %v4961
  %v5651 = vpop.f32.mrf.mxu0
  %v5652 = vadd.f32 %v5386, %v5651
  %v5653 = vpop.f32.mrf.mxu0
  %v5654 = vadd.f32 %v5386, %v5653
  %5655 = vmatmul.bf16.gmra.mxu0 %v4964
  %v5656 = vpop.f32.mrf.mxu0
  %v5657 = vadd.f32 %v5386, %v5656
  %v5658 = vpop.f32.mrf.mxu0
  %v5659 = vadd.f32 %v5386, %v5658
  %5660 = vmatmul.bf16.gmra.mxu0 %v4967
  %v5661 = vpop.f32.mrf.mxu0
  %v5662 = vadd.f32 %v5386, %v5661
  %v5663 = vpop.f32.mrf.mxu0
  %v5664 = vadd.f32 %v5386, %v5663
  %5665 = vmatmul.bf16.gmra.mxu0 %v4970
  %v5666 = vpop.f32.mrf.mxu0
  %v5667 = vadd.f32 %v5386, %v5666
  %v5668 = vpop.f32.mrf.mxu0
  %v5669 = vadd.f32 %v5386, %v5668
  %5670 = vmatmul.bf16.gmra.mxu0 %v4973
  %v5671 = vpop.f32.mrf.mxu0
  %v5672 = vadd.f32 %v5386, %v5671
  %v5673 = vpop.f32.mrf.mxu0
  %v5674 = vadd.f32 %v5386, %v5673
  %5675 = vmatmul.bf16.gmra.mxu0 %v4976
  %v5676 = vpop.f32.mrf.mxu0
  %v5677 = vadd.f32 %v5386, %v5676
  %v5678 = vpop.f32.mrf.mxu0
  %v5679 = vadd.f32 %v5386, %v5678
  %5680 = vmatmul.bf16.gmra.mxu0 %v4979
  %v5681 = vpop.f32.mrf.mxu0
  %v5682 = vadd.f32 %v5386, %v5681
  %v5683 = vpop.f32.mrf.mxu0
  %v5684 = vadd.f32 %v5386, %v5683
  %5685 = vmatmul.bf16.gmra.mxu0 %v4982
  %v5686 = vpop.f32.mrf.mxu0
  %v5687 = vadd.f32 %v5386, %v5686
  %v5688 = vpop.f32.mrf.mxu0
  %v5689 = vadd.f32 %v5386, %v5688
  %5690 = vmatmul.bf16.gmra.mxu0 %v4985
  %v5691 = vpop.f32.mrf.mxu0
  %v5692 = vadd.f32 %v5386, %v5691
  %v5693 = vpop.f32.mrf.mxu0
  %v5694 = vadd.f32 %v5386, %v5693
  %5695 = vmatmul.bf16.gmra.mxu0 %v4988
  %v5696 = vpop.f32.mrf.mxu0
  %v5697 = vadd.f32 %v5386, %v5696
  %v5698 = vpop.f32.mrf.mxu0
  %v5699 = vadd.f32 %v5386, %v5698
  %5700 = vdwg.mxu0
  %5701 = vmatpush.bf16.msra.mxu0 %v5499
  %5702 = vmatpush.bf16.msra.mxu0 %v5498
  %5703 = vmatpush.bf16.msra.mxu0 %v5497
  %5704 = vmatpush.bf16.msra.mxu0 %v5496
  %5705 = vmatpush.bf16.msra.mxu0 %v5495
  %5706 = vmatpush.bf16.msra.mxu0 %v5494
  %5707 = vmatpush.bf16.msra.mxu0 %v5493
  %5708 = vmatpush.bf16.msra.mxu0 %v5492
  %5709 = vmatmul.bf16.gmra.mxu0 %v5150
  %v5710 = vpop.f32.mrf.mxu0
  %v5711 = vadd.f32 %v5542, %v5710
  %v5712 = vpop.f32.mrf.mxu0
  %v5713 = vadd.f32 %v5544, %v5712
  %5714 = vmatmul.bf16.gmra.mxu0 %v5153
  %v5715 = vpop.f32.mrf.mxu0
  %v5716 = vadd.f32 %v5547, %v5715
  %v5717 = vpop.f32.mrf.mxu0
  %v5718 = vadd.f32 %v5549, %v5717
  %5719 = vmatmul.bf16.gmra.mxu0 %v5156
  %v5720 = vpop.f32.mrf.mxu0
  %v5721 = vadd.f32 %v5552, %v5720
  %v5722 = vpop.f32.mrf.mxu0
  %v5723 = vadd.f32 %v5554, %v5722
  %5724 = vmatmul.bf16.gmra.mxu0 %v5159
  %v5725 = vpop.f32.mrf.mxu0
  %v5726 = vadd.f32 %v5557, %v5725
  %v5727 = vpop.f32.mrf.mxu0
  %v5728 = vadd.f32 %v5559, %v5727
  %5729 = vmatmul.bf16.gmra.mxu0 %v5162
  %v5730 = vpop.f32.mrf.mxu0
  %v5731 = vadd.f32 %v5562, %v5730
  %v5732 = vpop.f32.mrf.mxu0
  %v5733 = vadd.f32 %v5564, %v5732
  %5734 = vmatmul.bf16.gmra.mxu0 %v5165
  %v5735 = vpop.f32.mrf.mxu0
  %v5736 = vadd.f32 %v5567, %v5735
  %v5737 = vpop.f32.mrf.mxu0
  %v5738 = vadd.f32 %v5569, %v5737
  %5739 = vmatmul.bf16.gmra.mxu0 %v5168
  %v5740 = vpop.f32.mrf.mxu0
  %v5741 = vadd.f32 %v5572, %v5740
  %v5742 = vpop.f32.mrf.mxu0
  %v5743 = vadd.f32 %v5574, %v5742
  %5744 = vmatmul.bf16.gmra.mxu0 %v5171
  %v5745 = vpop.f32.mrf.mxu0
  %v5746 = vadd.f32 %v5577, %v5745
  %v5747 = vpop.f32.mrf.mxu0
  %v5748 = vadd.f32 %v5579, %v5747
  %5749 = vmatmul.bf16.gmra.mxu0 %v5174
  %v5750 = vpop.f32.mrf.mxu0
  %v5751 = vadd.f32 %v5582, %v5750
  %v5752 = vpop.f32.mrf.mxu0
  %v5753 = vadd.f32 %v5584, %v5752
  %5754 = vmatmul.bf16.gmra.mxu0 %v5177
  %v5755 = vpop.f32.mrf.mxu0
  %v5756 = vadd.f32 %v5587, %v5755
  %v5757 = vpop.f32.mrf.mxu0
  %v5758 = vadd.f32 %v5589, %v5757
  %5759 = vmatmul.bf16.gmra.mxu0 %v5180
  %v5760 = vpop.f32.mrf.mxu0
  %v5761 = vadd.f32 %v5592, %v5760
  %v5762 = vpop.f32.mrf.mxu0
  %v5763 = vadd.f32 %v5594, %v5762
  %5764 = vmatmul.bf16.gmra.mxu0 %v5183
  %v5765 = vpop.f32.mrf.mxu0
  %v5766 = vadd.f32 %v5597, %v5765
  %v5767 = vpop.f32.mrf.mxu0
  %v5768 = vadd.f32 %v5599, %v5767
  %5769 = vmatmul.bf16.gmra.mxu0 %v5186
  %v5770 = vpop.f32.mrf.mxu0
  %v5771 = vadd.f32 %v5602, %v5770
  %v5772 = vpop.f32.mrf.mxu0
  %v5773 = vadd.f32 %v5604, %v5772
  %5774 = vmatmul.bf16.gmra.mxu0 %v5189
  %v5775 = vpop.f32.mrf.mxu0
  %v5776 = vadd.f32 %v5607, %v5775
  %v5777 = vpop.f32.mrf.mxu0
  %v5778 = vadd.f32 %v5609, %v5777
  %5779 = vmatmul.bf16.gmra.mxu0 %v5192
  %v5780 = vpop.f32.mrf.mxu0
  %v5781 = vadd.f32 %v5612, %v5780
  %v5782 = vpop.f32.mrf.mxu0
  %v5783 = vadd.f32 %v5614, %v5782
  %5784 = vmatmul.bf16.gmra.mxu0 %v5195
  %v5785 = vpop.f32.mrf.mxu0
  %v5786 = vadd.f32 %v5617, %v5785
  %v5787 = vpop.f32.mrf.mxu0
  %v5788 = vadd.f32 %v5619, %v5787
  %5789 = vmatmul.bf16.gmra.mxu0 %v5198
  %v5790 = vpop.f32.mrf.mxu0
  %v5791 = vadd.f32 %v5622, %v5790
  %v5792 = vpop.f32.mrf.mxu0
  %v5793 = vadd.f32 %v5624, %v5792
  %5794 = vmatmul.bf16.gmra.mxu0 %v5201
  %v5795 = vpop.f32.mrf.mxu0
  %v5796 = vadd.f32 %v5627, %v5795
  %v5797 = vpop.f32.mrf.mxu0
  %v5798 = vadd.f32 %v5629, %v5797
  %5799 = vmatmul.bf16.gmra.mxu0 %v5204
  %v5800 = vpop.f32.mrf.mxu0
  %v5801 = vadd.f32 %v5632, %v5800
  %v5802 = vpop.f32.mrf.mxu0
  %v5803 = vadd.f32 %v5634, %v5802
  %5804 = vmatmul.bf16.gmra.mxu0 %v5207
  %v5805 = vpop.f32.mrf.mxu0
  %v5806 = vadd.f32 %v5637, %v5805
  %v5807 = vpop.f32.mrf.mxu0
  %v5808 = vadd.f32 %v5639, %v5807
  %5809 = vmatmul.bf16.gmra.mxu0 %v5210
  %v5810 = vpop.f32.mrf.mxu0
  %v5811 = vadd.f32 %v5642, %v5810
  %v5812 = vpop.f32.mrf.mxu0
  %v5813 = vadd.f32 %v5644, %v5812
  %5814 = vmatmul.bf16.gmra.mxu0 %v5213
  %v5815 = vpop.f32.mrf.mxu0
  %v5816 = vadd.f32 %v5647, %v5815
  %v5817 = vpop.f32.mrf.mxu0
  %v5818 = vadd.f32 %v5649, %v5817
  %5819 = vmatmul.bf16.gmra.mxu0 %v5216
  %v5820 = vpop.f32.mrf.mxu0
  %v5821 = vadd.f32 %v5652, %v5820
  %v5822 = vpop.f32.mrf.mxu0
  %v5823 = vadd.f32 %v5654, %v5822
  %5824 = vmatmul.bf16.gmra.mxu0 %v5219
  %v5825 = vpop.f32.mrf.mxu0
  %v5826 = vadd.f32 %v5657, %v5825
  %v5827 = vpop.f32.mrf.mxu0
  %v5828 = vadd.f32 %v5659, %v5827
  %5829 = vmatmul.bf16.gmra.mxu0 %v5222
  %v5830 = vpop.f32.mrf.mxu0
  %v5831 = vadd.f32 %v5662, %v5830
  %v5832 = vpop.f32.mrf.mxu0
  %v5833 = vadd.f32 %v5664, %v5832
  %5834 = vmatmul.bf16.gmra.mxu0 %v5225
  %v5835 = vpop.f32.mrf.mxu0
  %v5836 = vadd.f32 %v5667, %v5835
  %v5837 = vpop.f32.mrf.mxu0
  %v5838 = vadd.f32 %v5669, %v5837
  %5839 = vmatmul.bf16.gmra.mxu0 %v5228
  %v5840 = vpop.f32.mrf.mxu0
  %v5841 = vadd.f32 %v5672, %v5840
  %v5842 = vpop.f32.mrf.mxu0
  %v5843 = vadd.f32 %v5674, %v5842
  %5844 = vmatmul.bf16.gmra.mxu0 %v5231
  %v5845 = vpop.f32.mrf.mxu0
  %v5846 = vadd.f32 %v5677, %v5845
  %v5847 = vpop.f32.mrf.mxu0
  %v5848 = vadd.f32 %v5679, %v5847
  %5849 = vmatmul.bf16.gmra.mxu0 %v5234
  %v5850 = vpop.f32.mrf.mxu0
  %v5851 = vadd.f32 %v5682, %v5850
  %v5852 = vpop.f32.mrf.mxu0
  %v5853 = vadd.f32 %v5684, %v5852
  %5854 = vmatmul.bf16.gmra.mxu0 %v5237
  %v5855 = vpop.f32.mrf.mxu0
  %v5856 = vadd.f32 %v5687, %v5855
  %v5857 = vpop.f32.mrf.mxu0
  %v5858 = vadd.f32 %v5689, %v5857
  %5859 = vmatmul.bf16.gmra.mxu0 %v5240
  %v5860 = vpop.f32.mrf.mxu0
  %v5861 = vadd.f32 %v5692, %v5860
  %v5862 = vpop.f32.mrf.mxu0
  %v5863 = vadd.f32 %v5694, %v5862
  %5864 = vmatmul.bf16.gmra.mxu0 %v5242
  %v5865 = vpop.f32.mrf.mxu0
  %v5866 = vadd.f32 %v5697, %v5865
  %v5867 = vpop.f32.mrf.mxu0
  %v5868 = vadd.f32 %v5699, %v5867
  %5869 = vdwg.mxu0
  %5870 = vmatpush.bf16.msra.mxu0 %v5507
  %5871 = vmatpush.bf16.msra.mxu0 %v5506
  %5872 = vmatpush.bf16.msra.mxu0 %v5505
  %5873 = vmatpush.bf16.msra.mxu0 %v5504
  %5874 = vmatpush.bf16.msra.mxu0 %v5503
  %5875 = vmatpush.bf16.msra.mxu0 %v5502
  %5876 = vmatpush.bf16.msra.mxu0 %v5501
  %5877 = vmatpush.bf16.msra.mxu0 %v5500
  %5878 = vmatmul.bf16.gmra.mxu0 %v5245
  %v5879 = vpop.f32.mrf.mxu0
  %v5880 = vadd.f32 %v5711, %v5879
  %v5881 = vpop.f32.mrf.mxu0
  %v5882 = vadd.f32 %v5713, %v5881
  %5883 = vmatmul.bf16.gmra.mxu0 %v5248
  %v5884 = vpop.f32.mrf.mxu0
  %v5885 = vadd.f32 %v5716, %v5884
  %v5886 = vpop.f32.mrf.mxu0
  %v5887 = vadd.f32 %v5718, %v5886
  %5888 = vmatmul.bf16.gmra.mxu0 %v5251
  %v5889 = vpop.f32.mrf.mxu0
  %v5890 = vadd.f32 %v5721, %v5889
  %v5891 = vpop.f32.mrf.mxu0
  %v5892 = vadd.f32 %v5723, %v5891
  %5893 = vmatmul.bf16.gmra.mxu0 %v5254
  %v5894 = vpop.f32.mrf.mxu0
  %v5895 = vadd.f32 %v5726, %v5894
  %v5896 = vpop.f32.mrf.mxu0
  %v5897 = vadd.f32 %v5728, %v5896
  %5898 = vmatmul.bf16.gmra.mxu0 %v5257
  %v5899 = vpop.f32.mrf.mxu0
  %v5900 = vadd.f32 %v5731, %v5899
  %v5901 = vpop.f32.mrf.mxu0
  %v5902 = vadd.f32 %v5733, %v5901
  %5903 = vmatmul.bf16.gmra.mxu0 %v5260
  %v5904 = vpop.f32.mrf.mxu0
  %v5905 = vadd.f32 %v5736, %v5904
  %v5906 = vpop.f32.mrf.mxu0
  %v5907 = vadd.f32 %v5738, %v5906
  %5908 = vmatmul.bf16.gmra.mxu0 %v5263
  %v5909 = vpop.f32.mrf.mxu0
  %v5910 = vadd.f32 %v5741, %v5909
  %v5911 = vpop.f32.mrf.mxu0
  %v5912 = vadd.f32 %v5743, %v5911
  %5913 = vmatmul.bf16.gmra.mxu0 %v5266
  %v5914 = vpop.f32.mrf.mxu0
  %v5915 = vadd.f32 %v5746, %v5914
  %v5916 = vpop.f32.mrf.mxu0
  %v5917 = vadd.f32 %v5748, %v5916
  %5918 = vmatmul.bf16.gmra.mxu0 %v5269
  %v5919 = vpop.f32.mrf.mxu0
  %v5920 = vadd.f32 %v5751, %v5919
  %v5921 = vpop.f32.mrf.mxu0
  %v5922 = vadd.f32 %v5753, %v5921
  %5923 = vmatmul.bf16.gmra.mxu0 %v5272
  %v5924 = vpop.f32.mrf.mxu0
  %v5925 = vadd.f32 %v5756, %v5924
  %v5926 = vpop.f32.mrf.mxu0
  %v5927 = vadd.f32 %v5758, %v5926
  %5928 = vmatmul.bf16.gmra.mxu0 %v5275
  %v5929 = vpop.f32.mrf.mxu0
  %v5930 = vadd.f32 %v5761, %v5929
  %v5931 = vpop.f32.mrf.mxu0
  %v5932 = vadd.f32 %v5763, %v5931
  %5933 = vmatmul.bf16.gmra.mxu0 %v5278
  %v5934 = vpop.f32.mrf.mxu0
  %v5935 = vadd.f32 %v5766, %v5934
  %v5936 = vpop.f32.mrf.mxu0
  %v5937 = vadd.f32 %v5768, %v5936
  %5938 = vmatmul.bf16.gmra.mxu0 %v5281
  %v5939 = vpop.f32.mrf.mxu0
  %v5940 = vadd.f32 %v5771, %v5939
  %v5941 = vpop.f32.mrf.mxu0
  %v5942 = vadd.f32 %v5773, %v5941
  %5943 = vmatmul.bf16.gmra.mxu0 %v5284
  %v5944 = vpop.f32.mrf.mxu0
  %v5945 = vadd.f32 %v5776, %v5944
  %v5946 = vpop.f32.mrf.mxu0
  %v5947 = vadd.f32 %v5778, %v5946
  %5948 = vmatmul.bf16.gmra.mxu0 %v5287
  %v5949 = vpop.f32.mrf.mxu0
  %v5950 = vadd.f32 %v5781, %v5949
  %v5951 = vpop.f32.mrf.mxu0
  %v5952 = vadd.f32 %v5783, %v5951
  %5953 = vmatmul.bf16.gmra.mxu0 %v5289
  %v5954 = vpop.f32.mrf.mxu0
  %v5955 = vadd.f32 %v5786, %v5954
  %v5956 = vpop.f32.mrf.mxu0
  %v5957 = vadd.f32 %v5788, %v5956
  %5958 = vmatmul.bf16.gmra.mxu0 %v5292
  %v5959 = vpop.f32.mrf.mxu0
  %v5960 = vadd.f32 %v5791, %v5959
  %v5961 = vpop.f32.mrf.mxu0
  %v5962 = vadd.f32 %v5793, %v5961
  %5963 = vmatmul.bf16.gmra.mxu0 %v5295
  %v5964 = vpop.f32.mrf.mxu0
  %v5965 = vadd.f32 %v5796, %v5964
  %v5966 = vpop.f32.mrf.mxu0
  %v5967 = vadd.f32 %v5798, %v5966
  %5968 = vmatmul.bf16.gmra.mxu0 %v5298
  %v5969 = vpop.f32.mrf.mxu0
  %v5970 = vadd.f32 %v5801, %v5969
  %v5971 = vpop.f32.mrf.mxu0
  %v5972 = vadd.f32 %v5803, %v5971
  %5973 = vmatmul.bf16.gmra.mxu0 %v5301
  %v5974 = vpop.f32.mrf.mxu0
  %v5975 = vadd.f32 %v5806, %v5974
  %v5976 = vpop.f32.mrf.mxu0
  %v5977 = vadd.f32 %v5808, %v5976
  %5978 = vmatmul.bf16.gmra.mxu0 %v5304
  %v5979 = vpop.f32.mrf.mxu0
  %v5980 = vadd.f32 %v5811, %v5979
  %v5981 = vpop.f32.mrf.mxu0
  %v5982 = vadd.f32 %v5813, %v5981
  %5983 = vmatmul.bf16.gmra.mxu0 %v5307
  %v5984 = vpop.f32.mrf.mxu0
  %v5985 = vadd.f32 %v5816, %v5984
  %v5986 = vpop.f32.mrf.mxu0
  %v5987 = vadd.f32 %v5818, %v5986
  %5988 = vmatmul.bf16.gmra.mxu0 %v5310
  %v5989 = vpop.f32.mrf.mxu0
  %v5990 = vadd.f32 %v5821, %v5989
  %v5991 = vpop.f32.mrf.mxu0
  %v5992 = vadd.f32 %v5823, %v5991
  %5993 = vmatmul.bf16.gmra.mxu0 %v5313
  %v5994 = vpop.f32.mrf.mxu0
  %v5995 = vadd.f32 %v5826, %v5994
  %v5996 = vpop.f32.mrf.mxu0
  %v5997 = vadd.f32 %v5828, %v5996
  %5998 = vmatmul.bf16.gmra.mxu0 %v5316
  %v5999 = vpop.f32.mrf.mxu0
  %v6000 = vadd.f32 %v5831, %v5999
  %v6001 = vpop.f32.mrf.mxu0
  %v6002 = vadd.f32 %v5833, %v6001
  %6003 = vmatmul.bf16.gmra.mxu0 %v5319
  %v6004 = vpop.f32.mrf.mxu0
  %v6005 = vadd.f32 %v5836, %v6004
  %v6006 = vpop.f32.mrf.mxu0
  %v6007 = vadd.f32 %v5838, %v6006
  %6008 = vmatmul.bf16.gmra.mxu0 %v5322
  %v6009 = vpop.f32.mrf.mxu0
  %v6010 = vadd.f32 %v5841, %v6009
  %v6011 = vpop.f32.mrf.mxu0
  %v6012 = vadd.f32 %v5843, %v6011
  %6013 = vmatmul.bf16.gmra.mxu0 %v5325
  %v6014 = vpop.f32.mrf.mxu0
  %v6015 = vadd.f32 %v5846, %v6014
  %v6016 = vpop.f32.mrf.mxu0
  %v6017 = vadd.f32 %v5848, %v6016
  %6018 = vmatmul.bf16.gmra.mxu0 %v5328
  %v6019 = vpop.f32.mrf.mxu0
  %v6020 = vadd.f32 %v5851, %v6019
  %v6021 = vpop.f32.mrf.mxu0
  %v6022 = vadd.f32 %v5853, %v6021
  %6023 = vmatmul.bf16.gmra.mxu0 %v5331
  %v6024 = vpop.f32.mrf.mxu0
  %v6025 = vadd.f32 %v5856, %v6024
  %v6026 = vpop.f32.mrf.mxu0
  %v6027 = vadd.f32 %v5858, %v6026
  %6028 = vmatmul.bf16.gmra.mxu0 %v5334
  %v6029 = vpop.f32.mrf.mxu0
  %v6030 = vadd.f32 %v5861, %v6029
  %v6031 = vpop.f32.mrf.mxu0
  %v6032 = vadd.f32 %v5863, %v6031
  %6033 = vmatmul.bf16.gmra.mxu0 %v5289
  %v6034 = vpop.f32.mrf.mxu0
  %v6035 = vadd.f32 %v5866, %v6034
  %v6036 = vpop.f32.mrf.mxu0
  %v6037 = vadd.f32 %v5868, %v6036
  %6038 = vdwg.mxu0
  %v6039 = vsel %vm1678, %v5880, 0.0
  %v6040 = vsel %vm1678, %v5882, 0.0
  %v6041 = vadd.f32 %v6039, %v6040
  %v6042 = vsel %vm1678, %v5885, 0.0
  %v6043 = vadd.f32 %v6041, %v6042
  %v6044 = vsel %vm1678, %v5887, 0.0
  %v6045 = vadd.f32 %v6043, %v6044
  %v6046 = vsel %vm1678, %v5890, 0.0
  %v6047 = vadd.f32 %v6045, %v6046
  %v6048 = vsel %vm1678, %v5892, 0.0
  %v6049 = vadd.f32 %v6047, %v6048
  %v6050 = vsel %vm1678, %v5895, 0.0
  %v6051 = vadd.f32 %v6049, %v6050
  %v6052 = vsel %vm1678, %v5897, 0.0
  %v6053 = vadd.f32 %v6051, %v6052
  %v6054 = vsel %vm1678, %v5900, 0.0
  %v6055 = vadd.f32 %v6053, %v6054
  %v6056 = vsel %vm1678, %v5902, 0.0
  %v6057 = vadd.f32 %v6055, %v6056
  %v6058 = vsel %vm1678, %v5905, 0.0
  %v6059 = vadd.f32 %v6057, %v6058
  %v6060 = vsel %vm1678, %v5907, 0.0
  %v6061 = vadd.f32 %v6059, %v6060
  %v6062 = vsel %vm1678, %v5910, 0.0
  %v6063 = vadd.f32 %v6061, %v6062
  %v6064 = vsel %vm1678, %v5912, 0.0
  %v6065 = vadd.f32 %v6063, %v6064
  %v6066 = vsel %vm1678, %v5915, 0.0
  %v6067 = vadd.f32 %v6065, %v6066
  %v6068 = vsel %vm1678, %v5917, 0.0
  %v6069 = vadd.f32 %v6067, %v6068
  %v6070 = vsel %vm1678, %v5920, 0.0
  %v6071 = vadd.f32 %v6069, %v6070
  %v6072 = vsel %vm1678, %v5922, 0.0
  %v6073 = vadd.f32 %v6071, %v6072
  %v6074 = vsel %vm1678, %v5925, 0.0
  %v6075 = vadd.f32 %v6073, %v6074
  %v6076 = vsel %vm1678, %v5927, 0.0
  %v6077 = vadd.f32 %v6075, %v6076
  %v6078 = vsel %vm1678, %v5930, 0.0
  %v6079 = vadd.f32 %v6077, %v6078
  %v6080 = vsel %vm1678, %v5932, 0.0
  %v6081 = vadd.f32 %v6079, %v6080
  %v6082 = vsel %vm1678, %v5935, 0.0
  %v6083 = vadd.f32 %v6081, %v6082
  %v6084 = vsel %vm1678, %v5937, 0.0
  %v6085 = vadd.f32 %v6083, %v6084
  %v6086 = vsel %vm1678, %v5940, 0.0
  %v6087 = vadd.f32 %v6085, %v6086
  %v6088 = vsel %vm1678, %v5942, 0.0
  %v6089 = vadd.f32 %v6087, %v6088
  %v6090 = vsel %vm1678, %v5945, 0.0
  %v6091 = vadd.f32 %v6089, %v6090
  %v6092 = vsel %vm1678, %v5947, 0.0
  %v6093 = vadd.f32 %v6091, %v6092
  %v6094 = vsel %vm1678, %v5950, 0.0
  %v6095 = vadd.f32 %v6093, %v6094
  %v6096 = vsel %vm1678, %v5952, 0.0
  %v6097 = vadd.f32 %v6095, %v6096
  %v6098 = vsel %vm1678, %v5955, 0.0
  %v6099 = vadd.f32 %v6097, %v6098
  %v6100 = vsel %vm1678, %v5957, 0.0
  %v6101 = vadd.f32 %v6099, %v6100
  %v6102 = vsel %vm1678, %v5960, 0.0
  %v6103 = vadd.f32 %v6101, %v6102
  %v6104 = vsel %vm1678, %v5962, 0.0
  %v6105 = vadd.f32 %v6103, %v6104
  %v6106 = vsel %vm1678, %v5965, 0.0
  %v6107 = vadd.f32 %v6105, %v6106
  %v6108 = vsel %vm1678, %v5967, 0.0
  %v6109 = vadd.f32 %v6107, %v6108
  %v6110 = vsel %vm1678, %v5970, 0.0
  %v6111 = vadd.f32 %v6109, %v6110
  %v6112 = vsel %vm1678, %v5972, 0.0
  %v6113 = vadd.f32 %v6111, %v6112
  %v6114 = vsel %vm1678, %v5975, 0.0
  %v6115 = vadd.f32 %v6113, %v6114
  %v6116 = vsel %vm1678, %v5977, 0.0
  %v6117 = vadd.f32 %v6115, %v6116
  %v6118 = vsel %vm1678, %v5980, 0.0
  %v6119 = vadd.f32 %v6117, %v6118
  %v6120 = vsel %vm1678, %v5982, 0.0
  %v6121 = vadd.f32 %v6119, %v6120
  %v6122 = vsel %vm1678, %v5985, 0.0
  %v6123 = vadd.f32 %v6121, %v6122
  %v6124 = vsel %vm1678, %v5987, 0.0
  %v6125 = vadd.f32 %v6123, %v6124
  %v6126 = vsel %vm1678, %v5990, 0.0
  %v6127 = vadd.f32 %v6125, %v6126
  %v6128 = vsel %vm1678, %v5992, 0.0
  %v6129 = vadd.f32 %v6127, %v6128
  %v6130 = vsel %vm1678, %v5995, 0.0
  %v6131 = vadd.f32 %v6129, %v6130
  %v6132 = vsel %vm1678, %v5997, 0.0
  %v6133 = vadd.f32 %v6131, %v6132
  %v6134 = vsel %vm1678, %v6000, 0.0
  %v6135 = vadd.f32 %v6133, %v6134
  %v6136 = vsel %vm1678, %v6002, 0.0
  %v6137 = vadd.f32 %v6135, %v6136
  %v6138 = vsel %vm1678, %v6005, 0.0
  %v6139 = vadd.f32 %v6137, %v6138
  %v6140 = vsel %vm1678, %v6007, 0.0
  %v6141 = vadd.f32 %v6139, %v6140
  %v6142 = vsel %vm1678, %v6010, 0.0
  %v6143 = vadd.f32 %v6141, %v6142
  %v6144 = vsel %vm1678, %v6012, 0.0
  %v6145 = vadd.f32 %v6143, %v6144
  %v6146 = vsel %vm1678, %v6015, 0.0
  %v6147 = vadd.f32 %v6145, %v6146
  %v6148 = vsel %vm1678, %v6017, 0.0
  %v6149 = vadd.f32 %v6147, %v6148
  %v6150 = vsel %vm1678, %v6020, 0.0
  %v6151 = vadd.f32 %v6149, %v6150
  %v6152 = vsel %vm1678, %v6022, 0.0
  %v6153 = vadd.f32 %v6151, %v6152
  %v6154 = vsel %vm1678, %v6025, 0.0
  %v6155 = vadd.f32 %v6153, %v6154
  %v6156 = vsel %vm1678, %v6027, 0.0
  %v6157 = vadd.f32 %v6155, %v6156
  %v6158 = vsel %vm1678, %v6030, 0.0
  %v6159 = vadd.f32 %v6157, %v6158
  %v6160 = vsel %vm1678, %v6032, 0.0
  %v6161 = vadd.f32 %v6159, %v6160
  %v6162 = vsel %vm1678, %v6035, 0.0
  %v6163 = vadd.f32 %v6161, %v6162
  %v6164 = vsel %vm1678, %v6037, 0.0
  %v6165 = vadd.f32 %v6163, %v6164
  %v6166 = vrot.slane %v6165, 4
  %v6167 = vadd.f32 %v6165, %v6166
  %v6168 = vrot.slane %v6167, 2
  %v6169 = vadd.f32 %v6167, %v6168
  %v6170 = vrot.slane %v6169, 1
  %v6171 = vadd.f32 %v6169, %v6170
  %v6172 = vmul.f32 %v6171, %v2798
  %v6173 = vsub.f32 %v5880, %v6172
  %v6174 = vsub.f32 %v5882, %v6172
  %v6175 = vsub.f32 %v5885, %v6172
  %v6176 = vsub.f32 %v5887, %v6172
  %v6177 = vsub.f32 %v5890, %v6172
  %v6178 = vsub.f32 %v5892, %v6172
  %v6179 = vsub.f32 %v5895, %v6172
  %v6180 = vsub.f32 %v5897, %v6172
  %v6181 = vsub.f32 %v5900, %v6172
  %v6182 = vsub.f32 %v5902, %v6172
  %v6183 = vsub.f32 %v5905, %v6172
  %v6184 = vsub.f32 %v5907, %v6172
  %v6185 = vsub.f32 %v5910, %v6172
  %v6186 = vsub.f32 %v5912, %v6172
  %v6187 = vsub.f32 %v5915, %v6172
  %v6188 = vsub.f32 %v5917, %v6172
  %v6189 = vsub.f32 %v5920, %v6172
  %v6190 = vsub.f32 %v5922, %v6172
  %v6191 = vsub.f32 %v5925, %v6172
  %v6192 = vsub.f32 %v5927, %v6172
  %v6193 = vsub.f32 %v5930, %v6172
  %v6194 = vsub.f32 %v5932, %v6172
  %v6195 = vsub.f32 %v5935, %v6172
  %v6196 = vsub.f32 %v5937, %v6172
  %v6197 = vsub.f32 %v5940, %v6172
  %v6198 = vsub.f32 %v5942, %v6172
  %v6199 = vsub.f32 %v5945, %v6172
  %v6200 = vsub.f32 %v5947, %v6172
  %v6201 = vsub.f32 %v5950, %v6172
  %v6202 = vsub.f32 %v5952, %v6172
  %v6203 = vsub.f32 %v5955, %v6172
  %v6204 = vsub.f32 %v5957, %v6172
  %v6205 = vsub.f32 %v5960, %v6172
  %v6206 = vsub.f32 %v5962, %v6172
  %v6207 = vsub.f32 %v5965, %v6172
  %v6208 = vsub.f32 %v5967, %v6172
  %v6209 = vsub.f32 %v5970, %v6172
  %v6210 = vsub.f32 %v5972, %v6172
  %v6211 = vsub.f32 %v5975, %v6172
  %v6212 = vsub.f32 %v5977, %v6172
  %v6213 = vsub.f32 %v5980, %v6172
  %v6214 = vsub.f32 %v5982, %v6172
  %v6215 = vsub.f32 %v5985, %v6172
  %v6216 = vsub.f32 %v5987, %v6172
  %v6217 = vsub.f32 %v5990, %v6172
  %v6218 = vsub.f32 %v5992, %v6172
  %v6219 = vsub.f32 %v5995, %v6172
  %v6220 = vsub.f32 %v5997, %v6172
  %v6221 = vsub.f32 %v6000, %v6172
  %v6222 = vsub.f32 %v6002, %v6172
  %v6223 = vsub.f32 %v6005, %v6172
  %v6224 = vsub.f32 %v6007, %v6172
  %v6225 = vsub.f32 %v6010, %v6172
  %v6226 = vsub.f32 %v6012, %v6172
  %v6227 = vsub.f32 %v6015, %v6172
  %v6228 = vsub.f32 %v6017, %v6172
  %v6229 = vsub.f32 %v6020, %v6172
  %v6230 = vsub.f32 %v6022, %v6172
  %v6231 = vsub.f32 %v6025, %v6172
  %v6232 = vsub.f32 %v6027, %v6172
  %v6233 = vsub.f32 %v6030, %v6172
  %v6234 = vsub.f32 %v6032, %v6172
  %v6235 = vsub.f32 %v6035, %v6172
  %v6236 = vsub.f32 %v6037, %v6172
  %v6237 = vmul.f32 %v6173, %v6173
  %v6238 = vmul.f32 %v6174, %v6174
  %v6239 = vmul.f32 %v6175, %v6175
  %v6240 = vmul.f32 %v6176, %v6176
  %v6241 = vmul.f32 %v6177, %v6177
  %v6242 = vmul.f32 %v6178, %v6178
  %v6243 = vmul.f32 %v6179, %v6179
  %v6244 = vmul.f32 %v6180, %v6180
  %v6245 = vmul.f32 %v6181, %v6181
  %v6246 = vmul.f32 %v6182, %v6182
  %v6247 = vmul.f32 %v6183, %v6183
  %v6248 = vmul.f32 %v6184, %v6184
  %v6249 = vmul.f32 %v6185, %v6185
  %v6250 = vmul.f32 %v6186, %v6186
  %v6251 = vmul.f32 %v6187, %v6187
  %v6252 = vmul.f32 %v6188, %v6188
  %v6253 = vmul.f32 %v6189, %v6189
  %v6254 = vmul.f32 %v6190, %v6190
  %v6255 = vmul.f32 %v6191, %v6191
  %v6256 = vmul.f32 %v6192, %v6192
  %v6257 = vmul.f32 %v6193, %v6193
  %v6258 = vmul.f32 %v6194, %v6194
  %v6259 = vmul.f32 %v6195, %v6195
  %v6260 = vmul.f32 %v6196, %v6196
  %v6261 = vmul.f32 %v6197, %v6197
  %v6262 = vmul.f32 %v6198, %v6198
  %v6263 = vmul.f32 %v6199, %v6199
  %v6264 = vmul.f32 %v6200, %v6200
  %v6265 = vmul.f32 %v6201, %v6201
  %v6266 = vmul.f32 %v6202, %v6202
  %v6267 = vmul.f32 %v6203, %v6203
  %v6268 = vmul.f32 %v6204, %v6204
  %v6269 = vmul.f32 %v6205, %v6205
  %v6270 = vmul.f32 %v6206, %v6206
  %v6271 = vmul.f32 %v6207, %v6207
  %v6272 = vmul.f32 %v6208, %v6208
  %v6273 = vmul.f32 %v6209, %v6209
  %v6274 = vmul.f32 %v6210, %v6210
  %v6275 = vmul.f32 %v6211, %v6211
  %v6276 = vmul.f32 %v6212, %v6212
  %v6277 = vmul.f32 %v6213, %v6213
  %v6278 = vmul.f32 %v6214, %v6214
  %v6279 = vmul.f32 %v6215, %v6215
  %v6280 = vmul.f32 %v6216, %v6216
  %v6281 = vmul.f32 %v6217, %v6217
  %v6282 = vmul.f32 %v6218, %v6218
  %v6283 = vmul.f32 %v6219, %v6219
  %v6284 = vmul.f32 %v6220, %v6220
  %v6285 = vmul.f32 %v6221, %v6221
  %v6286 = vmul.f32 %v6222, %v6222
  %v6287 = vmul.f32 %v6223, %v6223
  %v6288 = vmul.f32 %v6224, %v6224
  %v6289 = vmul.f32 %v6225, %v6225
  %v6290 = vmul.f32 %v6226, %v6226
  %v6291 = vmul.f32 %v6227, %v6227
  %v6292 = vmul.f32 %v6228, %v6228
  %v6293 = vmul.f32 %v6229, %v6229
  %v6294 = vmul.f32 %v6230, %v6230
  %v6295 = vmul.f32 %v6231, %v6231
  %v6296 = vmul.f32 %v6232, %v6232
  %v6297 = vmul.f32 %v6233, %v6233
  %v6298 = vmul.f32 %v6234, %v6234
  %v6299 = vmul.f32 %v6235, %v6235
  %v6300 = vmul.f32 %v6236, %v6236
  %v6301 = vsel %vm1678, %v6237, 0.0
  %v6302 = vsel %vm1678, %v6238, 0.0
  %v6303 = vadd.f32 %v6301, %v6302
  %v6304 = vsel %vm1678, %v6239, 0.0
  %v6305 = vadd.f32 %v6303, %v6304
  %v6306 = vsel %vm1678, %v6240, 0.0
  %v6307 = vadd.f32 %v6305, %v6306
  %v6308 = vsel %vm1678, %v6241, 0.0
  %v6309 = vadd.f32 %v6307, %v6308
  %v6310 = vsel %vm1678, %v6242, 0.0
  %v6311 = vadd.f32 %v6309, %v6310
  %v6312 = vsel %vm1678, %v6243, 0.0
  %v6313 = vadd.f32 %v6311, %v6312
  %v6314 = vsel %vm1678, %v6244, 0.0
  %v6315 = vadd.f32 %v6313, %v6314
  %v6316 = vsel %vm1678, %v6245, 0.0
  %v6317 = vadd.f32 %v6315, %v6316
  %v6318 = vsel %vm1678, %v6246, 0.0
  %v6319 = vadd.f32 %v6317, %v6318
  %v6320 = vsel %vm1678, %v6247, 0.0
  %v6321 = vadd.f32 %v6319, %v6320
  %v6322 = vsel %vm1678, %v6248, 0.0
  %v6323 = vadd.f32 %v6321, %v6322
  %v6324 = vsel %vm1678, %v6249, 0.0
  %v6325 = vadd.f32 %v6323, %v6324
  %v6326 = vsel %vm1678, %v6250, 0.0
  %v6327 = vadd.f32 %v6325, %v6326
  %v6328 = vsel %vm1678, %v6251, 0.0
  %v6329 = vadd.f32 %v6327, %v6328
  %v6330 = vsel %vm1678, %v6252, 0.0
  %v6331 = vadd.f32 %v6329, %v6330
  %v6332 = vsel %vm1678, %v6253, 0.0
  %v6333 = vadd.f32 %v6331, %v6332
  %v6334 = vsel %vm1678, %v6254, 0.0
  %v6335 = vadd.f32 %v6333, %v6334
  %v6336 = vsel %vm1678, %v6255, 0.0
  %v6337 = vadd.f32 %v6335, %v6336
  %v6338 = vsel %vm1678, %v6256, 0.0
  %v6339 = vadd.f32 %v6337, %v6338
  %v6340 = vsel %vm1678, %v6257, 0.0
  %v6341 = vadd.f32 %v6339, %v6340
  %v6342 = vsel %vm1678, %v6258, 0.0
  %v6343 = vadd.f32 %v6341, %v6342
  %v6344 = vsel %vm1678, %v6259, 0.0
  %v6345 = vadd.f32 %v6343, %v6344
  %v6346 = vsel %vm1678, %v6260, 0.0
  %v6347 = vadd.f32 %v6345, %v6346
  %v6348 = vsel %vm1678, %v6261, 0.0
  %v6349 = vadd.f32 %v6347, %v6348
  %v6350 = vsel %vm1678, %v6262, 0.0
  %v6351 = vadd.f32 %v6349, %v6350
  %v6352 = vsel %vm1678, %v6263, 0.0
  %v6353 = vadd.f32 %v6351, %v6352
  %v6354 = vsel %vm1678, %v6264, 0.0
  %v6355 = vadd.f32 %v6353, %v6354
  %v6356 = vsel %vm1678, %v6265, 0.0
  %v6357 = vadd.f32 %v6355, %v6356
  %v6358 = vsel %vm1678, %v6266, 0.0
  %v6359 = vadd.f32 %v6357, %v6358
  %v6360 = vsel %vm1678, %v6267, 0.0
  %v6361 = vadd.f32 %v6359, %v6360
  %v6362 = vsel %vm1678, %v6268, 0.0
  %v6363 = vadd.f32 %v6361, %v6362
  %v6364 = vsel %vm1678, %v6269, 0.0
  %v6365 = vadd.f32 %v6363, %v6364
  %v6366 = vsel %vm1678, %v6270, 0.0
  %v6367 = vadd.f32 %v6365, %v6366
  %v6368 = vsel %vm1678, %v6271, 0.0
  %v6369 = vadd.f32 %v6367, %v6368
  %v6370 = vsel %vm1678, %v6272, 0.0
  %v6371 = vadd.f32 %v6369, %v6370
  %v6372 = vsel %vm1678, %v6273, 0.0
  %v6373 = vadd.f32 %v6371, %v6372
  %v6374 = vsel %vm1678, %v6274, 0.0
  %v6375 = vadd.f32 %v6373, %v6374
  %v6376 = vsel %vm1678, %v6275, 0.0
  %v6377 = vadd.f32 %v6375, %v6376
  %v6378 = vsel %vm1678, %v6276, 0.0
  %v6379 = vadd.f32 %v6377, %v6378
  %v6380 = vsel %vm1678, %v6277, 0.0
  %v6381 = vadd.f32 %v6379, %v6380
  %v6382 = vsel %vm1678, %v6278, 0.0
  %v6383 = vadd.f32 %v6381, %v6382
  %v6384 = vsel %vm1678, %v6279, 0.0
  %v6385 = vadd.f32 %v6383, %v6384
  %v6386 = vsel %vm1678, %v6280, 0.0
  %v6387 = vadd.f32 %v6385, %v6386
  %v6388 = vsel %vm1678, %v6281, 0.0
  %v6389 = vadd.f32 %v6387, %v6388
  %v6390 = vsel %vm1678, %v6282, 0.0
  %v6391 = vadd.f32 %v6389, %v6390
  %v6392 = vsel %vm1678, %v6283, 0.0
  %v6393 = vadd.f32 %v6391, %v6392
  %v6394 = vsel %vm1678, %v6284, 0.0
  %v6395 = vadd.f32 %v6393, %v6394
  %v6396 = vsel %vm1678, %v6285, 0.0
  %v6397 = vadd.f32 %v6395, %v6396
  %v6398 = vsel %vm1678, %v6286, 0.0
  %v6399 = vadd.f32 %v6397, %v6398
  %v6400 = vsel %vm1678, %v6287, 0.0
  %v6401 = vadd.f32 %v6399, %v6400
  %v6402 = vsel %vm1678, %v6288, 0.0
  %v6403 = vadd.f32 %v6401, %v6402
  %v6404 = vsel %vm1678, %v6289, 0.0
  %v6405 = vadd.f32 %v6403, %v6404
  %v6406 = vsel %vm1678, %v6290, 0.0
  %v6407 = vadd.f32 %v6405, %v6406
  %v6408 = vsel %vm1678, %v6291, 0.0
  %v6409 = vadd.f32 %v6407, %v6408
  %v6410 = vsel %vm1678, %v6292, 0.0
  %v6411 = vadd.f32 %v6409, %v6410
  %v6412 = vsel %vm1678, %v6293, 0.0
  %v6413 = vadd.f32 %v6411, %v6412
  %v6414 = vsel %vm1678, %v6294, 0.0
  %v6415 = vadd.f32 %v6413, %v6414
  %v6416 = vsel %vm1678, %v6295, 0.0
  %v6417 = vadd.f32 %v6415, %v6416
  %v6418 = vsel %vm1678, %v6296, 0.0
  %v6419 = vadd.f32 %v6417, %v6418
  %v6420 = vsel %vm1678, %v6297, 0.0
  %v6421 = vadd.f32 %v6419, %v6420
  %v6422 = vsel %vm1678, %v6298, 0.0
  %v6423 = vadd.f32 %v6421, %v6422
  %v6424 = vsel %vm1678, %v6299, 0.0
  %v6425 = vadd.f32 %v6423, %v6424
  %v6426 = vsel %vm1678, %v6300, 0.0
  %v6427 = vadd.f32 %v6425, %v6426
  %v6428 = vrot.slane %v6427, 4
  %v6429 = vadd.f32 %v6427, %v6428
  %v6430 = vrot.slane %v6429, 2
  %v6431 = vadd.f32 %v6429, %v6430
  %v6432 = vrot.slane %v6431, 1
  %v6433 = vadd.f32 %v6431, %v6432
  %v6434 = vmul.f32 %v6433, %v2798
  %v6435 = vld [vmem:[%s7] sm:$0x1]
  %v6436 = vadd.f32 %v6434, 1e-05
  %v6437 = vrsqrt.pop %v6436
  %v6438 = vmul.f32 %v6437, %v6436
  %v6439 = vmul.f32 %v6438, %v6437
  %v6440 = vmul.f32 0.5, %v6439
  %v6441 = vsub.f32 1.5, %v6440
  %v6442 = vmul.f32 %v6437, %v6441
  %vm6443 = vweird.f32 %v6436
  %vm6444 = vweird.f32 %v6437
  %vm6445 = vmor %vm6443, %vm6444
  %v6446 = vsel %vm6445, %v6437, %v6442
  %v6447 = vmul.f32 %v6435, %v6446
  %v6449 = vperm.slane %v6447, 0
  %v6451 = vmul.f32 %v6173, %v6449
  %v6452 = vmul.f32 %v6174, %v6449
  %v6453 = vmul.f32 %v6175, %v6449
  %v6454 = vmul.f32 %v6176, %v6449
  %v6455 = vmul.f32 %v6177, %v6449
  %v6456 = vmul.f32 %v6178, %v6449
  %v6457 = vmul.f32 %v6179, %v6449
  %v6458 = vmul.f32 %v6180, %v6449
  %v6459 = vmul.f32 %v6181, %v6449
  %v6460 = vmul.f32 %v6182, %v6449
  %v6461 = vmul.f32 %v6183, %v6449
  %v6462 = vmul.f32 %v6184, %v6449
  %v6463 = vmul.f32 %v6185, %v6449
  %v6464 = vmul.f32 %v6186, %v6449
  %v6465 = vmul.f32 %v6187, %v6449
  %v6466 = vmul.f32 %v6188, %v6449
  %v6467 = vmul.f32 %v6189, %v6449
  %v6468 = vmul.f32 %v6190, %v6449
  %v6469 = vmul.f32 %v6191, %v6449
  %v6470 = vmul.f32 %v6192, %v6449
  %v6471 = vmul.f32 %v6193, %v6449
  %v6472 = vmul.f32 %v6194, %v6449
  %v6473 = vmul.f32 %v6195, %v6449
  %v6474 = vmul.f32 %v6196, %v6449
  %v6475 = vmul.f32 %v6197, %v6449
  %v6476 = vmul.f32 %v6198, %v6449
  %v6477 = vmul.f32 %v6199, %v6449
  %v6478 = vmul.f32 %v6200, %v6449
  %v6479 = vmul.f32 %v6201, %v6449
  %v6480 = vmul.f32 %v6202, %v6449
  %v6481 = vmul.f32 %v6203, %v6449
  %v6482 = vmul.f32 %v6204, %v6449
  %v6483 = vmul.f32 %v6205, %v6449
  %v6484 = vmul.f32 %v6206, %v6449
  %v6485 = vmul.f32 %v6207, %v6449
  %v6486 = vmul.f32 %v6208, %v6449
  %v6487 = vmul.f32 %v6209, %v6449
  %v6488 = vmul.f32 %v6210, %v6449
  %v6489 = vmul.f32 %v6211, %v6449
  %v6490 = vmul.f32 %v6212, %v6449
  %v6491 = vmul.f32 %v6213, %v6449
  %v6492 = vmul.f32 %v6214, %v6449
  %v6493 = vmul.f32 %v6215, %v6449
  %v6494 = vmul.f32 %v6216, %v6449
  %v6495 = vmul.f32 %v6217, %v6449
  %v6496 = vmul.f32 %v6218, %v6449
  %v6497 = vmul.f32 %v6219, %v6449
  %v6498 = vmul.f32 %v6220, %v6449
  %v6499 = vmul.f32 %v6221, %v6449
  %v6500 = vmul.f32 %v6222, %v6449
  %v6501 = vmul.f32 %v6223, %v6449
  %v6502 = vmul.f32 %v6224, %v6449
  %v6503 = vmul.f32 %v6225, %v6449
  %v6504 = vmul.f32 %v6226, %v6449
  %v6505 = vmul.f32 %v6227, %v6449
  %v6506 = vmul.f32 %v6228, %v6449
  %v6507 = vmul.f32 %v6229, %v6449
  %v6508 = vmul.f32 %v6230, %v6449
  %v6509 = vmul.f32 %v6231, %v6449
  %v6510 = vmul.f32 %v6232, %v6449
  %v6511 = vmul.f32 %v6233, %v6449
  %v6512 = vmul.f32 %v6234, %v6449
  %v6513 = vmul.f32 %v6235, %v6449
  %v6514 = vmul.f32 %v6236, %v6449
  %v6515 = vld [vmem:[%s8] sm:$0x1]
  %v6517 = vperm.slane %v6515, 0
  %v6519 = vadd.f32 %v6451, %v6517
  %v6520 = vadd.f32 %v6452, %v6517
  %v6521 = vadd.f32 %v6453, %v6517
  %v6522 = vadd.f32 %v6454, %v6517
  %v6523 = vadd.f32 %v6455, %v6517
  %v6524 = vadd.f32 %v6456, %v6517
  %v6525 = vadd.f32 %v6457, %v6517
  %v6526 = vadd.f32 %v6458, %v6517
  %v6527 = vadd.f32 %v6459, %v6517
  %v6528 = vadd.f32 %v6460, %v6517
  %v6529 = vadd.f32 %v6461, %v6517
  %v6530 = vadd.f32 %v6462, %v6517
  %v6531 = vadd.f32 %v6463, %v6517
  %v6532 = vadd.f32 %v6464, %v6517
  %v6533 = vadd.f32 %v6465, %v6517
  %v6534 = vadd.f32 %v6466, %v6517
  %v6535 = vadd.f32 %v6467, %v6517
  %v6536 = vadd.f32 %v6468, %v6517
  %v6537 = vadd.f32 %v6469, %v6517
  %v6538 = vadd.f32 %v6470, %v6517
  %v6539 = vadd.f32 %v6471, %v6517
  %v6540 = vadd.f32 %v6472, %v6517
  %v6541 = vadd.f32 %v6473, %v6517
  %v6542 = vadd.f32 %v6474, %v6517
  %v6543 = vadd.f32 %v6475, %v6517
  %v6544 = vadd.f32 %v6476, %v6517
  %v6545 = vadd.f32 %v6477, %v6517
  %v6546 = vadd.f32 %v6478, %v6517
  %v6547 = vadd.f32 %v6479, %v6517
  %v6548 = vadd.f32 %v6480, %v6517
  %v6549 = vadd.f32 %v6481, %v6517
  %v6550 = vadd.f32 %v6482, %v6517
  %v6551 = vadd.f32 %v6483, %v6517
  %v6552 = vadd.f32 %v6484, %v6517
  %v6553 = vadd.f32 %v6485, %v6517
  %v6554 = vadd.f32 %v6486, %v6517
  %v6555 = vadd.f32 %v6487, %v6517
  %v6556 = vadd.f32 %v6488, %v6517
  %v6557 = vadd.f32 %v6489, %v6517
  %v6558 = vadd.f32 %v6490, %v6517
  %v6559 = vadd.f32 %v6491, %v6517
  %v6560 = vadd.f32 %v6492, %v6517
  %v6561 = vadd.f32 %v6493, %v6517
  %v6562 = vadd.f32 %v6494, %v6517
  %v6563 = vadd.f32 %v6495, %v6517
  %v6564 = vadd.f32 %v6496, %v6517
  %v6565 = vadd.f32 %v6497, %v6517
  %v6566 = vadd.f32 %v6498, %v6517
  %v6567 = vadd.f32 %v6499, %v6517
  %v6568 = vadd.f32 %v6500, %v6517
  %v6569 = vadd.f32 %v6501, %v6517
  %v6570 = vadd.f32 %v6502, %v6517
  %v6571 = vadd.f32 %v6503, %v6517
  %v6572 = vadd.f32 %v6504, %v6517
  %v6573 = vadd.f32 %v6505, %v6517
  %v6574 = vadd.f32 %v6506, %v6517
  %v6575 = vadd.f32 %v6507, %v6517
  %v6576 = vadd.f32 %v6508, %v6517
  %v6577 = vadd.f32 %v6509, %v6517
  %v6578 = vadd.f32 %v6510, %v6517
  %v6579 = vadd.f32 %v6511, %v6517
  %v6580 = vadd.f32 %v6512, %v6517
  %v6581 = vadd.f32 %v6513, %v6517
  %v6582 = vadd.f32 %v6514, %v6517
  %v6583 = vmax.f32 %v6519, 0.0
  %v6584 = vmax.f32 %v6520, 0.0
  %v6585 = vmax.f32 %v6521, 0.0
  %v6586 = vmax.f32 %v6522, 0.0
  %v6587 = vmax.f32 %v6523, 0.0
  %v6588 = vmax.f32 %v6524, 0.0
  %v6589 = vmax.f32 %v6525, 0.0
  %v6590 = vmax.f32 %v6526, 0.0
  %v6591 = vmax.f32 %v6527, 0.0
  %v6592 = vmax.f32 %v6528, 0.0
  %v6593 = vmax.f32 %v6529, 0.0
  %v6594 = vmax.f32 %v6530, 0.0
  %v6595 = vmax.f32 %v6531, 0.0
  %v6596 = vmax.f32 %v6532, 0.0
  %v6597 = vmax.f32 %v6533, 0.0
  %v6598 = vmax.f32 %v6534, 0.0
  %v6599 = vmax.f32 %v6535, 0.0
  %v6600 = vmax.f32 %v6536, 0.0
  %v6601 = vmax.f32 %v6537, 0.0
  %v6602 = vmax.f32 %v6538, 0.0
  %v6603 = vmax.f32 %v6539, 0.0
  %v6604 = vmax.f32 %v6540, 0.0
  %v6605 = vmax.f32 %v6541, 0.0
  %v6606 = vmax.f32 %v6542, 0.0
  %v6607 = vmax.f32 %v6543, 0.0
  %v6608 = vmax.f32 %v6544, 0.0
  %v6609 = vmax.f32 %v6545, 0.0
  %v6610 = vmax.f32 %v6546, 0.0
  %v6611 = vmax.f32 %v6547, 0.0
  %v6612 = vmax.f32 %v6548, 0.0
  %v6613 = vmax.f32 %v6549, 0.0
  %v6614 = vmax.f32 %v6550, 0.0
  %v6615 = vmax.f32 %v6551, 0.0
  %v6616 = vmax.f32 %v6552, 0.0
  %v6617 = vmax.f32 %v6553, 0.0
  %v6618 = vmax.f32 %v6554, 0.0
  %v6619 = vmax.f32 %v6555, 0.0
  %v6620 = vmax.f32 %v6556, 0.0
  %v6621 = vmax.f32 %v6557, 0.0
  %v6622 = vmax.f32 %v6558, 0.0
  %v6623 = vmax.f32 %v6559, 0.0
  %v6624 = vmax.f32 %v6560, 0.0
  %v6625 = vmax.f32 %v6561, 0.0
  %v6626 = vmax.f32 %v6562, 0.0
  %v6627 = vmax.f32 %v6563, 0.0
  %v6628 = vmax.f32 %v6564, 0.0
  %v6629 = vmax.f32 %v6565, 0.0
  %v6630 = vmax.f32 %v6566, 0.0
  %v6631 = vmax.f32 %v6567, 0.0
  %v6632 = vmax.f32 %v6568, 0.0
  %v6633 = vmax.f32 %v6569, 0.0
  %v6634 = vmax.f32 %v6570, 0.0
  %v6635 = vmax.f32 %v6571, 0.0
  %v6636 = vmax.f32 %v6572, 0.0
  %v6637 = vmax.f32 %v6573, 0.0
  %v6638 = vmax.f32 %v6574, 0.0
  %v6639 = vmax.f32 %v6575, 0.0
  %v6640 = vmax.f32 %v6576, 0.0
  %v6641 = vmax.f32 %v6577, 0.0
  %v6642 = vmax.f32 %v6578, 0.0
  %v6643 = vmax.f32 %v6579, 0.0
  %v6644 = vmax.f32 %v6580, 0.0
  %v6645 = vmax.f32 %v6581, 0.0
  %v6646 = vmax.f32 %v6582, 0.0
  %v6647 = vpack.c.bf16 %v6584, %v6583
  %v6648 = vpack.c.bf16 %v6586, %v6585
  %v6649 = vpack.c.bf16 %v6588, %v6587
  %v6650 = vpack.c.bf16 %v6590, %v6589
  %v6651 = vpack.c.bf16 %v6592, %v6591
  %v6652 = vpack.c.bf16 %v6594, %v6593
  %v6653 = vpack.c.bf16 %v6596, %v6595
  %v6654 = vpack.c.bf16 %v6598, %v6597
  %v6655 = vpack.c.bf16 %v6600, %v6599
  %v6656 = vpack.c.bf16 %v6602, %v6601
  %v6657 = vpack.c.bf16 %v6604, %v6603
  %v6658 = vpack.c.bf16 %v6606, %v6605
  %v6659 = vpack.c.bf16 %v6608, %v6607
  %v6660 = vpack.c.bf16 %v6610, %v6609
  %v6661 = vpack.c.bf16 %v6612, %v6611
  %v6662 = vpack.c.bf16 %v6614, %v6613
  %v6663 = vpack.c.bf16 %v6616, %v6615
  %v6664 = vpack.c.bf16 %v6618, %v6617
  %v6665 = vpack.c.bf16 %v6620, %v6619
  %v6666 = vpack.c.bf16 %v6622, %v6621
  %v6667 = vpack.c.bf16 %v6624, %v6623
  %v6668 = vpack.c.bf16 %v6626, %v6625
  %v6669 = vpack.c.bf16 %v6628, %v6627
  %v6670 = vpack.c.bf16 %v6630, %v6629
  %v6671 = vpack.c.bf16 %v6632, %v6631
  %v6672 = vpack.c.bf16 %v6634, %v6633
  %v6673 = vpack.c.bf16 %v6636, %v6635
  %v6674 = vpack.c.bf16 %v6638, %v6637
  %v6675 = vpack.c.bf16 %v6640, %v6639
  %v6676 = vpack.c.bf16 %v6642, %v6641
  %v6677 = vpack.c.bf16 %v6644, %v6643
  %v6678 = vpack.c.bf16 %v6646, %v6645
  %v6679 = vld [vmem:[%s9] sm:$0xf]
  %v6680 = vld [vmem:[%s9 + $0x4] sm:$0xf]
  %v6681 = vld [vmem:[%s9 + $0x8] sm:$0xf]
  %v6682 = vld [vmem:[%s9 + $0xc] sm:$0xf]
  %v6683 = vld [vmem:[%s10] sm:$0x1]
  %v6685 = vperm.slane %v6683, 0
  %v6691 = vunpack.c.l.b16 %v6679
  %v6692 = vunpack.c.l.b16 %v6680
  %v6693 = vunpack.c.l.b16 %v6681
  %v6694 = vunpack.c.l.b16 %v6682
  %v6695 = vpack.c.b16 %v6692, %v6691
  %v6696 = vpack.c.b16 %v6694, %v6693
  %v6700 = vsel %vm1678, %v6647, 0
  %v6703 = vsel %vm1678, %v6648, 0
  %v6706 = vsel %vm1678, %v6649, 0
  %v6709 = vsel %vm1678, %v6650, 0
  %v6712 = vsel %vm1678, %v6651, 0
  %v6715 = vsel %vm1678, %v6652, 0
  %v6718 = vsel %vm1678, %v6653, 0
  %v6721 = vsel %vm1678, %v6654, 0
  %v6724 = vsel %vm1678, %v6655, 0
  %v6727 = vsel %vm1678, %v6656, 0
  %v6730 = vsel %vm1678, %v6657, 0
  %v6733 = vsel %vm1678, %v6658, 0
  %v6736 = vsel %vm1678, %v6659, 0
  %v6739 = vsel %vm1678, %v6660, 0
  %v6742 = vsel %vm1678, %v6661, 0
  %v6745 = vsel %vm1678, %v6662, 0
  %v6748 = vsel %vm1678, %v6663, 0
  %v6751 = vsel %vm1678, %v6664, 0
  %v6754 = vsel %vm1678, %v6665, 0
  %v6757 = vsel %vm1678, %v6666, 0
  %v6760 = vsel %vm1678, %v6667, 0
  %v6763 = vsel %vm1678, %v6668, 0
  %v6766 = vsel %vm1678, %v6669, 0
  %v6769 = vsel %vm1678, %v6670, 0
  %v6772 = vsel %vm1678, %v6671, 0
  %v6775 = vsel %vm1678, %v6672, 0
  %v6778 = vsel %vm1678, %v6673, 0
  %v6781 = vsel %vm1678, %v6674, 0
  %v6784 = vsel %vm1678, %v6675, 0
  %v6787 = vsel %vm1678, %v6676, 0
  %v6790 = vsel %vm1678, %v6677, 0
  %v6793 = vsel %vm1678, %v6678, 0
  %6795 = vmatpush.bf16.msra.mxu0 0
  %6796 = vmatpush.bf16.msra.mxu0 0
  %6797 = vmatpush.bf16.msra.mxu0 0
  %6798 = vmatpush.bf16.msra.mxu0 0
  %6799 = vmatpush.bf16.msra.mxu0 0
  %6800 = vmatpush.bf16.msra.mxu0 0
  %6801 = vmatpush.bf16.msra.mxu0 %v6696
  %6802 = vmatpush.bf16.msra.mxu0 %v6695
  %6803 = vmatmul.bf16.gmra.mxu0 %v6700
  %v6804 = vpop.f32.mrf.mxu0
  %v6805 = vadd.f32 %v6685, %v6804
  %v6806 = vpop.f32.mrf.mxu0
  %v6807 = vadd.f32 %v6685, %v6806
  %6808 = vmatmul.bf16.gmra.mxu0 %v6703
  %v6809 = vpop.f32.mrf.mxu0
  %v6810 = vadd.f32 %v6685, %v6809
  %v6811 = vpop.f32.mrf.mxu0
  %v6812 = vadd.f32 %v6685, %v6811
  %6813 = vmatmul.bf16.gmra.mxu0 %v6706
  %v6814 = vpop.f32.mrf.mxu0
  %v6815 = vadd.f32 %v6685, %v6814
  %v6816 = vpop.f32.mrf.mxu0
  %v6817 = vadd.f32 %v6685, %v6816
  %6818 = vmatmul.bf16.gmra.mxu0 %v6709
  %v6819 = vpop.f32.mrf.mxu0
  %v6820 = vadd.f32 %v6685, %v6819
  %v6821 = vpop.f32.mrf.mxu0
  %v6822 = vadd.f32 %v6685, %v6821
  %6823 = vmatmul.bf16.gmra.mxu0 %v6712
  %v6824 = vpop.f32.mrf.mxu0
  %v6825 = vadd.f32 %v6685, %v6824
  %v6826 = vpop.f32.mrf.mxu0
  %v6827 = vadd.f32 %v6685, %v6826
  %6828 = vmatmul.bf16.gmra.mxu0 %v6715
  %v6829 = vpop.f32.mrf.mxu0
  %v6830 = vadd.f32 %v6685, %v6829
  %v6831 = vpop.f32.mrf.mxu0
  %v6832 = vadd.f32 %v6685, %v6831
  %6833 = vmatmul.bf16.gmra.mxu0 %v6718
  %v6834 = vpop.f32.mrf.mxu0
  %v6835 = vadd.f32 %v6685, %v6834
  %v6836 = vpop.f32.mrf.mxu0
  %v6837 = vadd.f32 %v6685, %v6836
  %6838 = vmatmul.bf16.gmra.mxu0 %v6721
  %v6839 = vpop.f32.mrf.mxu0
  %v6840 = vadd.f32 %v6685, %v6839
  %v6841 = vpop.f32.mrf.mxu0
  %v6842 = vadd.f32 %v6685, %v6841
  %6843 = vmatmul.bf16.gmra.mxu0 %v6724
  %v6844 = vpop.f32.mrf.mxu0
  %v6845 = vadd.f32 %v6685, %v6844
  %v6846 = vpop.f32.mrf.mxu0
  %v6847 = vadd.f32 %v6685, %v6846
  %6848 = vmatmul.bf16.gmra.mxu0 %v6727
  %v6849 = vpop.f32.mrf.mxu0
  %v6850 = vadd.f32 %v6685, %v6849
  %v6851 = vpop.f32.mrf.mxu0
  %v6852 = vadd.f32 %v6685, %v6851
  %6853 = vmatmul.bf16.gmra.mxu0 %v6730
  %v6854 = vpop.f32.mrf.mxu0
  %v6855 = vadd.f32 %v6685, %v6854
  %v6856 = vpop.f32.mrf.mxu0
  %v6857 = vadd.f32 %v6685, %v6856
  %6858 = vmatmul.bf16.gmra.mxu0 %v6733
  %v6859 = vpop.f32.mrf.mxu0
  %v6860 = vadd.f32 %v6685, %v6859
  %v6861 = vpop.f32.mrf.mxu0
  %v6862 = vadd.f32 %v6685, %v6861
  %6863 = vmatmul.bf16.gmra.mxu0 %v6736
  %v6864 = vpop.f32.mrf.mxu0
  %v6865 = vadd.f32 %v6685, %v6864
  %v6866 = vpop.f32.mrf.mxu0
  %v6867 = vadd.f32 %v6685, %v6866
  %6868 = vmatmul.bf16.gmra.mxu0 %v6739
  %v6869 = vpop.f32.mrf.mxu0
  %v6870 = vadd.f32 %v6685, %v6869
  %v6871 = vpop.f32.mrf.mxu0
  %v6872 = vadd.f32 %v6685, %v6871
  %6873 = vmatmul.bf16.gmra.mxu0 %v6742
  %v6874 = vpop.f32.mrf.mxu0
  %v6875 = vadd.f32 %v6685, %v6874
  %v6876 = vpop.f32.mrf.mxu0
  %v6877 = vadd.f32 %v6685, %v6876
  %6878 = vmatmul.bf16.gmra.mxu0 %v6745
  %v6879 = vpop.f32.mrf.mxu0
  %v6880 = vadd.f32 %v6685, %v6879
  %v6881 = vpop.f32.mrf.mxu0
  %v6882 = vadd.f32 %v6685, %v6881
  %6883 = vmatmul.bf16.gmra.mxu0 %v6748
  %v6884 = vpop.f32.mrf.mxu0
  %v6885 = vadd.f32 %v6685, %v6884
  %v6886 = vpop.f32.mrf.mxu0
  %v6887 = vadd.f32 %v6685, %v6886
  %6888 = vmatmul.bf16.gmra.mxu0 %v6751
  %v6889 = vpop.f32.mrf.mxu0
  %v6890 = vadd.f32 %v6685, %v6889
  %v6891 = vpop.f32.mrf.mxu0
  %v6892 = vadd.f32 %v6685, %v6891
  %6893 = vmatmul.bf16.gmra.mxu0 %v6754
  %v6894 = vpop.f32.mrf.mxu0
  %v6895 = vadd.f32 %v6685, %v6894
  %v6896 = vpop.f32.mrf.mxu0
  %v6897 = vadd.f32 %v6685, %v6896
  %6898 = vmatmul.bf16.gmra.mxu0 %v6757
  %v6899 = vpop.f32.mrf.mxu0
  %v6900 = vadd.f32 %v6685, %v6899
  %v6901 = vpop.f32.mrf.mxu0
  %v6902 = vadd.f32 %v6685, %v6901
  %6903 = vmatmul.bf16.gmra.mxu0 %v6760
  %v6904 = vpop.f32.mrf.mxu0
  %v6905 = vadd.f32 %v6685, %v6904
  %v6906 = vpop.f32.mrf.mxu0
  %v6907 = vadd.f32 %v6685, %v6906
  %6908 = vmatmul.bf16.gmra.mxu0 %v6763
  %v6909 = vpop.f32.mrf.mxu0
  %v6910 = vadd.f32 %v6685, %v6909
  %v6911 = vpop.f32.mrf.mxu0
  %v6912 = vadd.f32 %v6685, %v6911
  %6913 = vmatmul.bf16.gmra.mxu0 %v6766
  %v6914 = vpop.f32.mrf.mxu0
  %v6915 = vadd.f32 %v6685, %v6914
  %v6916 = vpop.f32.mrf.mxu0
  %v6917 = vadd.f32 %v6685, %v6916
  %6918 = vmatmul.bf16.gmra.mxu0 %v6769
  %v6919 = vpop.f32.mrf.mxu0
  %v6920 = vadd.f32 %v6685, %v6919
  %v6921 = vpop.f32.mrf.mxu0
  %v6922 = vadd.f32 %v6685, %v6921
  %6923 = vmatmul.bf16.gmra.mxu0 %v6772
  %v6924 = vpop.f32.mrf.mxu0
  %v6925 = vadd.f32 %v6685, %v6924
  %v6926 = vpop.f32.mrf.mxu0
  %v6927 = vadd.f32 %v6685, %v6926
  %6928 = vmatmul.bf16.gmra.mxu0 %v6775
  %v6929 = vpop.f32.mrf.mxu0
  %v6930 = vadd.f32 %v6685, %v6929
  %v6931 = vpop.f32.mrf.mxu0
  %v6932 = vadd.f32 %v6685, %v6931
  %6933 = vmatmul.bf16.gmra.mxu0 %v6778
  %v6934 = vpop.f32.mrf.mxu0
  %v6935 = vadd.f32 %v6685, %v6934
  %v6936 = vpop.f32.mrf.mxu0
  %v6937 = vadd.f32 %v6685, %v6936
  %6938 = vmatmul.bf16.gmra.mxu0 %v6781
  %v6939 = vpop.f32.mrf.mxu0
  %v6940 = vadd.f32 %v6685, %v6939
  %v6941 = vpop.f32.mrf.mxu0
  %v6942 = vadd.f32 %v6685, %v6941
  %6943 = vmatmul.bf16.gmra.mxu0 %v6784
  %v6944 = vpop.f32.mrf.mxu0
  %v6945 = vadd.f32 %v6685, %v6944
  %v6946 = vpop.f32.mrf.mxu0
  %v6947 = vadd.f32 %v6685, %v6946
  %6948 = vmatmul.bf16.gmra.mxu0 %v6787
  %v6949 = vpop.f32.mrf.mxu0
  %v6950 = vadd.f32 %v6685, %v6949
  %v6951 = vpop.f32.mrf.mxu0
  %v6952 = vadd.f32 %v6685, %v6951
  %6953 = vmatmul.bf16.gmra.mxu0 %v6790
  %v6954 = vpop.f32.mrf.mxu0
  %v6955 = vadd.f32 %v6685, %v6954
  %v6956 = vpop.f32.mrf.mxu0
  %v6957 = vadd.f32 %v6685, %v6956
  %6958 = vmatmul.bf16.gmra.mxu0 %v6793
  %v6959 = vpop.f32.mrf.mxu0
  %v6960 = vadd.f32 %v6685, %v6959
  %v6961 = vpop.f32.mrf.mxu0
  %v6962 = vadd.f32 %v6685, %v6961
  %6963 = vdwg.mxu0
  %6964 = vst [vmem:[%s11] sm:$0xff] %v6805
  %6965 = vst [vmem:[%s11 + $0x8] sm:$0xff] %v6807
  %6966 = vst [vmem:[%s11 + $0x10] sm:$0xff] %v6810
  %6967 = vst [vmem:[%s11 + $0x18] sm:$0xff] %v6812
  %6968 = vst [vmem:[%s11 + $0x20] sm:$0xff] %v6815
  %6969 = vst [vmem:[%s11 + $0x28] sm:$0xff] %v6817
  %6970 = vst [vmem:[%s11 + $0x30] sm:$0xff] %v6820
  %6971 = vst [vmem:[%s11 + $0x38] sm:$0xff] %v6822
  %6972 = vst [vmem:[%s11 + $0x40] sm:$0xff] %v6825
  %6973 = vst [vmem:[%s11 + $0x48] sm:$0xff] %v6827
  %6974 = vst [vmem:[%s11 + $0x50] sm:$0xff] %v6830
  %6975 = vst [vmem:[%s11 + $0x58] sm:$0xff] %v6832
  %6976 = vst [vmem:[%s11 + $0x60] sm:$0xff] %v6835
  %6977 = vst [vmem:[%s11 + $0x68] sm:$0xff] %v6837
  %6978 = vst [vmem:[%s11 + $0x70] sm:$0xff] %v6840
  %6979 = vst [vmem:[%s11 + $0x78] sm:$0xff] %v6842
  %6980 = vst [vmem:[%s11 + $0x80] sm:$0xff] %v6845
  %6981 = vst [vmem:[%s11 + $0x88] sm:$0xff] %v6847
  %6982 = vst [vmem:[%s11 + $0x90] sm:$0xff] %v6850
  %6983 = vst [vmem:[%s11 + $0x98] sm:$0xff] %v6852
  %6984 = vst [vmem:[%s11 + $0xa0] sm:$0xff] %v6855
  %6985 = vst [vmem:[%s11 + $0xa8] sm:$0xff] %v6857
  %6986 = vst [vmem:[%s11 + $0xb0] sm:$0xff] %v6860
  %6987 = vst [vmem:[%s11 + $0xb8] sm:$0xff] %v6862
  %6988 = vst [vmem:[%s11 + $0xc0] sm:$0xff] %v6865
  %6989 = vst [vmem:[%s11 + $0xc8] sm:$0xff] %v6867
  %6990 = vst [vmem:[%s11 + $0xd0] sm:$0xff] %v6870
  %6991 = vst [vmem:[%s11 + $0xd8] sm:$0xff] %v6872
  %6992 = vst [vmem:[%s11 + $0xe0] sm:$0xff] %v6875
  %6993 = vst [vmem:[%s11 + $0xe8] sm:$0xff] %v6877
  %6994 = vst [vmem:[%s11 + $0xf0] sm:$0xff] %v6880
  %6995 = vst [vmem:[%s11 + $0xf8] sm:$0xff] %v6882
  %6996 = vst [vmem:[%s11 + $0x100] sm:$0xff] %v6885
  %6997 = vst [vmem:[%s11 + $0x108] sm:$0xff] %v6887
  %6998 = vst [vmem:[%s11 + $0x110] sm:$0xff] %v6890
  %6999 = vst [vmem:[%s11 + $0x118] sm:$0xff] %v6892
  %7000 = vst [vmem:[%s11 + $0x120] sm:$0xff] %v6895
  %7001 = vst [vmem:[%s11 + $0x128] sm:$0xff] %v6897
  %7002 = vst [vmem:[%s11 + $0x130] sm:$0xff] %v6900
  %7003 = vst [vmem:[%s11 + $0x138] sm:$0xff] %v6902
  %7004 = vst [vmem:[%s11 + $0x140] sm:$0xff] %v6905
  %7005 = vst [vmem:[%s11 + $0x148] sm:$0xff] %v6907
  %7006 = vst [vmem:[%s11 + $0x150] sm:$0xff] %v6910
  %7007 = vst [vmem:[%s11 + $0x158] sm:$0xff] %v6912
  %7008 = vst [vmem:[%s11 + $0x160] sm:$0xff] %v6915
  %7009 = vst [vmem:[%s11 + $0x168] sm:$0xff] %v6917
  %7010 = vst [vmem:[%s11 + $0x170] sm:$0xff] %v6920
  %7011 = vst [vmem:[%s11 + $0x178] sm:$0xff] %v6922
  %7012 = vst [vmem:[%s11 + $0x180] sm:$0xff] %v6925
  %7013 = vst [vmem:[%s11 + $0x188] sm:$0xff] %v6927
  %7014 = vst [vmem:[%s11 + $0x190] sm:$0xff] %v6930
  %7015 = vst [vmem:[%s11 + $0x198] sm:$0xff] %v6932
  %7016 = vst [vmem:[%s11 + $0x1a0] sm:$0xff] %v6935
  %7017 = vst [vmem:[%s11 + $0x1a8] sm:$0xff] %v6937
  %7018 = vst [vmem:[%s11 + $0x1b0] sm:$0xff] %v6940
  %7019 = vst [vmem:[%s11 + $0x1b8] sm:$0xff] %v6942
  %7020 = vst [vmem:[%s11 + $0x1c0] sm:$0xff] %v6945
  %7021 = vst [vmem:[%s11 + $0x1c8] sm:$0xff] %v6947
  %7022 = vst [vmem:[%s11 + $0x1d0] sm:$0xff] %v6950
  %7023 = vst [vmem:[%s11 + $0x1d8] sm:$0xff] %v6952
  %7024 = vst [vmem:[%s11 + $0x1e0] sm:$0xff] %v6955
  %7025 = vst [vmem:[%s11 + $0x1e8] sm:$0xff] %v6957
  %7026 = vst [vmem:[%s11 + $0x1f0] sm:$0xff] %v6960
  %7027 = vst [vmem:[%s11 + $0x1f8] sm:$0xff] %v6962
  // Predicated region
  $region46: #{decoder_block.1} parent=0 // pred_check
    _
  $region47: #{decoder_block.1} parent=0 // pred_check_branch
    %7029 = sbr.rel (0) target = $region49
  $region48: #{decoder_block.1} parent=0 // pred_region
    _
  $region49: #{decoder_block.1} parent=0 // pred_fallthru
    _
  // Predicated region
  $region50: #{decoder_block.1} parent=0 // pred_check
    _
  $region51: #{decoder_block.1} parent=0 // pred_check_branch
    %7031 = sbr.rel (0) target = $region53
  $region52: #{decoder_block.1} parent=0 // pred_region
    _
  $region53: #{decoder_block.1} parent=0 // pred_fallthru
    _

</llo_original>
